<compile_context>
chip_gen: v6e
topology: v6e:2x2x1
jax: 0.10.0
libtpu: 0.0.40
codegen_flags: <defaults>
</compile_context>

<pallas_src>
import jax
import jax.numpy as jnp
from jax.experimental import pallas as pl
from jax.experimental.pallas import tpu as pltpu


def _round_up(x, m):
    return (x + m - 1) // m * m


def supcon_head_kernel(x_ref, w1_ref, b1_ref, w2_ref, b2_ref, out_ref):
    # x_ref: (TB, C, HW) feature-map tile in its native dtype (f32 from the
    # backbone).  Global average pool over spatial (last / lane axis) with f32
    # accumulation; the 1/HW scale is folded into w1 by the wrapper.  The reduce
    # result (TB, C) lands with C on the lane axis -- exactly the LHS layout the
    # first matmul wants.
    feat = jnp.sum(x_ref[...], axis=-1, dtype=jnp.float32)               # (TB, C) f32

    # head = Linear(C, C) -> ReLU -> Linear(C, feat_dim_padded)
    # Weights are stored (in, out), so x @ W (+ b) == nn.Linear(x).
    h = jnp.dot(feat.astype(w1_ref.dtype), w1_ref[...],
                preferred_element_type=jnp.float32)
    h = jnp.maximum(h + b1_ref[...].astype(jnp.float32), 0.0)

    z = jnp.dot(h.astype(w2_ref.dtype), w2_ref[...],
                preferred_element_type=jnp.float32)
    z = z + b2_ref[...].astype(jnp.float32)

    # F.normalize(z, dim=1): z / max(||z||, 1e-12). Padded columns of w2/b2 are
    # exactly zero, so the norm over the padded width equals the real norm.
    sumsq = jnp.sum(z * z, axis=-1, keepdims=True)
    inv_norm = jax.lax.rsqrt(jnp.maximum(sumsq, 1e-24))                  # EUP slot
    out_ref[...] = (z * inv_norm).astype(out_ref.dtype)


def _vmem_cap_bytes():
    """Per-generation usable VMEM (physical per-TensorCore capacity - headroom)."""
    try:
        cap = int(pltpu.get_tpu_info().vmem_capacity_bytes)
    except Exception:
        cap = 64 * 1024 * 1024        # conservative fallback: fits every generation
    return max(cap - 8 * 1024 * 1024, 16 * 1024 * 1024)


def _vmem_need_bytes(tb, hw, c, fp, x_bytes, w_bytes):
    """Estimate of VMEM needed for one grid step at batch tile `tb`."""
    # Streamed x tile: VMEM stores the last two dims (C, HW) in (8, 128)-tiled
    # layout, so the HW (lane) dim pads to 128 and C (sublane) pads to 8.
    x_tile = tb * _round_up(c, 8) * _round_up(hw, 128) * x_bytes
    # Resident weights/biases, budgeted at 2x in case the constant-index blocks
    # are double-buffered by Mosaic (single-buffering them would reclaim half).
    weights = 2 * ((c * c + c * fp) * w_bytes + (c + fp) * 4)
    out_tile = tb * fp * 4
    # In-kernel temporaries: feat & h in f32 + bf16, z + normalized z in f32.
    temps = 2 * tb * c * (4 + w_bytes) + 2 * tb * fp * 4
    return 2 * x_tile + weights + 2 * out_tile + temps + (4 << 20)


def supcon_encoder_forward(x_nchw, w1, b1, w2, b2, *, batch_tile=128,
                           compute_dtype=jnp.bfloat16):
    """x_nchw: (B, C, H, W) backbone feature maps (PyTorch NCHW).
    w1: (C, C), b1: (C,), w2: (C, feat_dim), b2: (feat_dim,)  stored (in, out).
    Returns (B, feat_dim) float32, L2-normalized along dim=1."""
    B, C, H, W = x_nchw.shape
    HW = H * W
    feat_dim = w2.shape[1]
    fp = _round_up(max(feat_dim, 128), 128)          # lane-dense output width

    # Free reshape only -- no transpose, no cast pre-pass. The activation is
    # streamed in its native dtype and cast inside the kernel.
    x = x_nchw.reshape(B, C, HW)
    x_bytes = jnp.dtype(x.dtype).itemsize
    w_bytes = jnp.dtype(compute_dtype).itemsize

    # ---- batch tile selection ----
    cap = _vmem_cap_bytes()
    b8 = _round_up(B, 8)
    tb = min(max(8, batch_tile - batch_tile % 8), b8)
    # Keep >= 2 grid steps whenever the batch allows, so the "parallel" grid axis
    # feeds both v7x TensorCores (extra steps are negligible on v5e/v6e).
    if b8 >= 16:
        tb = min(tb, max(8, (b8 // 2) // 8 * 8))
    # Shrink until the double-buffered x tile + weights + temporaries fit VMEM.
    while tb > 8 and _vmem_need_bytes(tb, HW, C, fp, x_bytes, w_bytes) > cap:
        tb -= 8
    b_pad = _round_up(B, tb)
    if b_pad != B:
        x = jnp.pad(x, ((0, b_pad - B), (0, 0), (0, 0)))

    # Fold the 1/HW pooling scale into w1 (relu((f/HW)@W + b) == relu(f@(W/HW) + b)).
    # Zero-pad the projection width so padded output columns are exactly zero.
    w1c = (w1 * (1.0 / HW)).astype(compute_dtype)
    b1c = b1.reshape(1, C).astype(jnp.float32)
    w2c = jnp.zeros((C, fp), compute_dtype).at[:, :feat_dim].set(
        w2.astype(compute_dtype))
    b2c = jnp.zeros((1, fp), jnp.float32).at[:, :feat_dim].set(
        b2.reshape(1, feat_dim).astype(jnp.float32))

    vmem_limit = int(min(
        max(_vmem_need_bytes(tb, HW, C, fp, x_bytes, w_bytes), 32 * 1024 * 1024),
        cap))

    cost = pl.CostEstimate(
        flops=int(2 * b_pad * C * C + 2 * b_pad * C * fp
                  + b_pad * C * HW + 3 * b_pad * fp),
        transcendentals=int(b_pad),
        bytes_accessed=int(b_pad * HW * C * x_bytes
                           + (C * C + C * fp) * w_bytes + (C + fp) * 4
                           + b_pad * fp * 4),
    )

    out = pl.pallas_call(
        supcon_head_kernel,
        out_shape=jax.ShapeDtypeStruct((b_pad, fp), jnp.float32),
        grid=(b_pad // tb,),
        in_specs=[
            pl.BlockSpec((tb, C, HW), lambda i: (i, 0, 0)),   # streamed NCHW tile
            pl.BlockSpec((C, C), lambda i: (0, 0)),           # resident w1 (pre-scaled)
            pl.BlockSpec((1, C), lambda i: (0, 0)),           # resident b1
            pl.BlockSpec((C, fp), lambda i: (0, 0)),          # resident w2 (padded)
            pl.BlockSpec((1, fp), lambda i: (0, 0)),          # resident b2 (padded)
        ],
        out_specs=pl.BlockSpec((tb, fp), lambda i: (i, 0)),
        compiler_params=pltpu.CompilerParams(
            dimension_semantics=("parallel",),
            vmem_limit_bytes=vmem_limit,
        ),
        cost_estimate=cost,
    )(x, w1c, b1c, w2c, b2c)

    return out[:B, :feat_dim]


def init_params(key, dim_in, feat_dim):
    """Deterministic init of the 'mlp' projection head (Linear, ReLU, Linear)."""
    k1, k2, k3, k4 = jax.random.split(key, 4)
    lim = 1.0 / (dim_in ** 0.5)                      # nn.Linear default U(-1/sqrt(fan_in), ...)
    w1 = jax.random.uniform(k1, (dim_in, dim_in), jnp.float32, -lim, lim)    # (in, out)
    b1 = jax.random.uniform(k2, (dim_in,), jnp.float32, -lim, lim)
    w2 = jax.random.uniform(k3, (dim_in, feat_dim), jnp.float32, -lim, lim)  # (in, out)
    b2 = jax.random.uniform(k4, (feat_dim,), jnp.float32, -lim, lim)
    return w1, b1, w2, b2


if __name__ == "__main__":
    key = jax.random.PRNGKey(0)
    k_x, k_p = jax.random.split(key)

    # Small synthetic shapes (stand-in for e.g. resnet152: C=2048, HW=49, feat_dim=128).
    B, C, H, W = 16, 256, 8, 8
    feat_dim = 64

    x = jax.random.normal(k_x, (B, C, H, W), dtype=jnp.float32)
    w1, b1, w2, b2 = init_params(k_p, C, feat_dim)

    out = supcon_encoder_forward(x, w1, b1, w2, b2)   # auto-tiled: grid=(2,)
    out = jax.block_until_ready(out)

    # Pure-JAX f32 reference of the same forward semantics.
    feat_ref = jnp.mean(x.reshape(B, C, H * W), axis=-1)
    h_ref = jnp.maximum(feat_ref @ w1 + b1[None, :], 0.0)
    z_ref = h_ref @ w2 + b2[None, :]
    z_ref = z_ref / jnp.maximum(
        jnp.sqrt(jnp.sum(z_ref * z_ref, axis=1, keepdims=True)), 1e-12)

    assert out.shape == (B, feat_dim)
    # Kernel computes in bf16 with f32 accumulation -> loose tolerance vs f32 ref.
    assert jnp.allclose(out, z_ref, atol=3e-2, rtol=3e-2), (
        float(jnp.max(jnp.abs(out - z_ref))))
    # Output rows must be unit-norm over the real feat_dim columns.
    assert jnp.allclose(jnp.linalg.norm(out, axis=1), 1.0, atol=1e-2)

    print("KERNEL_OK")
</pallas_src>

<mosaic_0001>
module attributes {stable_mosaic.version = 11 : i64} {
  func.func @supcon_head_kernel(%arg0: i32, %arg1: memref<8x256x64xf32, #tpu.memory_space<vmem>>, %arg2: memref<256x256xbf16, #tpu.memory_space<vmem>>, %arg3: memref<1x256xf32, #tpu.memory_space<vmem>>, %arg4: memref<256x128xbf16, #tpu.memory_space<vmem>>, %arg5: memref<1x128xf32, #tpu.memory_space<vmem>>, %arg6: memref<8x128xf32, #tpu.memory_space<vmem>>) attributes {dimension_semantics = [#tpu.dimension_semantics<parallel>], iteration_bounds = array<i64: 2>, scalar_prefetch = 0 : i64, scratch_operands = 0 : i64, tpu.core_type = #tpu.core_type<tc>, window_params = [{transform_indices = @transform_0, window_bounds = array<i64: 8, 256, 64>}, {pipeline_mode = #tpu.pipeline_mode<synchronous>, transform_indices = @transform_1, window_bounds = array<i64: 256, 256>}, {pipeline_mode = #tpu.pipeline_mode<synchronous>, transform_indices = @transform_2, window_bounds = array<i64: 1, 256>}, {pipeline_mode = #tpu.pipeline_mode<synchronous>, transform_indices = @transform_3, window_bounds = array<i64: 256, 128>}, {pipeline_mode = #tpu.pipeline_mode<synchronous>, transform_indices = @transform_4, window_bounds = array<i64: 1, 128>}, {transform_indices = @transform_5, window_bounds = array<i64: 8, 128>}]} {
    %c0 = arith.constant 0 : index
    %c0_0 = arith.constant 0 : index
    %c0_1 = arith.constant 0 : index
    %0 = vector.load %arg1[%c0, %c0_0, %c0_1] : memref<8x256x64xf32, #tpu.memory_space<vmem>>, vector<8x256x64xf32>
    %cst = arith.constant dense<0.000000e+00> : vector<8x256xf32>
    %1 = vector.multi_reduction <add>, %0, %cst [2] : vector<8x256x64xf32> to vector<8x256xf32>
    %2 = arith.truncf %1 : vector<8x256xf32> to vector<8x256xbf16>
    %c0_2 = arith.constant 0 : index
    %c0_3 = arith.constant 0 : index
    %3 = vector.load %arg2[%c0_2, %c0_3] : memref<256x256xbf16, #tpu.memory_space<vmem>>, vector<256x256xbf16>
    %cst_4 = arith.constant dense<0.000000e+00> : vector<8x256xf32>
    %4 = tpu.matmul %2, %3, %cst_4 {dimension_numbers = #tpu.dot_dimension_numbers<[1], [0], [0], [1], [0, 0, 1, 1], [], []>} : vector<8x256xbf16>, vector<256x256xbf16>, vector<8x256xf32> -> vector<8x256xf32>
    %c0_5 = arith.constant 0 : index
    %c0_6 = arith.constant 0 : index
    %5 = vector.load %arg3[%c0_5, %c0_6] : memref<1x256xf32, #tpu.memory_space<vmem>>, vector<1x256xf32>
    %6 = vector.broadcast %5 : vector<1x256xf32> to vector<8x256xf32>
    %7 = arith.addf %4, %6 : vector<8x256xf32>
    %cst_7 = arith.constant 0.000000e+00 : f32
    %8 = vector.broadcast %cst_7 : f32 to vector<8x256xf32>
    %9 = arith.maximumf %7, %8 : vector<8x256xf32>
    %10 = arith.truncf %9 : vector<8x256xf32> to vector<8x256xbf16>
    %c0_8 = arith.constant 0 : index
    %c0_9 = arith.constant 0 : index
    %11 = vector.load %arg4[%c0_8, %c0_9] : memref<256x128xbf16, #tpu.memory_space<vmem>>, vector<256x128xbf16>
    %cst_10 = arith.constant dense<0.000000e+00> : vector<8x128xf32>
    %12 = tpu.matmul %10, %11, %cst_10 {dimension_numbers = #tpu.dot_dimension_numbers<[1], [0], [0], [1], [0, 0, 1, 1], [], []>} : vector<8x256xbf16>, vector<256x128xbf16>, vector<8x128xf32> -> vector<8x128xf32>
    %c0_11 = arith.constant 0 : index
    %c0_12 = arith.constant 0 : index
    %13 = vector.load %arg5[%c0_11, %c0_12] : memref<1x128xf32, #tpu.memory_space<vmem>>, vector<1x128xf32>
    %14 = vector.broadcast %13 : vector<1x128xf32> to vector<8x128xf32>
    %15 = arith.addf %12, %14 : vector<8x128xf32>
    %16 = arith.mulf %15, %15 : vector<8x128xf32>
    %cst_13 = arith.constant dense<0.000000e+00> : vector<8xf32>
    %17 = vector.multi_reduction <add>, %16, %cst_13 [1] : vector<8x128xf32> to vector<8xf32>
    %18 = vector.shape_cast %17 : vector<8xf32> to vector<8x1xf32>
    %cst_14 = arith.constant 1.000000e-24 : f32
    %19 = vector.broadcast %cst_14 : f32 to vector<8x1xf32>
    %20 = arith.maximumf %18, %19 : vector<8x1xf32>
    %21 = math.rsqrt %20 : vector<8x1xf32>
    %22 = vector.broadcast %21 : vector<8x1xf32> to vector<8x128xf32>
    %23 = arith.mulf %15, %22 : vector<8x128xf32>
    %c0_15 = arith.constant 0 : index
    %c0_16 = arith.constant 0 : index
    %24 = vector.load %arg6[%c0_15, %c0_16] : memref<8x128xf32, #tpu.memory_space<vmem>>, vector<8x128xf32>
    tpu.vector_store %arg6[%c0_15, %c0_16], %23 {strides = array<i32>} : memref<8x128xf32, #tpu.memory_space<vmem>>, vector<8x128xf32>,
    return
  }
  func.func @transform_0(%arg0: i32) -> (i32, i32, i32) {
    %c0_i32 = arith.constant 0 : i32
    %c0_i32_0 = arith.constant 0 : i32
    %c0_i32_1 = arith.constant 0 : i32
    return %arg0, %c0_i32, %c0_i32_0 : i32, i32, i32
  }
  func.func @transform_1(%arg0: i32) -> (i32, i32) {
    %c0_i32 = arith.constant 0 : i32
    %c0_i32_0 = arith.constant 0 : i32
    %c0_i32_1 = arith.constant 0 : i32
    return %c0_i32, %c0_i32_0 : i32, i32
  }
  func.func @transform_2(%arg0: i32) -> (i32, i32) {
    %c0_i32 = arith.constant 0 : i32
    %c0_i32_0 = arith.constant 0 : i32
    %c0_i32_1 = arith.constant 0 : i32
    return %c0_i32, %c0_i32_0 : i32, i32
  }
  func.func @transform_3(%arg0: i32) -> (i32, i32) {
    %c0_i32 = arith.constant 0 : i32
    %c0_i32_0 = arith.constant 0 : i32
    %c0_i32_1 = arith.constant 0 : i32
    return %c0_i32, %c0_i32_0 : i32, i32
  }
  func.func @transform_4(%arg0: i32) -> (i32, i32) {
    %c0_i32 = arith.constant 0 : i32
    %c0_i32_0 = arith.constant 0 : i32
    %c0_i32_1 = arith.constant 0 : i32
    return %c0_i32, %c0_i32_0 : i32, i32
  }
  func.func @transform_5(%arg0: i32) -> (i32, i32) {
    %c0_i32 = arith.constant 0 : i32
    %c0_i32_0 = arith.constant 0 : i32
    return %arg0, %c0_i32 : i32, i32
  }
}

</mosaic_0001>

<llo_original>
// kernel: tpu_custom_call.1
$region0: #{tpu_custom_call.1}
  #allocation0 [shape = 'u32[]', space=smem, size = 0x4, offset = 0x4, fixed_abs, tag = 'smem constant byte address 0x4 - core index']
  #allocation1 [shape = 'u32[144,128]{1,0:T(1,128)}', space=vmem, size = 0x12000, scoped, tag = 'internal scratch']
  %s0 = inlined_call_operand.vmem [shape: f32[16,256,64], index: 0, kind: input, shape index: {}]
  %s1 = inlined_call_operand.vmem [shape: bf16[256,256], index: 1, kind: input, shape index: {}]
  %s2 = inlined_call_operand.vmem [shape: f32[1,256], index: 2, kind: input, shape index: {}]
  %s3 = inlined_call_operand.vmem [shape: bf16[256,128], index: 3, kind: input, shape index: {}]
  %s4 = inlined_call_operand.vmem [shape: f32[1,128], index: 4, kind: input, shape index: {}]
  %s5 = inlined_call_operand.hbm [shape: f32[16,128], index: 5, kind: output, shape index: {}]
  %s6 = sld [smem:[#allocation0]]
  $region53: #{tpu_custom_call.1} parent=0
    _
  %s8 = ssub.s32 1, %s6
  %s9 = scalar_select 0, %s8, %s6
  $region1: #{tpu_custom_call.1} parent=0
    #allocation2 [shape = 'u8[8192]{0}', space=vmem, size = 0x2000, scoped, tag = 'output window, operand 0']
    #allocation3 [shape = 's32[2]{0}', space=sflag, size = 0x8, scoped, tag = 'scoped memory for tpu_custom_call.1']
    %10 = vsyncpa [#allocation3], 0
    %s11 = scalar_lea.sflag [#allocation3], 1
    %12 = vsyncpa %s11, 0
    loop: start=0, step=1, limit=4
    $region2: #{tpu_custom_call.1} parent=1 // loop_pre_header
      _
    $region3: #{tpu_custom_call.1} parent=1 // loop_header
      %s14 = sphi 0, %s18
      %p15 = scmp.ge.s32.totalorder %s14, 4
      %s24 = sphi 0, %s26
      %s27 = sphi 0, %s24
      %s28 = sphi 0, %s27
      %s44 = sphi 0, %s28
      %s48 = sphi 0, %s48
      %s50 = sphi 0, %s48
      %s51 = sphi 0, %s50
      %s65 = sphi 0, %s51
      %s69 = sphi 0, %s69
      %s71 = sphi 0, %s69
      %s72 = sphi 0, %s71
      %s86 = sphi 0, %s72
      %s90 = sphi 0, %s90
      %s92 = sphi 0, %s90
      %s93 = sphi 0, %s92
      %s107 = sphi 0, %s93
      %s111 = sphi 0, %s111
      %s113 = sphi 0, %s111
      %s114 = sphi 0, %s113
      %s128 = sphi 0, %s114
      %s134 = sphi 0, %s136
      %s137 = sphi 0, %s134
      %s138 = sphi 0, %s137
      %s154 = sphi 0, %s138
    $region4: #{tpu_custom_call.1} parent=1 // loop_header_branch
      %17 = sbr.rel (%p15) target = $region8
    $region5: #{tpu_custom_call.1} parent=1 // loop_body
      %s19 = ssub.s32 %s14, 1
      %s20 = ssub.s32 %s14, 2
      %s21 = sadd.s32 %s14, 1
      %s22 = ssub.s32 %s14, %s21
      %p23 = scmp.eq.s32.totalorder %s22, 0
      %s25 = sadd.s32 %s24, 1
      %s26 = scalar_select %p23, %s24, %s25
      %p29 = pneg %p23
      %p30 = scmp.eq.s32.totalorder %s14, 1
      %p31 = por %p29, %p30
      %p32 = scmp.ne.s32.totalorder %s24, %s27
      %p33 = scmp.eq.s32.totalorder %s14, 0
      %p34 = por %p32, %p33
      %p35 = scmp.ne.s32.totalorder %s24, %s27
      %p36 = scmp.eq.s32.totalorder %s19, 1
      %p37 = por %p35, %p36
      %p38 = scmp.ne.s32.totalorder %s27, %s28
      %p39 = scmp.eq.s32.totalorder %s19, 0
      %p40 = por %p38, %p39
      %p41 = scmp.ne.s32.totalorder %s27, %s28
      %p42 = scmp.eq.s32.totalorder %s20, 1
      %p43 = por %p41, %p42
      %p45 = scmp.ne.s32.totalorder %s28, %s44
      %p46 = scmp.eq.s32.totalorder %s20, 0
      %p47 = por %p45, %p46
      %s49 = sadd.s32 %s48, 1
      %p52 = scmp.eq.s32.totalorder %s14, 1
      %p53 = scmp.ne.s32.totalorder %s48, %s50
      %p54 = scmp.eq.s32.totalorder %s14, 0
      %p55 = por %p53, %p54
      %p56 = scmp.ne.s32.totalorder %s48, %s50
      %p57 = scmp.eq.s32.totalorder %s19, 1
      %p58 = por %p56, %p57
      %p59 = scmp.ne.s32.totalorder %s50, %s51
      %p60 = scmp.eq.s32.totalorder %s19, 0
      %p61 = por %p59, %p60
      %p62 = scmp.ne.s32.totalorder %s50, %s51
      %p63 = scmp.eq.s32.totalorder %s20, 1
      %p64 = por %p62, %p63
      %p66 = scmp.ne.s32.totalorder %s51, %s65
      %p67 = scmp.eq.s32.totalorder %s20, 0
      %p68 = por %p66, %p67
      %s70 = sadd.s32 %s69, 1
      %p73 = scmp.eq.s32.totalorder %s14, 1
      %p74 = scmp.ne.s32.totalorder %s69, %s71
      %p75 = scmp.eq.s32.totalorder %s14, 0
      %p76 = por %p74, %p75
      %p77 = scmp.ne.s32.totalorder %s69, %s71
      %p78 = scmp.eq.s32.totalorder %s19, 1
      %p79 = por %p77, %p78
      %p80 = scmp.ne.s32.totalorder %s71, %s72
      %p81 = scmp.eq.s32.totalorder %s19, 0
      %p82 = por %p80, %p81
      %p83 = scmp.ne.s32.totalorder %s71, %s72
      %p84 = scmp.eq.s32.totalorder %s20, 1
      %p85 = por %p83, %p84
      %p87 = scmp.ne.s32.totalorder %s72, %s86
      %p88 = scmp.eq.s32.totalorder %s20, 0
      %p89 = por %p87, %p88
      %s91 = sadd.s32 %s90, 1
      %p94 = scmp.eq.s32.totalorder %s14, 1
      %p95 = scmp.ne.s32.totalorder %s90, %s92
      %p96 = scmp.eq.s32.totalorder %s14, 0
      %p97 = por %p95, %p96
      %p98 = scmp.ne.s32.totalorder %s90, %s92
      %p99 = scmp.eq.s32.totalorder %s19, 1
      %p100 = por %p98, %p99
      %p101 = scmp.ne.s32.totalorder %s92, %s93
      %p102 = scmp.eq.s32.totalorder %s19, 0
      %p103 = por %p101, %p102
      %p104 = scmp.ne.s32.totalorder %s92, %s93
      %p105 = scmp.eq.s32.totalorder %s20, 1
      %p106 = por %p104, %p105
      %p108 = scmp.ne.s32.totalorder %s93, %s107
      %p109 = scmp.eq.s32.totalorder %s20, 0
      %p110 = por %p108, %p109
      %s112 = sadd.s32 %s111, 1
      %p115 = scmp.eq.s32.totalorder %s14, 1
      %p116 = scmp.ne.s32.totalorder %s111, %s113
      %p117 = scmp.eq.s32.totalorder %s14, 0
      %p118 = por %p116, %p117
      %p119 = scmp.ne.s32.totalorder %s111, %s113
      %p120 = scmp.eq.s32.totalorder %s19, 1
      %p121 = por %p119, %p120
      %p122 = scmp.ne.s32.totalorder %s113, %s114
      %p123 = scmp.eq.s32.totalorder %s19, 0
      %p124 = por %p122, %p123
      %p125 = scmp.ne.s32.totalorder %s113, %s114
      %p126 = scmp.eq.s32.totalorder %s20, 1
      %p127 = por %p125, %p126
      %p129 = scmp.ne.s32.totalorder %s114, %s128
      %p130 = scmp.eq.s32.totalorder %s20, 0
      %p131 = por %p129, %p130
      %s132 = ssub.s32 %s14, %s21
      %p133 = scmp.eq.s32.totalorder %s132, 0
      %s135 = sadd.s32 %s134, 1
      %s136 = scalar_select %p133, %s134, %s135
      %p139 = pneg %p133
      %p140 = scmp.eq.s32.totalorder %s14, 1
      %p141 = por %p139, %p140
      %p142 = scmp.ne.s32.totalorder %s134, %s137
      %p143 = scmp.eq.s32.totalorder %s14, 0
      %p144 = por %p142, %p143
      %p145 = scmp.ne.s32.totalorder %s134, %s137
      %p146 = scmp.eq.s32.totalorder %s19, 1
      %p147 = por %p145, %p146
      %p148 = scmp.ne.s32.totalorder %s137, %s138
      %p149 = scmp.eq.s32.totalorder %s19, 0
      %p150 = por %p148, %p149
      %p151 = scmp.ne.s32.totalorder %s137, %s138
      %p152 = scmp.eq.s32.totalorder %s20, 1
      %p153 = por %p151, %p152
      %p155 = scmp.ne.s32.totalorder %s138, %s154
      %p156 = scmp.eq.s32.totalorder %s20, 0
      %p157 = por %p155, %p156
      %p158 = scmp.le.s32.totalorder 1, %s14
      %p159 = scmp.lt.s32.totalorder %s14, 3
      %p160 = pnand %p158, %p159
      %p161 = pneg %p160
      // Predicated region
      $region9: #{tpu_custom_call.1} parent=5 // pred_check
        _
      $region10: #{tpu_custom_call.1} parent=5 // pred_check_branch
        %163 = sbr.rel (%p160) target = $region12
      $region11: #{tpu_custom_call.1} parent=5 // pred_region
        %s164 = ssub.s32 %s14, 1
        // Predicated region
        $region13: #{tpu_custom_call.1} parent=11 // pred_check
          %p165 = pneg %p61
        $region14: #{tpu_custom_call.1} parent=11 // pred_check_branch
          %167 = sbr.rel (%p165) target = $region16
        $region15: #{tpu_custom_call.1} parent=11 // pred_region
          _
        $region16: #{tpu_custom_call.1} parent=11 // pred_fallthru
          _
        // Predicated region
        $region17: #{tpu_custom_call.1} parent=11 // pred_check
          %p168 = pneg %p82
        $region18: #{tpu_custom_call.1} parent=11 // pred_check_branch
          %170 = sbr.rel (%p168) target = $region20
        $region19: #{tpu_custom_call.1} parent=11 // pred_region
          _
        $region20: #{tpu_custom_call.1} parent=11 // pred_fallthru
          _
        // Predicated region
        $region21: #{tpu_custom_call.1} parent=11 // pred_check
          %p171 = pneg %p103
        $region22: #{tpu_custom_call.1} parent=11 // pred_check_branch
          %173 = sbr.rel (%p171) target = $region24
        $region23: #{tpu_custom_call.1} parent=11 // pred_region
          _
        $region24: #{tpu_custom_call.1} parent=11 // pred_fallthru
          _
        // Predicated region
        $region25: #{tpu_custom_call.1} parent=11 // pred_check
          %p174 = pneg %p124
        $region26: #{tpu_custom_call.1} parent=11 // pred_check_branch
          %176 = sbr.rel (%p174) target = $region28
        $region27: #{tpu_custom_call.1} parent=11 // pred_region
          _
        $region28: #{tpu_custom_call.1} parent=11 // pred_fallthru
          _
      $region12: #{tpu_custom_call.1} parent=5 // pred_fallthru
        _
      %p177 = scmp.lt.s32.totalorder %s14, 2
      // Predicated region
      $region29: #{tpu_custom_call.1} parent=5 // pred_check
        %p178 = pneg %p177
      $region30: #{tpu_custom_call.1} parent=5 // pred_check_branch
        %180 = sbr.rel (%p178) target = $region32
      $region31: #{tpu_custom_call.1} parent=5 // pred_region
        // Predicated region
        $region33: #{tpu_custom_call.1} parent=31 // pred_check
          %p181 = pneg %p34
        $region34: #{tpu_custom_call.1} parent=31 // pred_check_branch
          %183 = sbr.rel (%p181) target = $region36
        $region35: #{tpu_custom_call.1} parent=31 // pred_region
          %s184 = smul.u32 8, %s14
          %p185 = scmp.lt.s32.totalorder %s184, 15
          %s186 = scalar_select %p185, %s184, 15
          %s187 = smul.addr %s186, 32
          %s188 = smul.addr %s187, 8
          %s189 = scalar_lea.vmem %s0, %s188
          %s190 = smul.u32 8, %s14
        $region36: #{tpu_custom_call.1} parent=31 // pred_fallthru
          _
      $region32: #{tpu_custom_call.1} parent=5 // pred_fallthru
        _
      %p191 = scmp.le.s32.totalorder 1, %s14
      %p192 = scmp.lt.s32.totalorder %s14, 3
      %p193 = pnand %p191, %p192
      %p194 = pneg %p193
      // Predicated region
      $region37: #{tpu_custom_call.1} parent=5 // pred_check
        _
      $region38: #{tpu_custom_call.1} parent=5 // pred_check_branch
        %196 = sbr.rel (%p193) target = $region40
      $region39: #{tpu_custom_call.1} parent=5 // pred_region
        %s197 = ssub.s32 %s14, 1
        %s198 = smul.u32 8, %s19
        %p199 = scmp.lt.s32.totalorder %s198, 15
        %s200 = scalar_select %p199, %s198, 15
        %s201 = smul.addr %s200, 32
        %s202 = smul.addr %s201, 8
        %s203 = scalar_lea.vmem %s0, %s202
        %p204 = pneg %p40
        %p205 = pneg %p37
        %p206 = pneg %p61
        %p207 = pneg %p58
        %p208 = pneg %p82
        %p209 = pneg %p79
        %p210 = pneg %p103
        %p211 = pneg %p100
        %p212 = pneg %p124
        %p213 = pneg %p121
        %p214 = pneg %p150
        %p215 = pneg %p147
        %s216 = sand.u32 %s137, 1
        %s217 = scalar_lea.sflag [#allocation3], %s216
        %s218 = sand.u32 %s137, 1
        %s219 = smul.addr %s218, 8
        %s220 = scalar_lea.vmem [#allocation2], %s219
        %s221 = smul.u32 8, %s19
        %p222 = scmp.lt.s32.totalorder %s221, 15
        %s223 = scalar_select %p222, %s221, 15
        %s224 = smul.addr %s223, 32
        %s225 = smul.addr %s224, 8
        %s226 = scalar_lea.vmem %s0, %s225
        %s227 = smul.u32 8, %s19
        %v229 = vld [vmem:[%s226] sm:$0xff]
        %v230 = vld [vmem:[%s226 + $0x8] sm:$0xff]
        %v231 = vld [vmem:[%s226 + $0x10] sm:$0xff]
        %v232 = vld [vmem:[%s226 + $0x18] sm:$0xff]
        %v233 = vld [vmem:[%s226 + $0x20] sm:$0xff]
        %v234 = vld [vmem:[%s226 + $0x28] sm:$0xff]
        %v235 = vld [vmem:[%s226 + $0x30] sm:$0xff]
        %v236 = vld [vmem:[%s226 + $0x38] sm:$0xff]
        %v237 = vld [vmem:[%s226 + $0x40] sm:$0xff]
        %v238 = vld [vmem:[%s226 + $0x48] sm:$0xff]
        %v239 = vld [vmem:[%s226 + $0x50] sm:$0xff]
        %v240 = vld [vmem:[%s226 + $0x58] sm:$0xff]
        %v241 = vld [vmem:[%s226 + $0x60] sm:$0xff]
        %v242 = vld [vmem:[%s226 + $0x68] sm:$0xff]
        %v243 = vld [vmem:[%s226 + $0x70] sm:$0xff]
        %v244 = vld [vmem:[%s226 + $0x78] sm:$0xff]
        %v245 = vld [vmem:[%s226 + $0x80] sm:$0xff]
        %v246 = vld [vmem:[%s226 + $0x88] sm:$0xff]
        %v247 = vld [vmem:[%s226 + $0x90] sm:$0xff]
        %v248 = vld [vmem:[%s226 + $0x98] sm:$0xff]
        %v249 = vld [vmem:[%s226 + $0xa0] sm:$0xff]
        %v250 = vld [vmem:[%s226 + $0xa8] sm:$0xff]
        %v251 = vld [vmem:[%s226 + $0xb0] sm:$0xff]
        %v252 = vld [vmem:[%s226 + $0xb8] sm:$0xff]
        %v253 = vld [vmem:[%s226 + $0xc0] sm:$0xff]
        %v254 = vld [vmem:[%s226 + $0xc8] sm:$0xff]
        %v255 = vld [vmem:[%s226 + $0xd0] sm:$0xff]
        %v256 = vld [vmem:[%s226 + $0xd8] sm:$0xff]
        %v257 = vld [vmem:[%s226 + $0xe0] sm:$0xff]
        %v258 = vld [vmem:[%s226 + $0xe8] sm:$0xff]
        %v259 = vld [vmem:[%s226 + $0xf0] sm:$0xff]
        %v260 = vld [vmem:[%s226 + $0xf8] sm:$0xff]
        %v261 = vld [vmem:[%s226 + $0x100] sm:$0xff]
        %v262 = vld [vmem:[%s226 + $0x108] sm:$0xff]
        %v263 = vld [vmem:[%s226 + $0x110] sm:$0xff]
        %v264 = vld [vmem:[%s226 + $0x118] sm:$0xff]
        %v265 = vld [vmem:[%s226 + $0x120] sm:$0xff]
        %v266 = vld [vmem:[%s226 + $0x128] sm:$0xff]
        %v267 = vld [vmem:[%s226 + $0x130] sm:$0xff]
        %v268 = vld [vmem:[%s226 + $0x138] sm:$0xff]
        %v269 = vld [vmem:[%s226 + $0x140] sm:$0xff]
        %v270 = vld [vmem:[%s226 + $0x148] sm:$0xff]
        %v271 = vld [vmem:[%s226 + $0x150] sm:$0xff]
        %v272 = vld [vmem:[%s226 + $0x158] sm:$0xff]
        %v273 = vld [vmem:[%s226 + $0x160] sm:$0xff]
        %v274 = vld [vmem:[%s226 + $0x168] sm:$0xff]
        %v275 = vld [vmem:[%s226 + $0x170] sm:$0xff]
        %v276 = vld [vmem:[%s226 + $0x178] sm:$0xff]
        %v277 = vld [vmem:[%s226 + $0x180] sm:$0xff]
        %v278 = vld [vmem:[%s226 + $0x188] sm:$0xff]
        %v279 = vld [vmem:[%s226 + $0x190] sm:$0xff]
        %v280 = vld [vmem:[%s226 + $0x198] sm:$0xff]
        %v281 = vld [vmem:[%s226 + $0x1a0] sm:$0xff]
        %v282 = vld [vmem:[%s226 + $0x1a8] sm:$0xff]
        %v283 = vld [vmem:[%s226 + $0x1b0] sm:$0xff]
        %v284 = vld [vmem:[%s226 + $0x1b8] sm:$0xff]
        %v285 = vld [vmem:[%s226 + $0x1c0] sm:$0xff]
        %v286 = vld [vmem:[%s226 + $0x1c8] sm:$0xff]
        %v287 = vld [vmem:[%s226 + $0x1d0] sm:$0xff]
        %v288 = vld [vmem:[%s226 + $0x1d8] sm:$0xff]
        %v289 = vld [vmem:[%s226 + $0x1e0] sm:$0xff]
        %v290 = vld [vmem:[%s226 + $0x1e8] sm:$0xff]
        %v291 = vld [vmem:[%s226 + $0x1f0] sm:$0xff]
        %v292 = vld [vmem:[%s226 + $0x1f8] sm:$0xff]
        %v293 = vld [vmem:[%s226 + $0x200] sm:$0xff]
        %v294 = vld [vmem:[%s226 + $0x208] sm:$0xff]
        %v295 = vld [vmem:[%s226 + $0x210] sm:$0xff]
        %v296 = vld [vmem:[%s226 + $0x218] sm:$0xff]
        %v297 = vld [vmem:[%s226 + $0x220] sm:$0xff]
        %v298 = vld [vmem:[%s226 + $0x228] sm:$0xff]
        %v299 = vld [vmem:[%s226 + $0x230] sm:$0xff]
        %v300 = vld [vmem:[%s226 + $0x238] sm:$0xff]
        %v301 = vld [vmem:[%s226 + $0x240] sm:$0xff]
        %v302 = vld [vmem:[%s226 + $0x248] sm:$0xff]
        %v303 = vld [vmem:[%s226 + $0x250] sm:$0xff]
        %v304 = vld [vmem:[%s226 + $0x258] sm:$0xff]
        %v305 = vld [vmem:[%s226 + $0x260] sm:$0xff]
        %v306 = vld [vmem:[%s226 + $0x268] sm:$0xff]
        %v307 = vld [vmem:[%s226 + $0x270] sm:$0xff]
        %v308 = vld [vmem:[%s226 + $0x278] sm:$0xff]
        %v309 = vld [vmem:[%s226 + $0x280] sm:$0xff]
        %v310 = vld [vmem:[%s226 + $0x288] sm:$0xff]
        %v311 = vld [vmem:[%s226 + $0x290] sm:$0xff]
        %v312 = vld [vmem:[%s226 + $0x298] sm:$0xff]
        %v313 = vld [vmem:[%s226 + $0x2a0] sm:$0xff]
        %v314 = vld [vmem:[%s226 + $0x2a8] sm:$0xff]
        %v315 = vld [vmem:[%s226 + $0x2b0] sm:$0xff]
        %v316 = vld [vmem:[%s226 + $0x2b8] sm:$0xff]
        %v317 = vld [vmem:[%s226 + $0x2c0] sm:$0xff]
        %v318 = vld [vmem:[%s226 + $0x2c8] sm:$0xff]
        %v319 = vld [vmem:[%s226 + $0x2d0] sm:$0xff]
        %v320 = vld [vmem:[%s226 + $0x2d8] sm:$0xff]
        %v321 = vld [vmem:[%s226 + $0x2e0] sm:$0xff]
        %v322 = vld [vmem:[%s226 + $0x2e8] sm:$0xff]
        %v323 = vld [vmem:[%s226 + $0x2f0] sm:$0xff]
        %v324 = vld [vmem:[%s226 + $0x2f8] sm:$0xff]
        %v325 = vld [vmem:[%s226 + $0x300] sm:$0xff]
        %v326 = vld [vmem:[%s226 + $0x308] sm:$0xff]
        %v327 = vld [vmem:[%s226 + $0x310] sm:$0xff]
        %v328 = vld [vmem:[%s226 + $0x318] sm:$0xff]
        %v329 = vld [vmem:[%s226 + $0x320] sm:$0xff]
        %v330 = vld [vmem:[%s226 + $0x328] sm:$0xff]
        %v331 = vld [vmem:[%s226 + $0x330] sm:$0xff]
        %v332 = vld [vmem:[%s226 + $0x338] sm:$0xff]
        %v333 = vld [vmem:[%s226 + $0x340] sm:$0xff]
        %v334 = vld [vmem:[%s226 + $0x348] sm:$0xff]
        %v335 = vld [vmem:[%s226 + $0x350] sm:$0xff]
        %v336 = vld [vmem:[%s226 + $0x358] sm:$0xff]
        %v337 = vld [vmem:[%s226 + $0x360] sm:$0xff]
        %v338 = vld [vmem:[%s226 + $0x368] sm:$0xff]
        %v339 = vld [vmem:[%s226 + $0x370] sm:$0xff]
        %v340 = vld [vmem:[%s226 + $0x378] sm:$0xff]
        %v341 = vld [vmem:[%s226 + $0x380] sm:$0xff]
        %v342 = vld [vmem:[%s226 + $0x388] sm:$0xff]
        %v343 = vld [vmem:[%s226 + $0x390] sm:$0xff]
        %v344 = vld [vmem:[%s226 + $0x398] sm:$0xff]
        %v345 = vld [vmem:[%s226 + $0x3a0] sm:$0xff]
        %v346 = vld [vmem:[%s226 + $0x3a8] sm:$0xff]
        %v347 = vld [vmem:[%s226 + $0x3b0] sm:$0xff]
        %v348 = vld [vmem:[%s226 + $0x3b8] sm:$0xff]
        %v349 = vld [vmem:[%s226 + $0x3c0] sm:$0xff]
        %v350 = vld [vmem:[%s226 + $0x3c8] sm:$0xff]
        %v351 = vld [vmem:[%s226 + $0x3d0] sm:$0xff]
        %v352 = vld [vmem:[%s226 + $0x3d8] sm:$0xff]
        %v353 = vld [vmem:[%s226 + $0x3e0] sm:$0xff]
        %v354 = vld [vmem:[%s226 + $0x3e8] sm:$0xff]
        %v355 = vld [vmem:[%s226 + $0x3f0] sm:$0xff]
        %v356 = vld [vmem:[%s226 + $0x3f8] sm:$0xff]
        %v357 = vld [vmem:[%s226 + $0x400] sm:$0xff]
        %v358 = vld [vmem:[%s226 + $0x408] sm:$0xff]
        %v359 = vld [vmem:[%s226 + $0x410] sm:$0xff]
        %v360 = vld [vmem:[%s226 + $0x418] sm:$0xff]
        %v361 = vld [vmem:[%s226 + $0x420] sm:$0xff]
        %v362 = vld [vmem:[%s226 + $0x428] sm:$0xff]
        %v363 = vld [vmem:[%s226 + $0x430] sm:$0xff]
        %v364 = vld [vmem:[%s226 + $0x438] sm:$0xff]
        %v365 = vld [vmem:[%s226 + $0x440] sm:$0xff]
        %v366 = vld [vmem:[%s226 + $0x448] sm:$0xff]
        %v367 = vld [vmem:[%s226 + $0x450] sm:$0xff]
        %v368 = vld [vmem:[%s226 + $0x458] sm:$0xff]
        %v369 = vld [vmem:[%s226 + $0x460] sm:$0xff]
        %v370 = vld [vmem:[%s226 + $0x468] sm:$0xff]
        %v371 = vld [vmem:[%s226 + $0x470] sm:$0xff]
        %v372 = vld [vmem:[%s226 + $0x478] sm:$0xff]
        %v373 = vld [vmem:[%s226 + $0x480] sm:$0xff]
        %v374 = vld [vmem:[%s226 + $0x488] sm:$0xff]
        %v375 = vld [vmem:[%s226 + $0x490] sm:$0xff]
        %v376 = vld [vmem:[%s226 + $0x498] sm:$0xff]
        %v377 = vld [vmem:[%s226 + $0x4a0] sm:$0xff]
        %v378 = vld [vmem:[%s226 + $0x4a8] sm:$0xff]
        %v379 = vld [vmem:[%s226 + $0x4b0] sm:$0xff]
        %v380 = vld [vmem:[%s226 + $0x4b8] sm:$0xff]
        %v381 = vld [vmem:[%s226 + $0x4c0] sm:$0xff]
        %v382 = vld [vmem:[%s226 + $0x4c8] sm:$0xff]
        %v383 = vld [vmem:[%s226 + $0x4d0] sm:$0xff]
        %v384 = vld [vmem:[%s226 + $0x4d8] sm:$0xff]
        %v385 = vld [vmem:[%s226 + $0x4e0] sm:$0xff]
        %v386 = vld [vmem:[%s226 + $0x4e8] sm:$0xff]
        %v387 = vld [vmem:[%s226 + $0x4f0] sm:$0xff]
        %v388 = vld [vmem:[%s226 + $0x4f8] sm:$0xff]
        %v389 = vld [vmem:[%s226 + $0x500] sm:$0xff]
        %v390 = vld [vmem:[%s226 + $0x508] sm:$0xff]
        %v391 = vld [vmem:[%s226 + $0x510] sm:$0xff]
        %v392 = vld [vmem:[%s226 + $0x518] sm:$0xff]
        %v393 = vld [vmem:[%s226 + $0x520] sm:$0xff]
        %v394 = vld [vmem:[%s226 + $0x528] sm:$0xff]
        %v395 = vld [vmem:[%s226 + $0x530] sm:$0xff]
        %v396 = vld [vmem:[%s226 + $0x538] sm:$0xff]
        %v397 = vld [vmem:[%s226 + $0x540] sm:$0xff]
        %v398 = vld [vmem:[%s226 + $0x548] sm:$0xff]
        %v399 = vld [vmem:[%s226 + $0x550] sm:$0xff]
        %v400 = vld [vmem:[%s226 + $0x558] sm:$0xff]
        %v401 = vld [vmem:[%s226 + $0x560] sm:$0xff]
        %v402 = vld [vmem:[%s226 + $0x568] sm:$0xff]
        %v403 = vld [vmem:[%s226 + $0x570] sm:$0xff]
        %v404 = vld [vmem:[%s226 + $0x578] sm:$0xff]
        %v405 = vld [vmem:[%s226 + $0x580] sm:$0xff]
        %v406 = vld [vmem:[%s226 + $0x588] sm:$0xff]
        %v407 = vld [vmem:[%s226 + $0x590] sm:$0xff]
        %v408 = vld [vmem:[%s226 + $0x598] sm:$0xff]
        %v409 = vld [vmem:[%s226 + $0x5a0] sm:$0xff]
        %v410 = vld [vmem:[%s226 + $0x5a8] sm:$0xff]
        %v411 = vld [vmem:[%s226 + $0x5b0] sm:$0xff]
        %v412 = vld [vmem:[%s226 + $0x5b8] sm:$0xff]
        %v413 = vld [vmem:[%s226 + $0x5c0] sm:$0xff]
        %v414 = vld [vmem:[%s226 + $0x5c8] sm:$0xff]
        %v415 = vld [vmem:[%s226 + $0x5d0] sm:$0xff]
        %v416 = vld [vmem:[%s226 + $0x5d8] sm:$0xff]
        %v417 = vld [vmem:[%s226 + $0x5e0] sm:$0xff]
        %v418 = vld [vmem:[%s226 + $0x5e8] sm:$0xff]
        %v419 = vld [vmem:[%s226 + $0x5f0] sm:$0xff]
        %v420 = vld [vmem:[%s226 + $0x5f8] sm:$0xff]
        %v421 = vld [vmem:[%s226 + $0x600] sm:$0xff]
        %v422 = vld [vmem:[%s226 + $0x608] sm:$0xff]
        %v423 = vld [vmem:[%s226 + $0x610] sm:$0xff]
        %v424 = vld [vmem:[%s226 + $0x618] sm:$0xff]
        %v425 = vld [vmem:[%s226 + $0x620] sm:$0xff]
        %v426 = vld [vmem:[%s226 + $0x628] sm:$0xff]
        %v427 = vld [vmem:[%s226 + $0x630] sm:$0xff]
        %v428 = vld [vmem:[%s226 + $0x638] sm:$0xff]
        %v429 = vld [vmem:[%s226 + $0x640] sm:$0xff]
        %v430 = vld [vmem:[%s226 + $0x648] sm:$0xff]
        %v431 = vld [vmem:[%s226 + $0x650] sm:$0xff]
        %v432 = vld [vmem:[%s226 + $0x658] sm:$0xff]
        %v433 = vld [vmem:[%s226 + $0x660] sm:$0xff]
        %v434 = vld [vmem:[%s226 + $0x668] sm:$0xff]
        %v435 = vld [vmem:[%s226 + $0x670] sm:$0xff]
        %v436 = vld [vmem:[%s226 + $0x678] sm:$0xff]
        %v437 = vld [vmem:[%s226 + $0x680] sm:$0xff]
        %v438 = vld [vmem:[%s226 + $0x688] sm:$0xff]
        %v439 = vld [vmem:[%s226 + $0x690] sm:$0xff]
        %v440 = vld [vmem:[%s226 + $0x698] sm:$0xff]
        %v441 = vld [vmem:[%s226 + $0x6a0] sm:$0xff]
        %v442 = vld [vmem:[%s226 + $0x6a8] sm:$0xff]
        %v443 = vld [vmem:[%s226 + $0x6b0] sm:$0xff]
        %v444 = vld [vmem:[%s226 + $0x6b8] sm:$0xff]
        %v445 = vld [vmem:[%s226 + $0x6c0] sm:$0xff]
        %v446 = vld [vmem:[%s226 + $0x6c8] sm:$0xff]
        %v447 = vld [vmem:[%s226 + $0x6d0] sm:$0xff]
        %v448 = vld [vmem:[%s226 + $0x6d8] sm:$0xff]
        %v449 = vld [vmem:[%s226 + $0x6e0] sm:$0xff]
        %v450 = vld [vmem:[%s226 + $0x6e8] sm:$0xff]
        %v451 = vld [vmem:[%s226 + $0x6f0] sm:$0xff]
        %v452 = vld [vmem:[%s226 + $0x6f8] sm:$0xff]
        %v453 = vld [vmem:[%s226 + $0x700] sm:$0xff]
        %v454 = vld [vmem:[%s226 + $0x708] sm:$0xff]
        %v455 = vld [vmem:[%s226 + $0x710] sm:$0xff]
        %v456 = vld [vmem:[%s226 + $0x718] sm:$0xff]
        %v457 = vld [vmem:[%s226 + $0x720] sm:$0xff]
        %v458 = vld [vmem:[%s226 + $0x728] sm:$0xff]
        %v459 = vld [vmem:[%s226 + $0x730] sm:$0xff]
        %v460 = vld [vmem:[%s226 + $0x738] sm:$0xff]
        %v461 = vld [vmem:[%s226 + $0x740] sm:$0xff]
        %v462 = vld [vmem:[%s226 + $0x748] sm:$0xff]
        %v463 = vld [vmem:[%s226 + $0x750] sm:$0xff]
        %v464 = vld [vmem:[%s226 + $0x758] sm:$0xff]
        %v465 = vld [vmem:[%s226 + $0x760] sm:$0xff]
        %v466 = vld [vmem:[%s226 + $0x768] sm:$0xff]
        %v467 = vld [vmem:[%s226 + $0x770] sm:$0xff]
        %v468 = vld [vmem:[%s226 + $0x778] sm:$0xff]
        %v469 = vld [vmem:[%s226 + $0x780] sm:$0xff]
        %v470 = vld [vmem:[%s226 + $0x788] sm:$0xff]
        %v471 = vld [vmem:[%s226 + $0x790] sm:$0xff]
        %v472 = vld [vmem:[%s226 + $0x798] sm:$0xff]
        %v473 = vld [vmem:[%s226 + $0x7a0] sm:$0xff]
        %v474 = vld [vmem:[%s226 + $0x7a8] sm:$0xff]
        %v475 = vld [vmem:[%s226 + $0x7b0] sm:$0xff]
        %v476 = vld [vmem:[%s226 + $0x7b8] sm:$0xff]
        %v477 = vld [vmem:[%s226 + $0x7c0] sm:$0xff]
        %v478 = vld [vmem:[%s226 + $0x7c8] sm:$0xff]
        %v479 = vld [vmem:[%s226 + $0x7d0] sm:$0xff]
        %v480 = vld [vmem:[%s226 + $0x7d8] sm:$0xff]
        %v481 = vld [vmem:[%s226 + $0x7e0] sm:$0xff]
        %v482 = vld [vmem:[%s226 + $0x7e8] sm:$0xff]
        %v483 = vld [vmem:[%s226 + $0x7f0] sm:$0xff]
        %v484 = vld [vmem:[%s226 + $0x7f8] sm:$0xff]
        %vm485 = vcmask 523264
        %v486 = vsel %vm485, %v229, 0.0
        %487 = vadd.xlane.f32.xlu0 %v486
        %v488 = vpop.xlane.xlu0 %487
        %v489 = vsel %vm485, %v230, 0.0
        %490 = vadd.xlane.f32.xlu0 %v489
        %v491 = vpop.xlane.xlu0 %490
        %v492 = vsel %vm485, %v231, 0.0
        %493 = vadd.xlane.f32.xlu0 %v492
        %v494 = vpop.xlane.xlu0 %493
        %v495 = vsel %vm485, %v232, 0.0
        %496 = vadd.xlane.f32.xlu0 %v495
        %v497 = vpop.xlane.xlu0 %496
        %v498 = vsel %vm485, %v233, 0.0
        %499 = vadd.xlane.f32.xlu0 %v498
        %v500 = vpop.xlane.xlu0 %499
        %v501 = vsel %vm485, %v234, 0.0
        %502 = vadd.xlane.f32.xlu0 %v501
        %v503 = vpop.xlane.xlu0 %502
        %v504 = vsel %vm485, %v235, 0.0
        %505 = vadd.xlane.f32.xlu0 %v504
        %v506 = vpop.xlane.xlu0 %505
        %v507 = vsel %vm485, %v236, 0.0
        %508 = vadd.xlane.f32.xlu0 %v507
        %v509 = vpop.xlane.xlu0 %508
        %v510 = vsel %vm485, %v237, 0.0
        %511 = vadd.xlane.f32.xlu0 %v510
        %v512 = vpop.xlane.xlu0 %511
        %v513 = vsel %vm485, %v238, 0.0
        %514 = vadd.xlane.f32.xlu0 %v513
        %v515 = vpop.xlane.xlu0 %514
        %v516 = vsel %vm485, %v239, 0.0
        %517 = vadd.xlane.f32.xlu0 %v516
        %v518 = vpop.xlane.xlu0 %517
        %v519 = vsel %vm485, %v240, 0.0
        %520 = vadd.xlane.f32.xlu0 %v519
        %v521 = vpop.xlane.xlu0 %520
        %v522 = vsel %vm485, %v241, 0.0
        %523 = vadd.xlane.f32.xlu0 %v522
        %v524 = vpop.xlane.xlu0 %523
        %v525 = vsel %vm485, %v242, 0.0
        %526 = vadd.xlane.f32.xlu0 %v525
        %v527 = vpop.xlane.xlu0 %526
        %v528 = vsel %vm485, %v243, 0.0
        %529 = vadd.xlane.f32.xlu0 %v528
        %v530 = vpop.xlane.xlu0 %529
        %v531 = vsel %vm485, %v244, 0.0
        %532 = vadd.xlane.f32.xlu0 %v531
        %v533 = vpop.xlane.xlu0 %532
        %v534 = vsel %vm485, %v245, 0.0
        %535 = vadd.xlane.f32.xlu0 %v534
        %v536 = vpop.xlane.xlu0 %535
        %v537 = vsel %vm485, %v246, 0.0
        %538 = vadd.xlane.f32.xlu0 %v537
        %v539 = vpop.xlane.xlu0 %538
        %v540 = vsel %vm485, %v247, 0.0
        %541 = vadd.xlane.f32.xlu0 %v540
        %v542 = vpop.xlane.xlu0 %541
        %v543 = vsel %vm485, %v248, 0.0
        %544 = vadd.xlane.f32.xlu0 %v543
        %v545 = vpop.xlane.xlu0 %544
        %v546 = vsel %vm485, %v249, 0.0
        %547 = vadd.xlane.f32.xlu0 %v546
        %v548 = vpop.xlane.xlu0 %547
        %v549 = vsel %vm485, %v250, 0.0
        %550 = vadd.xlane.f32.xlu0 %v549
        %v551 = vpop.xlane.xlu0 %550
        %v552 = vsel %vm485, %v251, 0.0
        %553 = vadd.xlane.f32.xlu0 %v552
        %v554 = vpop.xlane.xlu0 %553
        %v555 = vsel %vm485, %v252, 0.0
        %556 = vadd.xlane.f32.xlu0 %v555
        %v557 = vpop.xlane.xlu0 %556
        %v558 = vsel %vm485, %v253, 0.0
        %559 = vadd.xlane.f32.xlu0 %v558
        %v560 = vpop.xlane.xlu0 %559
        %v561 = vsel %vm485, %v254, 0.0
        %562 = vadd.xlane.f32.xlu0 %v561
        %v563 = vpop.xlane.xlu0 %562
        %v564 = vsel %vm485, %v255, 0.0
        %565 = vadd.xlane.f32.xlu0 %v564
        %v566 = vpop.xlane.xlu0 %565
        %v567 = vsel %vm485, %v256, 0.0
        %568 = vadd.xlane.f32.xlu0 %v567
        %v569 = vpop.xlane.xlu0 %568
        %v570 = vsel %vm485, %v257, 0.0
        %571 = vadd.xlane.f32.xlu0 %v570
        %v572 = vpop.xlane.xlu0 %571
        %v573 = vsel %vm485, %v258, 0.0
        %574 = vadd.xlane.f32.xlu0 %v573
        %v575 = vpop.xlane.xlu0 %574
        %v576 = vsel %vm485, %v259, 0.0
        %577 = vadd.xlane.f32.xlu0 %v576
        %v578 = vpop.xlane.xlu0 %577
        %v579 = vsel %vm485, %v260, 0.0
        %580 = vadd.xlane.f32.xlu0 %v579
        %v581 = vpop.xlane.xlu0 %580
        %v582 = vsel %vm485, %v261, 0.0
        %583 = vadd.xlane.f32.xlu0 %v582
        %v584 = vpop.xlane.xlu0 %583
        %v585 = vsel %vm485, %v262, 0.0
        %586 = vadd.xlane.f32.xlu0 %v585
        %v587 = vpop.xlane.xlu0 %586
        %v588 = vsel %vm485, %v263, 0.0
        %589 = vadd.xlane.f32.xlu0 %v588
        %v590 = vpop.xlane.xlu0 %589
        %v591 = vsel %vm485, %v264, 0.0
        %592 = vadd.xlane.f32.xlu0 %v591
        %v593 = vpop.xlane.xlu0 %592
        %v594 = vsel %vm485, %v265, 0.0
        %595 = vadd.xlane.f32.xlu0 %v594
        %v596 = vpop.xlane.xlu0 %595
        %v597 = vsel %vm485, %v266, 0.0
        %598 = vadd.xlane.f32.xlu0 %v597
        %v599 = vpop.xlane.xlu0 %598
        %v600 = vsel %vm485, %v267, 0.0
        %601 = vadd.xlane.f32.xlu0 %v600
        %v602 = vpop.xlane.xlu0 %601
        %v603 = vsel %vm485, %v268, 0.0
        %604 = vadd.xlane.f32.xlu0 %v603
        %v605 = vpop.xlane.xlu0 %604
        %v606 = vsel %vm485, %v269, 0.0
        %607 = vadd.xlane.f32.xlu0 %v606
        %v608 = vpop.xlane.xlu0 %607
        %v609 = vsel %vm485, %v270, 0.0
        %610 = vadd.xlane.f32.xlu0 %v609
        %v611 = vpop.xlane.xlu0 %610
        %v612 = vsel %vm485, %v271, 0.0
        %613 = vadd.xlane.f32.xlu0 %v612
        %v614 = vpop.xlane.xlu0 %613
        %v615 = vsel %vm485, %v272, 0.0
        %616 = vadd.xlane.f32.xlu0 %v615
        %v617 = vpop.xlane.xlu0 %616
        %v618 = vsel %vm485, %v273, 0.0
        %619 = vadd.xlane.f32.xlu0 %v618
        %v620 = vpop.xlane.xlu0 %619
        %v621 = vsel %vm485, %v274, 0.0
        %622 = vadd.xlane.f32.xlu0 %v621
        %v623 = vpop.xlane.xlu0 %622
        %v624 = vsel %vm485, %v275, 0.0
        %625 = vadd.xlane.f32.xlu0 %v624
        %v626 = vpop.xlane.xlu0 %625
        %v627 = vsel %vm485, %v276, 0.0
        %628 = vadd.xlane.f32.xlu0 %v627
        %v629 = vpop.xlane.xlu0 %628
        %v630 = vsel %vm485, %v277, 0.0
        %631 = vadd.xlane.f32.xlu0 %v630
        %v632 = vpop.xlane.xlu0 %631
        %v633 = vsel %vm485, %v278, 0.0
        %634 = vadd.xlane.f32.xlu0 %v633
        %v635 = vpop.xlane.xlu0 %634
        %v636 = vsel %vm485, %v279, 0.0
        %637 = vadd.xlane.f32.xlu0 %v636
        %v638 = vpop.xlane.xlu0 %637
        %v639 = vsel %vm485, %v280, 0.0
        %640 = vadd.xlane.f32.xlu0 %v639
        %v641 = vpop.xlane.xlu0 %640
        %v642 = vsel %vm485, %v281, 0.0
        %643 = vadd.xlane.f32.xlu0 %v642
        %v644 = vpop.xlane.xlu0 %643
        %v645 = vsel %vm485, %v282, 0.0
        %646 = vadd.xlane.f32.xlu0 %v645
        %v647 = vpop.xlane.xlu0 %646
        %v648 = vsel %vm485, %v283, 0.0
        %649 = vadd.xlane.f32.xlu0 %v648
        %v650 = vpop.xlane.xlu0 %649
        %v651 = vsel %vm485, %v284, 0.0
        %652 = vadd.xlane.f32.xlu0 %v651
        %v653 = vpop.xlane.xlu0 %652
        %v654 = vsel %vm485, %v285, 0.0
        %655 = vadd.xlane.f32.xlu0 %v654
        %v656 = vpop.xlane.xlu0 %655
        %v657 = vsel %vm485, %v286, 0.0
        %658 = vadd.xlane.f32.xlu0 %v657
        %v659 = vpop.xlane.xlu0 %658
        %v660 = vsel %vm485, %v287, 0.0
        %661 = vadd.xlane.f32.xlu0 %v660
        %v662 = vpop.xlane.xlu0 %661
        %v663 = vsel %vm485, %v288, 0.0
        %664 = vadd.xlane.f32.xlu0 %v663
        %v665 = vpop.xlane.xlu0 %664
        %v666 = vsel %vm485, %v289, 0.0
        %667 = vadd.xlane.f32.xlu0 %v666
        %v668 = vpop.xlane.xlu0 %667
        %v669 = vsel %vm485, %v290, 0.0
        %670 = vadd.xlane.f32.xlu0 %v669
        %v671 = vpop.xlane.xlu0 %670
        %v672 = vsel %vm485, %v291, 0.0
        %673 = vadd.xlane.f32.xlu0 %v672
        %v674 = vpop.xlane.xlu0 %673
        %v675 = vsel %vm485, %v292, 0.0
        %676 = vadd.xlane.f32.xlu0 %v675
        %v677 = vpop.xlane.xlu0 %676
        %v678 = vsel %vm485, %v293, 0.0
        %679 = vadd.xlane.f32.xlu0 %v678
        %v680 = vpop.xlane.xlu0 %679
        %v681 = vsel %vm485, %v294, 0.0
        %682 = vadd.xlane.f32.xlu0 %v681
        %v683 = vpop.xlane.xlu0 %682
        %v684 = vsel %vm485, %v295, 0.0
        %685 = vadd.xlane.f32.xlu0 %v684
        %v686 = vpop.xlane.xlu0 %685
        %v687 = vsel %vm485, %v296, 0.0
        %688 = vadd.xlane.f32.xlu0 %v687
        %v689 = vpop.xlane.xlu0 %688
        %v690 = vsel %vm485, %v297, 0.0
        %691 = vadd.xlane.f32.xlu0 %v690
        %v692 = vpop.xlane.xlu0 %691
        %v693 = vsel %vm485, %v298, 0.0
        %694 = vadd.xlane.f32.xlu0 %v693
        %v695 = vpop.xlane.xlu0 %694
        %v696 = vsel %vm485, %v299, 0.0
        %697 = vadd.xlane.f32.xlu0 %v696
        %v698 = vpop.xlane.xlu0 %697
        %v699 = vsel %vm485, %v300, 0.0
        %700 = vadd.xlane.f32.xlu0 %v699
        %v701 = vpop.xlane.xlu0 %700
        %v702 = vsel %vm485, %v301, 0.0
        %703 = vadd.xlane.f32.xlu0 %v702
        %v704 = vpop.xlane.xlu0 %703
        %v705 = vsel %vm485, %v302, 0.0
        %706 = vadd.xlane.f32.xlu0 %v705
        %v707 = vpop.xlane.xlu0 %706
        %v708 = vsel %vm485, %v303, 0.0
        %709 = vadd.xlane.f32.xlu0 %v708
        %v710 = vpop.xlane.xlu0 %709
        %v711 = vsel %vm485, %v304, 0.0
        %712 = vadd.xlane.f32.xlu0 %v711
        %v713 = vpop.xlane.xlu0 %712
        %v714 = vsel %vm485, %v305, 0.0
        %715 = vadd.xlane.f32.xlu0 %v714
        %v716 = vpop.xlane.xlu0 %715
        %v717 = vsel %vm485, %v306, 0.0
        %718 = vadd.xlane.f32.xlu0 %v717
        %v719 = vpop.xlane.xlu0 %718
        %v720 = vsel %vm485, %v307, 0.0
        %721 = vadd.xlane.f32.xlu0 %v720
        %v722 = vpop.xlane.xlu0 %721
        %v723 = vsel %vm485, %v308, 0.0
        %724 = vadd.xlane.f32.xlu0 %v723
        %v725 = vpop.xlane.xlu0 %724
        %v726 = vsel %vm485, %v309, 0.0
        %727 = vadd.xlane.f32.xlu0 %v726
        %v728 = vpop.xlane.xlu0 %727
        %v729 = vsel %vm485, %v310, 0.0
        %730 = vadd.xlane.f32.xlu0 %v729
        %v731 = vpop.xlane.xlu0 %730
        %v732 = vsel %vm485, %v311, 0.0
        %733 = vadd.xlane.f32.xlu0 %v732
        %v734 = vpop.xlane.xlu0 %733
        %v735 = vsel %vm485, %v312, 0.0
        %736 = vadd.xlane.f32.xlu0 %v735
        %v737 = vpop.xlane.xlu0 %736
        %v738 = vsel %vm485, %v313, 0.0
        %739 = vadd.xlane.f32.xlu0 %v738
        %v740 = vpop.xlane.xlu0 %739
        %v741 = vsel %vm485, %v314, 0.0
        %742 = vadd.xlane.f32.xlu0 %v741
        %v743 = vpop.xlane.xlu0 %742
        %v744 = vsel %vm485, %v315, 0.0
        %745 = vadd.xlane.f32.xlu0 %v744
        %v746 = vpop.xlane.xlu0 %745
        %v747 = vsel %vm485, %v316, 0.0
        %748 = vadd.xlane.f32.xlu0 %v747
        %v749 = vpop.xlane.xlu0 %748
        %v750 = vsel %vm485, %v317, 0.0
        %751 = vadd.xlane.f32.xlu0 %v750
        %v752 = vpop.xlane.xlu0 %751
        %v753 = vsel %vm485, %v318, 0.0
        %754 = vadd.xlane.f32.xlu0 %v753
        %v755 = vpop.xlane.xlu0 %754
        %v756 = vsel %vm485, %v319, 0.0
        %757 = vadd.xlane.f32.xlu0 %v756
        %v758 = vpop.xlane.xlu0 %757
        %v759 = vsel %vm485, %v320, 0.0
        %760 = vadd.xlane.f32.xlu0 %v759
        %v761 = vpop.xlane.xlu0 %760
        %v762 = vsel %vm485, %v321, 0.0
        %763 = vadd.xlane.f32.xlu0 %v762
        %v764 = vpop.xlane.xlu0 %763
        %v765 = vsel %vm485, %v322, 0.0
        %766 = vadd.xlane.f32.xlu0 %v765
        %v767 = vpop.xlane.xlu0 %766
        %v768 = vsel %vm485, %v323, 0.0
        %769 = vadd.xlane.f32.xlu0 %v768
        %v770 = vpop.xlane.xlu0 %769
        %v771 = vsel %vm485, %v324, 0.0
        %772 = vadd.xlane.f32.xlu0 %v771
        %v773 = vpop.xlane.xlu0 %772
        %v774 = vsel %vm485, %v325, 0.0
        %775 = vadd.xlane.f32.xlu0 %v774
        %v776 = vpop.xlane.xlu0 %775
        %v777 = vsel %vm485, %v326, 0.0
        %778 = vadd.xlane.f32.xlu0 %v777
        %v779 = vpop.xlane.xlu0 %778
        %v780 = vsel %vm485, %v327, 0.0
        %781 = vadd.xlane.f32.xlu0 %v780
        %v782 = vpop.xlane.xlu0 %781
        %v783 = vsel %vm485, %v328, 0.0
        %784 = vadd.xlane.f32.xlu0 %v783
        %v785 = vpop.xlane.xlu0 %784
        %v786 = vsel %vm485, %v329, 0.0
        %787 = vadd.xlane.f32.xlu0 %v786
        %v788 = vpop.xlane.xlu0 %787
        %v789 = vsel %vm485, %v330, 0.0
        %790 = vadd.xlane.f32.xlu0 %v789
        %v791 = vpop.xlane.xlu0 %790
        %v792 = vsel %vm485, %v331, 0.0
        %793 = vadd.xlane.f32.xlu0 %v792
        %v794 = vpop.xlane.xlu0 %793
        %v795 = vsel %vm485, %v332, 0.0
        %796 = vadd.xlane.f32.xlu0 %v795
        %v797 = vpop.xlane.xlu0 %796
        %v798 = vsel %vm485, %v333, 0.0
        %799 = vadd.xlane.f32.xlu0 %v798
        %v800 = vpop.xlane.xlu0 %799
        %v801 = vsel %vm485, %v334, 0.0
        %802 = vadd.xlane.f32.xlu0 %v801
        %v803 = vpop.xlane.xlu0 %802
        %v804 = vsel %vm485, %v335, 0.0
        %805 = vadd.xlane.f32.xlu0 %v804
        %v806 = vpop.xlane.xlu0 %805
        %v807 = vsel %vm485, %v336, 0.0
        %808 = vadd.xlane.f32.xlu0 %v807
        %v809 = vpop.xlane.xlu0 %808
        %v810 = vsel %vm485, %v337, 0.0
        %811 = vadd.xlane.f32.xlu0 %v810
        %v812 = vpop.xlane.xlu0 %811
        %v813 = vsel %vm485, %v338, 0.0
        %814 = vadd.xlane.f32.xlu0 %v813
        %v815 = vpop.xlane.xlu0 %814
        %v816 = vsel %vm485, %v339, 0.0
        %817 = vadd.xlane.f32.xlu0 %v816
        %v818 = vpop.xlane.xlu0 %817
        %v819 = vsel %vm485, %v340, 0.0
        %820 = vadd.xlane.f32.xlu0 %v819
        %v821 = vpop.xlane.xlu0 %820
        %v822 = vsel %vm485, %v341, 0.0
        %823 = vadd.xlane.f32.xlu0 %v822
        %v824 = vpop.xlane.xlu0 %823
        %v825 = vsel %vm485, %v342, 0.0
        %826 = vadd.xlane.f32.xlu0 %v825
        %v827 = vpop.xlane.xlu0 %826
        %v828 = vsel %vm485, %v343, 0.0
        %829 = vadd.xlane.f32.xlu0 %v828
        %v830 = vpop.xlane.xlu0 %829
        %v831 = vsel %vm485, %v344, 0.0
        %832 = vadd.xlane.f32.xlu0 %v831
        %v833 = vpop.xlane.xlu0 %832
        %v834 = vsel %vm485, %v345, 0.0
        %835 = vadd.xlane.f32.xlu0 %v834
        %v836 = vpop.xlane.xlu0 %835
        %v837 = vsel %vm485, %v346, 0.0
        %838 = vadd.xlane.f32.xlu0 %v837
        %v839 = vpop.xlane.xlu0 %838
        %v840 = vsel %vm485, %v347, 0.0
        %841 = vadd.xlane.f32.xlu0 %v840
        %v842 = vpop.xlane.xlu0 %841
        %v843 = vsel %vm485, %v348, 0.0
        %844 = vadd.xlane.f32.xlu0 %v843
        %v845 = vpop.xlane.xlu0 %844
        %v846 = vsel %vm485, %v349, 0.0
        %847 = vadd.xlane.f32.xlu0 %v846
        %v848 = vpop.xlane.xlu0 %847
        %v849 = vsel %vm485, %v350, 0.0
        %850 = vadd.xlane.f32.xlu0 %v849
        %v851 = vpop.xlane.xlu0 %850
        %v852 = vsel %vm485, %v351, 0.0
        %853 = vadd.xlane.f32.xlu0 %v852
        %v854 = vpop.xlane.xlu0 %853
        %v855 = vsel %vm485, %v352, 0.0
        %856 = vadd.xlane.f32.xlu0 %v855
        %v857 = vpop.xlane.xlu0 %856
        %v858 = vsel %vm485, %v353, 0.0
        %859 = vadd.xlane.f32.xlu0 %v858
        %v860 = vpop.xlane.xlu0 %859
        %v861 = vsel %vm485, %v354, 0.0
        %862 = vadd.xlane.f32.xlu0 %v861
        %v863 = vpop.xlane.xlu0 %862
        %v864 = vsel %vm485, %v355, 0.0
        %865 = vadd.xlane.f32.xlu0 %v864
        %v866 = vpop.xlane.xlu0 %865
        %v867 = vsel %vm485, %v356, 0.0
        %868 = vadd.xlane.f32.xlu0 %v867
        %v869 = vpop.xlane.xlu0 %868
        %v870 = vsel %vm485, %v357, 0.0
        %871 = vadd.xlane.f32.xlu0 %v870
        %v872 = vpop.xlane.xlu0 %871
        %v873 = vsel %vm485, %v358, 0.0
        %874 = vadd.xlane.f32.xlu0 %v873
        %v875 = vpop.xlane.xlu0 %874
        %v876 = vsel %vm485, %v359, 0.0
        %877 = vadd.xlane.f32.xlu0 %v876
        %v878 = vpop.xlane.xlu0 %877
        %v879 = vsel %vm485, %v360, 0.0
        %880 = vadd.xlane.f32.xlu0 %v879
        %v881 = vpop.xlane.xlu0 %880
        %v882 = vsel %vm485, %v361, 0.0
        %883 = vadd.xlane.f32.xlu0 %v882
        %v884 = vpop.xlane.xlu0 %883
        %v885 = vsel %vm485, %v362, 0.0
        %886 = vadd.xlane.f32.xlu0 %v885
        %v887 = vpop.xlane.xlu0 %886
        %v888 = vsel %vm485, %v363, 0.0
        %889 = vadd.xlane.f32.xlu0 %v888
        %v890 = vpop.xlane.xlu0 %889
        %v891 = vsel %vm485, %v364, 0.0
        %892 = vadd.xlane.f32.xlu0 %v891
        %v893 = vpop.xlane.xlu0 %892
        %v894 = vsel %vm485, %v365, 0.0
        %895 = vadd.xlane.f32.xlu0 %v894
        %v896 = vpop.xlane.xlu0 %895
        %v897 = vsel %vm485, %v366, 0.0
        %898 = vadd.xlane.f32.xlu0 %v897
        %v899 = vpop.xlane.xlu0 %898
        %v900 = vsel %vm485, %v367, 0.0
        %901 = vadd.xlane.f32.xlu0 %v900
        %v902 = vpop.xlane.xlu0 %901
        %v903 = vsel %vm485, %v368, 0.0
        %904 = vadd.xlane.f32.xlu0 %v903
        %v905 = vpop.xlane.xlu0 %904
        %v906 = vsel %vm485, %v369, 0.0
        %907 = vadd.xlane.f32.xlu0 %v906
        %v908 = vpop.xlane.xlu0 %907
        %v909 = vsel %vm485, %v370, 0.0
        %910 = vadd.xlane.f32.xlu0 %v909
        %v911 = vpop.xlane.xlu0 %910
        %v912 = vsel %vm485, %v371, 0.0
        %913 = vadd.xlane.f32.xlu0 %v912
        %v914 = vpop.xlane.xlu0 %913
        %v915 = vsel %vm485, %v372, 0.0
        %916 = vadd.xlane.f32.xlu0 %v915
        %v917 = vpop.xlane.xlu0 %916
        %v918 = vsel %vm485, %v373, 0.0
        %919 = vadd.xlane.f32.xlu0 %v918
        %v920 = vpop.xlane.xlu0 %919
        %v921 = vsel %vm485, %v374, 0.0
        %922 = vadd.xlane.f32.xlu0 %v921
        %v923 = vpop.xlane.xlu0 %922
        %v924 = vsel %vm485, %v375, 0.0
        %925 = vadd.xlane.f32.xlu0 %v924
        %v926 = vpop.xlane.xlu0 %925
        %v927 = vsel %vm485, %v376, 0.0
        %928 = vadd.xlane.f32.xlu0 %v927
        %v929 = vpop.xlane.xlu0 %928
        %v930 = vsel %vm485, %v377, 0.0
        %931 = vadd.xlane.f32.xlu0 %v930
        %v932 = vpop.xlane.xlu0 %931
        %v933 = vsel %vm485, %v378, 0.0
        %934 = vadd.xlane.f32.xlu0 %v933
        %v935 = vpop.xlane.xlu0 %934
        %v936 = vsel %vm485, %v379, 0.0
        %937 = vadd.xlane.f32.xlu0 %v936
        %v938 = vpop.xlane.xlu0 %937
        %v939 = vsel %vm485, %v380, 0.0
        %940 = vadd.xlane.f32.xlu0 %v939
        %v941 = vpop.xlane.xlu0 %940
        %v942 = vsel %vm485, %v381, 0.0
        %943 = vadd.xlane.f32.xlu0 %v942
        %v944 = vpop.xlane.xlu0 %943
        %v945 = vsel %vm485, %v382, 0.0
        %946 = vadd.xlane.f32.xlu0 %v945
        %v947 = vpop.xlane.xlu0 %946
        %v948 = vsel %vm485, %v383, 0.0
        %949 = vadd.xlane.f32.xlu0 %v948
        %v950 = vpop.xlane.xlu0 %949
        %v951 = vsel %vm485, %v384, 0.0
        %952 = vadd.xlane.f32.xlu0 %v951
        %v953 = vpop.xlane.xlu0 %952
        %v954 = vsel %vm485, %v385, 0.0
        %955 = vadd.xlane.f32.xlu0 %v954
        %v956 = vpop.xlane.xlu0 %955
        %v957 = vsel %vm485, %v386, 0.0
        %958 = vadd.xlane.f32.xlu0 %v957
        %v959 = vpop.xlane.xlu0 %958
        %v960 = vsel %vm485, %v387, 0.0
        %961 = vadd.xlane.f32.xlu0 %v960
        %v962 = vpop.xlane.xlu0 %961
        %v963 = vsel %vm485, %v388, 0.0
        %964 = vadd.xlane.f32.xlu0 %v963
        %v965 = vpop.xlane.xlu0 %964
        %v966 = vsel %vm485, %v389, 0.0
        %967 = vadd.xlane.f32.xlu0 %v966
        %v968 = vpop.xlane.xlu0 %967
        %v969 = vsel %vm485, %v390, 0.0
        %970 = vadd.xlane.f32.xlu0 %v969
        %v971 = vpop.xlane.xlu0 %970
        %v972 = vsel %vm485, %v391, 0.0
        %973 = vadd.xlane.f32.xlu0 %v972
        %v974 = vpop.xlane.xlu0 %973
        %v975 = vsel %vm485, %v392, 0.0
        %976 = vadd.xlane.f32.xlu0 %v975
        %v977 = vpop.xlane.xlu0 %976
        %v978 = vsel %vm485, %v393, 0.0
        %979 = vadd.xlane.f32.xlu0 %v978
        %v980 = vpop.xlane.xlu0 %979
        %v981 = vsel %vm485, %v394, 0.0
        %982 = vadd.xlane.f32.xlu0 %v981
        %v983 = vpop.xlane.xlu0 %982
        %v984 = vsel %vm485, %v395, 0.0
        %985 = vadd.xlane.f32.xlu0 %v984
        %v986 = vpop.xlane.xlu0 %985
        %v987 = vsel %vm485, %v396, 0.0
        %988 = vadd.xlane.f32.xlu0 %v987
        %v989 = vpop.xlane.xlu0 %988
        %v990 = vsel %vm485, %v397, 0.0
        %991 = vadd.xlane.f32.xlu0 %v990
        %v992 = vpop.xlane.xlu0 %991
        %v993 = vsel %vm485, %v398, 0.0
        %994 = vadd.xlane.f32.xlu0 %v993
        %v995 = vpop.xlane.xlu0 %994
        %v996 = vsel %vm485, %v399, 0.0
        %997 = vadd.xlane.f32.xlu0 %v996
        %v998 = vpop.xlane.xlu0 %997
        %v999 = vsel %vm485, %v400, 0.0
        %1000 = vadd.xlane.f32.xlu0 %v999
        %v1001 = vpop.xlane.xlu0 %1000
        %v1002 = vsel %vm485, %v401, 0.0
        %1003 = vadd.xlane.f32.xlu0 %v1002
        %v1004 = vpop.xlane.xlu0 %1003
        %v1005 = vsel %vm485, %v402, 0.0
        %1006 = vadd.xlane.f32.xlu0 %v1005
        %v1007 = vpop.xlane.xlu0 %1006
        %v1008 = vsel %vm485, %v403, 0.0
        %1009 = vadd.xlane.f32.xlu0 %v1008
        %v1010 = vpop.xlane.xlu0 %1009
        %v1011 = vsel %vm485, %v404, 0.0
        %1012 = vadd.xlane.f32.xlu0 %v1011
        %v1013 = vpop.xlane.xlu0 %1012
        %v1014 = vsel %vm485, %v405, 0.0
        %1015 = vadd.xlane.f32.xlu0 %v1014
        %v1016 = vpop.xlane.xlu0 %1015
        %v1017 = vsel %vm485, %v406, 0.0
        %1018 = vadd.xlane.f32.xlu0 %v1017
        %v1019 = vpop.xlane.xlu0 %1018
        %v1020 = vsel %vm485, %v407, 0.0
        %1021 = vadd.xlane.f32.xlu0 %v1020
        %v1022 = vpop.xlane.xlu0 %1021
        %v1023 = vsel %vm485, %v408, 0.0
        %1024 = vadd.xlane.f32.xlu0 %v1023
        %v1025 = vpop.xlane.xlu0 %1024
        %v1026 = vsel %vm485, %v409, 0.0
        %1027 = vadd.xlane.f32.xlu0 %v1026
        %v1028 = vpop.xlane.xlu0 %1027
        %v1029 = vsel %vm485, %v410, 0.0
        %1030 = vadd.xlane.f32.xlu0 %v1029
        %v1031 = vpop.xlane.xlu0 %1030
        %v1032 = vsel %vm485, %v411, 0.0
        %1033 = vadd.xlane.f32.xlu0 %v1032
        %v1034 = vpop.xlane.xlu0 %1033
        %v1035 = vsel %vm485, %v412, 0.0
        %1036 = vadd.xlane.f32.xlu0 %v1035
        %v1037 = vpop.xlane.xlu0 %1036
        %v1038 = vsel %vm485, %v413, 0.0
        %1039 = vadd.xlane.f32.xlu0 %v1038
        %v1040 = vpop.xlane.xlu0 %1039
        %v1041 = vsel %vm485, %v414, 0.0
        %1042 = vadd.xlane.f32.xlu0 %v1041
        %v1043 = vpop.xlane.xlu0 %1042
        %v1044 = vsel %vm485, %v415, 0.0
        %1045 = vadd.xlane.f32.xlu0 %v1044
        %v1046 = vpop.xlane.xlu0 %1045
        %v1047 = vsel %vm485, %v416, 0.0
        %1048 = vadd.xlane.f32.xlu0 %v1047
        %v1049 = vpop.xlane.xlu0 %1048
        %v1050 = vsel %vm485, %v417, 0.0
        %1051 = vadd.xlane.f32.xlu0 %v1050
        %v1052 = vpop.xlane.xlu0 %1051
        %v1053 = vsel %vm485, %v418, 0.0
        %1054 = vadd.xlane.f32.xlu0 %v1053
        %v1055 = vpop.xlane.xlu0 %1054
        %v1056 = vsel %vm485, %v419, 0.0
        %1057 = vadd.xlane.f32.xlu0 %v1056
        %v1058 = vpop.xlane.xlu0 %1057
        %v1059 = vsel %vm485, %v420, 0.0
        %1060 = vadd.xlane.f32.xlu0 %v1059
        %v1061 = vpop.xlane.xlu0 %1060
        %v1062 = vsel %vm485, %v421, 0.0
        %1063 = vadd.xlane.f32.xlu0 %v1062
        %v1064 = vpop.xlane.xlu0 %1063
        %v1065 = vsel %vm485, %v422, 0.0
        %1066 = vadd.xlane.f32.xlu0 %v1065
        %v1067 = vpop.xlane.xlu0 %1066
        %v1068 = vsel %vm485, %v423, 0.0
        %1069 = vadd.xlane.f32.xlu0 %v1068
        %v1070 = vpop.xlane.xlu0 %1069
        %v1071 = vsel %vm485, %v424, 0.0
        %1072 = vadd.xlane.f32.xlu0 %v1071
        %v1073 = vpop.xlane.xlu0 %1072
        %v1074 = vsel %vm485, %v425, 0.0
        %1075 = vadd.xlane.f32.xlu0 %v1074
        %v1076 = vpop.xlane.xlu0 %1075
        %v1077 = vsel %vm485, %v426, 0.0
        %1078 = vadd.xlane.f32.xlu0 %v1077
        %v1079 = vpop.xlane.xlu0 %1078
        %v1080 = vsel %vm485, %v427, 0.0
        %1081 = vadd.xlane.f32.xlu0 %v1080
        %v1082 = vpop.xlane.xlu0 %1081
        %v1083 = vsel %vm485, %v428, 0.0
        %1084 = vadd.xlane.f32.xlu0 %v1083
        %v1085 = vpop.xlane.xlu0 %1084
        %v1086 = vsel %vm485, %v429, 0.0
        %1087 = vadd.xlane.f32.xlu0 %v1086
        %v1088 = vpop.xlane.xlu0 %1087
        %v1089 = vsel %vm485, %v430, 0.0
        %1090 = vadd.xlane.f32.xlu0 %v1089
        %v1091 = vpop.xlane.xlu0 %1090
        %v1092 = vsel %vm485, %v431, 0.0
        %1093 = vadd.xlane.f32.xlu0 %v1092
        %v1094 = vpop.xlane.xlu0 %1093
        %v1095 = vsel %vm485, %v432, 0.0
        %1096 = vadd.xlane.f32.xlu0 %v1095
        %v1097 = vpop.xlane.xlu0 %1096
        %v1098 = vsel %vm485, %v433, 0.0
        %1099 = vadd.xlane.f32.xlu0 %v1098
        %v1100 = vpop.xlane.xlu0 %1099
        %v1101 = vsel %vm485, %v434, 0.0
        %1102 = vadd.xlane.f32.xlu0 %v1101
        %v1103 = vpop.xlane.xlu0 %1102
        %v1104 = vsel %vm485, %v435, 0.0
        %1105 = vadd.xlane.f32.xlu0 %v1104
        %v1106 = vpop.xlane.xlu0 %1105
        %v1107 = vsel %vm485, %v436, 0.0
        %1108 = vadd.xlane.f32.xlu0 %v1107
        %v1109 = vpop.xlane.xlu0 %1108
        %v1110 = vsel %vm485, %v437, 0.0
        %1111 = vadd.xlane.f32.xlu0 %v1110
        %v1112 = vpop.xlane.xlu0 %1111
        %v1113 = vsel %vm485, %v438, 0.0
        %1114 = vadd.xlane.f32.xlu0 %v1113
        %v1115 = vpop.xlane.xlu0 %1114
        %v1116 = vsel %vm485, %v439, 0.0
        %1117 = vadd.xlane.f32.xlu0 %v1116
        %v1118 = vpop.xlane.xlu0 %1117
        %v1119 = vsel %vm485, %v440, 0.0
        %1120 = vadd.xlane.f32.xlu0 %v1119
        %v1121 = vpop.xlane.xlu0 %1120
        %v1122 = vsel %vm485, %v441, 0.0
        %1123 = vadd.xlane.f32.xlu0 %v1122
        %v1124 = vpop.xlane.xlu0 %1123
        %v1125 = vsel %vm485, %v442, 0.0
        %1126 = vadd.xlane.f32.xlu0 %v1125
        %v1127 = vpop.xlane.xlu0 %1126
        %v1128 = vsel %vm485, %v443, 0.0
        %1129 = vadd.xlane.f32.xlu0 %v1128
        %v1130 = vpop.xlane.xlu0 %1129
        %v1131 = vsel %vm485, %v444, 0.0
        %1132 = vadd.xlane.f32.xlu0 %v1131
        %v1133 = vpop.xlane.xlu0 %1132
        %v1134 = vsel %vm485, %v445, 0.0
        %1135 = vadd.xlane.f32.xlu0 %v1134
        %v1136 = vpop.xlane.xlu0 %1135
        %v1137 = vsel %vm485, %v446, 0.0
        %1138 = vadd.xlane.f32.xlu0 %v1137
        %v1139 = vpop.xlane.xlu0 %1138
        %v1140 = vsel %vm485, %v447, 0.0
        %1141 = vadd.xlane.f32.xlu0 %v1140
        %v1142 = vpop.xlane.xlu0 %1141
        %v1143 = vsel %vm485, %v448, 0.0
        %1144 = vadd.xlane.f32.xlu0 %v1143
        %v1145 = vpop.xlane.xlu0 %1144
        %v1146 = vsel %vm485, %v449, 0.0
        %1147 = vadd.xlane.f32.xlu0 %v1146
        %v1148 = vpop.xlane.xlu0 %1147
        %v1149 = vsel %vm485, %v450, 0.0
        %1150 = vadd.xlane.f32.xlu0 %v1149
        %v1151 = vpop.xlane.xlu0 %1150
        %v1152 = vsel %vm485, %v451, 0.0
        %1153 = vadd.xlane.f32.xlu0 %v1152
        %v1154 = vpop.xlane.xlu0 %1153
        %v1155 = vsel %vm485, %v452, 0.0
        %1156 = vadd.xlane.f32.xlu0 %v1155
        %v1157 = vpop.xlane.xlu0 %1156
        %v1158 = vsel %vm485, %v453, 0.0
        %1159 = vadd.xlane.f32.xlu0 %v1158
        %v1160 = vpop.xlane.xlu0 %1159
        %v1161 = vsel %vm485, %v454, 0.0
        %1162 = vadd.xlane.f32.xlu0 %v1161
        %v1163 = vpop.xlane.xlu0 %1162
        %v1164 = vsel %vm485, %v455, 0.0
        %1165 = vadd.xlane.f32.xlu0 %v1164
        %v1166 = vpop.xlane.xlu0 %1165
        %v1167 = vsel %vm485, %v456, 0.0
        %1168 = vadd.xlane.f32.xlu0 %v1167
        %v1169 = vpop.xlane.xlu0 %1168
        %v1170 = vsel %vm485, %v457, 0.0
        %1171 = vadd.xlane.f32.xlu0 %v1170
        %v1172 = vpop.xlane.xlu0 %1171
        %v1173 = vsel %vm485, %v458, 0.0
        %1174 = vadd.xlane.f32.xlu0 %v1173
        %v1175 = vpop.xlane.xlu0 %1174
        %v1176 = vsel %vm485, %v459, 0.0
        %1177 = vadd.xlane.f32.xlu0 %v1176
        %v1178 = vpop.xlane.xlu0 %1177
        %v1179 = vsel %vm485, %v460, 0.0
        %1180 = vadd.xlane.f32.xlu0 %v1179
        %v1181 = vpop.xlane.xlu0 %1180
        %v1182 = vsel %vm485, %v461, 0.0
        %1183 = vadd.xlane.f32.xlu0 %v1182
        %v1184 = vpop.xlane.xlu0 %1183
        %v1185 = vsel %vm485, %v462, 0.0
        %1186 = vadd.xlane.f32.xlu0 %v1185
        %v1187 = vpop.xlane.xlu0 %1186
        %v1188 = vsel %vm485, %v463, 0.0
        %1189 = vadd.xlane.f32.xlu0 %v1188
        %v1190 = vpop.xlane.xlu0 %1189
        %v1191 = vsel %vm485, %v464, 0.0
        %1192 = vadd.xlane.f32.xlu0 %v1191
        %v1193 = vpop.xlane.xlu0 %1192
        %v1194 = vsel %vm485, %v465, 0.0
        %1195 = vadd.xlane.f32.xlu0 %v1194
        %v1196 = vpop.xlane.xlu0 %1195
        %v1197 = vsel %vm485, %v466, 0.0
        %1198 = vadd.xlane.f32.xlu0 %v1197
        %v1199 = vpop.xlane.xlu0 %1198
        %v1200 = vsel %vm485, %v467, 0.0
        %1201 = vadd.xlane.f32.xlu0 %v1200
        %v1202 = vpop.xlane.xlu0 %1201
        %v1203 = vsel %vm485, %v468, 0.0
        %1204 = vadd.xlane.f32.xlu0 %v1203
        %v1205 = vpop.xlane.xlu0 %1204
        %v1206 = vsel %vm485, %v469, 0.0
        %1207 = vadd.xlane.f32.xlu0 %v1206
        %v1208 = vpop.xlane.xlu0 %1207
        %v1209 = vsel %vm485, %v470, 0.0
        %1210 = vadd.xlane.f32.xlu0 %v1209
        %v1211 = vpop.xlane.xlu0 %1210
        %v1212 = vsel %vm485, %v471, 0.0
        %1213 = vadd.xlane.f32.xlu0 %v1212
        %v1214 = vpop.xlane.xlu0 %1213
        %v1215 = vsel %vm485, %v472, 0.0
        %1216 = vadd.xlane.f32.xlu0 %v1215
        %v1217 = vpop.xlane.xlu0 %1216
        %v1218 = vsel %vm485, %v473, 0.0
        %1219 = vadd.xlane.f32.xlu0 %v1218
        %v1220 = vpop.xlane.xlu0 %1219
        %v1221 = vsel %vm485, %v474, 0.0
        %1222 = vadd.xlane.f32.xlu0 %v1221
        %v1223 = vpop.xlane.xlu0 %1222
        %v1224 = vsel %vm485, %v475, 0.0
        %1225 = vadd.xlane.f32.xlu0 %v1224
        %v1226 = vpop.xlane.xlu0 %1225
        %v1227 = vsel %vm485, %v476, 0.0
        %1228 = vadd.xlane.f32.xlu0 %v1227
        %v1229 = vpop.xlane.xlu0 %1228
        %v1230 = vsel %vm485, %v477, 0.0
        %1231 = vadd.xlane.f32.xlu0 %v1230
        %v1232 = vpop.xlane.xlu0 %1231
        %v1233 = vsel %vm485, %v478, 0.0
        %1234 = vadd.xlane.f32.xlu0 %v1233
        %v1235 = vpop.xlane.xlu0 %1234
        %v1236 = vsel %vm485, %v479, 0.0
        %1237 = vadd.xlane.f32.xlu0 %v1236
        %v1238 = vpop.xlane.xlu0 %1237
        %v1239 = vsel %vm485, %v480, 0.0
        %1240 = vadd.xlane.f32.xlu0 %v1239
        %v1241 = vpop.xlane.xlu0 %1240
        %v1242 = vsel %vm485, %v481, 0.0
        %1243 = vadd.xlane.f32.xlu0 %v1242
        %v1244 = vpop.xlane.xlu0 %1243
        %v1245 = vsel %vm485, %v482, 0.0
        %1246 = vadd.xlane.f32.xlu0 %v1245
        %v1247 = vpop.xlane.xlu0 %1246
        %v1248 = vsel %vm485, %v483, 0.0
        %1249 = vadd.xlane.f32.xlu0 %v1248
        %v1250 = vpop.xlane.xlu0 %1249
        %v1251 = vsel %vm485, %v484, 0.0
        %1252 = vadd.xlane.f32.xlu0 %v1251
        %v1253 = vpop.xlane.xlu0 %1252
        %v1254 = vpack.c.bf16 %v491, %v488
        %v1255 = vpack.c.bf16 %v497, %v494
        %v1256 = vpack.c.bf16 %v503, %v500
        %v1257 = vpack.c.bf16 %v509, %v506
        %v1258 = vpack.c.bf16 %v515, %v512
        %v1259 = vpack.c.bf16 %v521, %v518
        %v1260 = vpack.c.bf16 %v527, %v524
        %v1261 = vpack.c.bf16 %v533, %v530
        %v1262 = vpack.c.bf16 %v539, %v536
        %v1263 = vpack.c.bf16 %v545, %v542
        %v1264 = vpack.c.bf16 %v551, %v548
        %v1265 = vpack.c.bf16 %v557, %v554
        %v1266 = vpack.c.bf16 %v563, %v560
        %v1267 = vpack.c.bf16 %v569, %v566
        %v1268 = vpack.c.bf16 %v575, %v572
        %v1269 = vpack.c.bf16 %v581, %v578
        %v1270 = vpack.c.bf16 %v587, %v584
        %v1271 = vpack.c.bf16 %v593, %v590
        %v1272 = vpack.c.bf16 %v599, %v596
        %v1273 = vpack.c.bf16 %v605, %v602
        %v1274 = vpack.c.bf16 %v611, %v608
        %v1275 = vpack.c.bf16 %v617, %v614
        %v1276 = vpack.c.bf16 %v623, %v620
        %v1277 = vpack.c.bf16 %v629, %v626
        %v1278 = vpack.c.bf16 %v635, %v632
        %v1279 = vpack.c.bf16 %v641, %v638
        %v1280 = vpack.c.bf16 %v647, %v644
        %v1281 = vpack.c.bf16 %v653, %v650
        %v1282 = vpack.c.bf16 %v659, %v656
        %v1283 = vpack.c.bf16 %v665, %v662
        %v1284 = vpack.c.bf16 %v671, %v668
        %v1285 = vpack.c.bf16 %v677, %v674
        %v1286 = vpack.c.bf16 %v683, %v680
        %v1287 = vpack.c.bf16 %v689, %v686
        %v1288 = vpack.c.bf16 %v695, %v692
        %v1289 = vpack.c.bf16 %v701, %v698
        %v1290 = vpack.c.bf16 %v707, %v704
        %v1291 = vpack.c.bf16 %v713, %v710
        %v1292 = vpack.c.bf16 %v719, %v716
        %v1293 = vpack.c.bf16 %v725, %v722
        %v1294 = vpack.c.bf16 %v731, %v728
        %v1295 = vpack.c.bf16 %v737, %v734
        %v1296 = vpack.c.bf16 %v743, %v740
        %v1297 = vpack.c.bf16 %v749, %v746
        %v1298 = vpack.c.bf16 %v755, %v752
        %v1299 = vpack.c.bf16 %v761, %v758
        %v1300 = vpack.c.bf16 %v767, %v764
        %v1301 = vpack.c.bf16 %v773, %v770
        %v1302 = vpack.c.bf16 %v779, %v776
        %v1303 = vpack.c.bf16 %v785, %v782
        %v1304 = vpack.c.bf16 %v791, %v788
        %v1305 = vpack.c.bf16 %v797, %v794
        %v1306 = vpack.c.bf16 %v803, %v800
        %v1307 = vpack.c.bf16 %v809, %v806
        %v1308 = vpack.c.bf16 %v815, %v812
        %v1309 = vpack.c.bf16 %v821, %v818
        %v1310 = vpack.c.bf16 %v827, %v824
        %v1311 = vpack.c.bf16 %v833, %v830
        %v1312 = vpack.c.bf16 %v839, %v836
        %v1313 = vpack.c.bf16 %v845, %v842
        %v1314 = vpack.c.bf16 %v851, %v848
        %v1315 = vpack.c.bf16 %v857, %v854
        %v1316 = vpack.c.bf16 %v863, %v860
        %v1317 = vpack.c.bf16 %v869, %v866
        %v1318 = vpack.c.bf16 %v875, %v872
        %v1319 = vpack.c.bf16 %v881, %v878
        %v1320 = vpack.c.bf16 %v887, %v884
        %v1321 = vpack.c.bf16 %v893, %v890
        %v1322 = vpack.c.bf16 %v899, %v896
        %v1323 = vpack.c.bf16 %v905, %v902
        %v1324 = vpack.c.bf16 %v911, %v908
        %v1325 = vpack.c.bf16 %v917, %v914
        %v1326 = vpack.c.bf16 %v923, %v920
        %v1327 = vpack.c.bf16 %v929, %v926
        %v1328 = vpack.c.bf16 %v935, %v932
        %v1329 = vpack.c.bf16 %v941, %v938
        %v1330 = vpack.c.bf16 %v947, %v944
        %v1331 = vpack.c.bf16 %v953, %v950
        %v1332 = vpack.c.bf16 %v959, %v956
        %v1333 = vpack.c.bf16 %v965, %v962
        %v1334 = vpack.c.bf16 %v971, %v968
        %v1335 = vpack.c.bf16 %v977, %v974
        %v1336 = vpack.c.bf16 %v983, %v980
        %v1337 = vpack.c.bf16 %v989, %v986
        %v1338 = vpack.c.bf16 %v995, %v992
        %v1339 = vpack.c.bf16 %v1001, %v998
        %v1340 = vpack.c.bf16 %v1007, %v1004
        %v1341 = vpack.c.bf16 %v1013, %v1010
        %v1342 = vpack.c.bf16 %v1019, %v1016
        %v1343 = vpack.c.bf16 %v1025, %v1022
        %v1344 = vpack.c.bf16 %v1031, %v1028
        %v1345 = vpack.c.bf16 %v1037, %v1034
        %v1346 = vpack.c.bf16 %v1043, %v1040
        %v1347 = vpack.c.bf16 %v1049, %v1046
        %v1348 = vpack.c.bf16 %v1055, %v1052
        %v1349 = vpack.c.bf16 %v1061, %v1058
        %v1350 = vpack.c.bf16 %v1067, %v1064
        %v1351 = vpack.c.bf16 %v1073, %v1070
        %v1352 = vpack.c.bf16 %v1079, %v1076
        %v1353 = vpack.c.bf16 %v1085, %v1082
        %v1354 = vpack.c.bf16 %v1091, %v1088
        %v1355 = vpack.c.bf16 %v1097, %v1094
        %v1356 = vpack.c.bf16 %v1103, %v1100
        %v1357 = vpack.c.bf16 %v1109, %v1106
        %v1358 = vpack.c.bf16 %v1115, %v1112
        %v1359 = vpack.c.bf16 %v1121, %v1118
        %v1360 = vpack.c.bf16 %v1127, %v1124
        %v1361 = vpack.c.bf16 %v1133, %v1130
        %v1362 = vpack.c.bf16 %v1139, %v1136
        %v1363 = vpack.c.bf16 %v1145, %v1142
        %v1364 = vpack.c.bf16 %v1151, %v1148
        %v1365 = vpack.c.bf16 %v1157, %v1154
        %v1366 = vpack.c.bf16 %v1163, %v1160
        %v1367 = vpack.c.bf16 %v1169, %v1166
        %v1368 = vpack.c.bf16 %v1175, %v1172
        %v1369 = vpack.c.bf16 %v1181, %v1178
        %v1370 = vpack.c.bf16 %v1187, %v1184
        %v1371 = vpack.c.bf16 %v1193, %v1190
        %v1372 = vpack.c.bf16 %v1199, %v1196
        %v1373 = vpack.c.bf16 %v1205, %v1202
        %v1374 = vpack.c.bf16 %v1211, %v1208
        %v1375 = vpack.c.bf16 %v1217, %v1214
        %v1376 = vpack.c.bf16 %v1223, %v1220
        %v1377 = vpack.c.bf16 %v1229, %v1226
        %v1378 = vpack.c.bf16 %v1235, %v1232
        %v1379 = vpack.c.bf16 %v1241, %v1238
        %v1380 = vpack.c.bf16 %v1247, %v1244
        %v1381 = vpack.c.bf16 %v1253, %v1250
        %v1382 = vld [vmem:[%s1] sm:$0xff]
        %v1383 = vld [vmem:[%s1 + $0x8] sm:$0xff]
        %v1384 = vld [vmem:[%s1 + $0x10] sm:$0xff]
        %v1385 = vld [vmem:[%s1 + $0x18] sm:$0xff]
        %v1386 = vld [vmem:[%s1 + $0x20] sm:$0xff]
        %v1387 = vld [vmem:[%s1 + $0x28] sm:$0xff]
        %v1388 = vld [vmem:[%s1 + $0x30] sm:$0xff]
        %v1389 = vld [vmem:[%s1 + $0x38] sm:$0xff]
        %v1390 = vld [vmem:[%s1 + $0x40] sm:$0xff]
        %v1391 = vld [vmem:[%s1 + $0x48] sm:$0xff]
        %v1392 = vld [vmem:[%s1 + $0x50] sm:$0xff]
        %v1393 = vld [vmem:[%s1 + $0x58] sm:$0xff]
        %v1394 = vld [vmem:[%s1 + $0x60] sm:$0xff]
        %v1395 = vld [vmem:[%s1 + $0x68] sm:$0xff]
        %v1396 = vld [vmem:[%s1 + $0x70] sm:$0xff]
        %v1397 = vld [vmem:[%s1 + $0x78] sm:$0xff]
        %v1398 = vld [vmem:[%s1 + $0x80] sm:$0xff]
        %v1399 = vld [vmem:[%s1 + $0x88] sm:$0xff]
        %v1400 = vld [vmem:[%s1 + $0x90] sm:$0xff]
        %v1401 = vld [vmem:[%s1 + $0x98] sm:$0xff]
        %v1402 = vld [vmem:[%s1 + $0xa0] sm:$0xff]
        %v1403 = vld [vmem:[%s1 + $0xa8] sm:$0xff]
        %v1404 = vld [vmem:[%s1 + $0xb0] sm:$0xff]
        %v1405 = vld [vmem:[%s1 + $0xb8] sm:$0xff]
        %v1406 = vld [vmem:[%s1 + $0xc0] sm:$0xff]
        %v1407 = vld [vmem:[%s1 + $0xc8] sm:$0xff]
        %v1408 = vld [vmem:[%s1 + $0xd0] sm:$0xff]
        %v1409 = vld [vmem:[%s1 + $0xd8] sm:$0xff]
        %v1410 = vld [vmem:[%s1 + $0xe0] sm:$0xff]
        %v1411 = vld [vmem:[%s1 + $0xe8] sm:$0xff]
        %v1412 = vld [vmem:[%s1 + $0xf0] sm:$0xff]
        %v1413 = vld [vmem:[%s1 + $0xf8] sm:$0xff]
        %v1414 = vld [vmem:[%s2] sm:$0x3]
        %v1416 = vlaneseq
        %v1417 = vshrl.u32 %v1416, 7
        %v1418 = vsub.s32 0, %v1417
        %v1419 = vrot.slane %v1414, %v1418
        %v1420 = vlaneseq
        %v1421 = vshrl.u32 %v1420, 7
        %v1422 = vsub.s32 1, %v1421
        %v1423 = vrot.slane %v1414, %v1422
        %v1554 = vunpack.c.l.b16 %v1254
        %v1555 = vunpack.c.h.b16 %v1254
        %v1556 = vunpack.c.l.b16 %v1255
        %v1557 = vunpack.c.h.b16 %v1255
        %v1558 = vunpack.c.l.b16 %v1256
        %v1559 = vunpack.c.h.b16 %v1256
        %v1560 = vunpack.c.l.b16 %v1257
        %v1561 = vunpack.c.h.b16 %v1257
        %v1562 = vunpack.c.l.b16 %v1258
        %v1563 = vunpack.c.h.b16 %v1258
        %v1564 = vunpack.c.l.b16 %v1259
        %v1565 = vunpack.c.h.b16 %v1259
        %v1566 = vunpack.c.l.b16 %v1260
        %v1567 = vunpack.c.h.b16 %v1260
        %v1568 = vunpack.c.l.b16 %v1261
        %v1569 = vunpack.c.h.b16 %v1261
        %v1570 = vunpack.c.l.b16 %v1262
        %v1571 = vunpack.c.h.b16 %v1262
        %v1572 = vunpack.c.l.b16 %v1263
        %v1573 = vunpack.c.h.b16 %v1263
        %v1574 = vunpack.c.l.b16 %v1264
        %v1575 = vunpack.c.h.b16 %v1264
        %v1576 = vunpack.c.l.b16 %v1265
        %v1577 = vunpack.c.h.b16 %v1265
        %v1578 = vunpack.c.l.b16 %v1266
        %v1579 = vunpack.c.h.b16 %v1266
        %v1580 = vunpack.c.l.b16 %v1267
        %v1581 = vunpack.c.h.b16 %v1267
        %v1582 = vunpack.c.l.b16 %v1268
        %v1583 = vunpack.c.h.b16 %v1268
        %v1584 = vunpack.c.l.b16 %v1269
        %v1585 = vunpack.c.h.b16 %v1269
        %v1586 = vunpack.c.l.b16 %v1270
        %v1587 = vunpack.c.h.b16 %v1270
        %v1588 = vunpack.c.l.b16 %v1271
        %v1589 = vunpack.c.h.b16 %v1271
        %v1590 = vunpack.c.l.b16 %v1272
        %v1591 = vunpack.c.h.b16 %v1272
        %v1592 = vunpack.c.l.b16 %v1273
        %v1593 = vunpack.c.h.b16 %v1273
        %v1594 = vunpack.c.l.b16 %v1274
        %v1595 = vunpack.c.h.b16 %v1274
        %v1596 = vunpack.c.l.b16 %v1275
        %v1597 = vunpack.c.h.b16 %v1275
        %v1598 = vunpack.c.l.b16 %v1276
        %v1599 = vunpack.c.h.b16 %v1276
        %v1600 = vunpack.c.l.b16 %v1277
        %v1601 = vunpack.c.h.b16 %v1277
        %v1602 = vunpack.c.l.b16 %v1278
        %v1603 = vunpack.c.h.b16 %v1278
        %v1604 = vunpack.c.l.b16 %v1279
        %v1605 = vunpack.c.h.b16 %v1279
        %v1606 = vunpack.c.l.b16 %v1280
        %v1607 = vunpack.c.h.b16 %v1280
        %v1608 = vunpack.c.l.b16 %v1281
        %v1609 = vunpack.c.h.b16 %v1281
        %v1610 = vunpack.c.l.b16 %v1282
        %v1611 = vunpack.c.h.b16 %v1282
        %v1612 = vunpack.c.l.b16 %v1283
        %v1613 = vunpack.c.h.b16 %v1283
        %v1614 = vunpack.c.l.b16 %v1284
        %v1615 = vunpack.c.h.b16 %v1284
        %v1616 = vunpack.c.l.b16 %v1285
        %v1617 = vunpack.c.h.b16 %v1285
        %v1618 = vunpack.c.l.b16 %v1286
        %v1619 = vunpack.c.h.b16 %v1286
        %v1620 = vunpack.c.l.b16 %v1287
        %v1621 = vunpack.c.h.b16 %v1287
        %v1622 = vunpack.c.l.b16 %v1288
        %v1623 = vunpack.c.h.b16 %v1288
        %v1624 = vunpack.c.l.b16 %v1289
        %v1625 = vunpack.c.h.b16 %v1289
        %v1626 = vunpack.c.l.b16 %v1290
        %v1627 = vunpack.c.h.b16 %v1290
        %v1628 = vunpack.c.l.b16 %v1291
        %v1629 = vunpack.c.h.b16 %v1291
        %v1630 = vunpack.c.l.b16 %v1292
        %v1631 = vunpack.c.h.b16 %v1292
        %v1632 = vunpack.c.l.b16 %v1293
        %v1633 = vunpack.c.h.b16 %v1293
        %v1634 = vunpack.c.l.b16 %v1294
        %v1635 = vunpack.c.h.b16 %v1294
        %v1636 = vunpack.c.l.b16 %v1295
        %v1637 = vunpack.c.h.b16 %v1295
        %v1638 = vunpack.c.l.b16 %v1296
        %v1639 = vunpack.c.h.b16 %v1296
        %v1640 = vunpack.c.l.b16 %v1297
        %v1641 = vunpack.c.h.b16 %v1297
        %v1642 = vunpack.c.l.b16 %v1298
        %v1643 = vunpack.c.h.b16 %v1298
        %v1644 = vunpack.c.l.b16 %v1299
        %v1645 = vunpack.c.h.b16 %v1299
        %v1646 = vunpack.c.l.b16 %v1300
        %v1647 = vunpack.c.h.b16 %v1300
        %v1648 = vunpack.c.l.b16 %v1301
        %v1649 = vunpack.c.h.b16 %v1301
        %v1650 = vunpack.c.l.b16 %v1302
        %v1651 = vunpack.c.h.b16 %v1302
        %v1652 = vunpack.c.l.b16 %v1303
        %v1653 = vunpack.c.h.b16 %v1303
        %v1654 = vunpack.c.l.b16 %v1304
        %v1655 = vunpack.c.h.b16 %v1304
        %v1656 = vunpack.c.l.b16 %v1305
        %v1657 = vunpack.c.h.b16 %v1305
        %v1658 = vunpack.c.l.b16 %v1306
        %v1659 = vunpack.c.h.b16 %v1306
        %v1660 = vunpack.c.l.b16 %v1307
        %v1661 = vunpack.c.h.b16 %v1307
        %v1662 = vunpack.c.l.b16 %v1308
        %v1663 = vunpack.c.h.b16 %v1308
        %v1664 = vunpack.c.l.b16 %v1309
        %v1665 = vunpack.c.h.b16 %v1309
        %v1666 = vunpack.c.l.b16 %v1310
        %v1667 = vunpack.c.h.b16 %v1310
        %v1668 = vunpack.c.l.b16 %v1311
        %v1669 = vunpack.c.h.b16 %v1311
        %v1670 = vunpack.c.l.b16 %v1312
        %v1671 = vunpack.c.h.b16 %v1312
        %v1672 = vunpack.c.l.b16 %v1313
        %v1673 = vunpack.c.h.b16 %v1313
        %v1674 = vunpack.c.l.b16 %v1314
        %v1675 = vunpack.c.h.b16 %v1314
        %v1676 = vunpack.c.l.b16 %v1315
        %v1677 = vunpack.c.h.b16 %v1315
        %v1678 = vunpack.c.l.b16 %v1316
        %v1679 = vunpack.c.h.b16 %v1316
        %v1680 = vunpack.c.l.b16 %v1317
        %v1681 = vunpack.c.h.b16 %v1317
        %v1682 = vunpack.c.l.b16 %v1318
        %v1683 = vunpack.c.h.b16 %v1318
        %v1684 = vunpack.c.l.b16 %v1319
        %v1685 = vunpack.c.h.b16 %v1319
        %v1686 = vunpack.c.l.b16 %v1320
        %v1687 = vunpack.c.h.b16 %v1320
        %v1688 = vunpack.c.l.b16 %v1321
        %v1689 = vunpack.c.h.b16 %v1321
        %v1690 = vunpack.c.l.b16 %v1322
        %v1691 = vunpack.c.h.b16 %v1322
        %v1692 = vunpack.c.l.b16 %v1323
        %v1693 = vunpack.c.h.b16 %v1323
        %v1694 = vunpack.c.l.b16 %v1324
        %v1695 = vunpack.c.h.b16 %v1324
        %v1696 = vunpack.c.l.b16 %v1325
        %v1697 = vunpack.c.h.b16 %v1325
        %v1698 = vunpack.c.l.b16 %v1326
        %v1699 = vunpack.c.h.b16 %v1326
        %v1700 = vunpack.c.l.b16 %v1327
        %v1701 = vunpack.c.h.b16 %v1327
        %v1702 = vunpack.c.l.b16 %v1328
        %v1703 = vunpack.c.h.b16 %v1328
        %v1704 = vunpack.c.l.b16 %v1329
        %v1705 = vunpack.c.h.b16 %v1329
        %v1706 = vunpack.c.l.b16 %v1330
        %v1707 = vunpack.c.h.b16 %v1330
        %v1708 = vunpack.c.l.b16 %v1331
        %v1709 = vunpack.c.h.b16 %v1331
        %v1710 = vunpack.c.l.b16 %v1332
        %v1711 = vunpack.c.h.b16 %v1332
        %v1712 = vunpack.c.l.b16 %v1333
        %v1713 = vunpack.c.h.b16 %v1333
        %v1714 = vunpack.c.l.b16 %v1334
        %v1715 = vunpack.c.h.b16 %v1334
        %v1716 = vunpack.c.l.b16 %v1335
        %v1717 = vunpack.c.h.b16 %v1335
        %v1718 = vunpack.c.l.b16 %v1336
        %v1719 = vunpack.c.h.b16 %v1336
        %v1720 = vunpack.c.l.b16 %v1337
        %v1721 = vunpack.c.h.b16 %v1337
        %v1722 = vunpack.c.l.b16 %v1338
        %v1723 = vunpack.c.h.b16 %v1338
        %v1724 = vunpack.c.l.b16 %v1339
        %v1725 = vunpack.c.h.b16 %v1339
        %v1726 = vunpack.c.l.b16 %v1340
        %v1727 = vunpack.c.h.b16 %v1340
        %v1728 = vunpack.c.l.b16 %v1341
        %v1729 = vunpack.c.h.b16 %v1341
        %v1730 = vunpack.c.l.b16 %v1342
        %v1731 = vunpack.c.h.b16 %v1342
        %v1732 = vunpack.c.l.b16 %v1343
        %v1733 = vunpack.c.h.b16 %v1343
        %v1734 = vunpack.c.l.b16 %v1344
        %v1735 = vunpack.c.h.b16 %v1344
        %v1736 = vunpack.c.l.b16 %v1345
        %v1737 = vunpack.c.h.b16 %v1345
        %v1738 = vunpack.c.l.b16 %v1346
        %v1739 = vunpack.c.h.b16 %v1346
        %v1740 = vunpack.c.l.b16 %v1347
        %v1741 = vunpack.c.h.b16 %v1347
        %v1742 = vunpack.c.l.b16 %v1348
        %v1743 = vunpack.c.h.b16 %v1348
        %v1744 = vunpack.c.l.b16 %v1349
        %v1745 = vunpack.c.h.b16 %v1349
        %v1746 = vunpack.c.l.b16 %v1350
        %v1747 = vunpack.c.h.b16 %v1350
        %v1748 = vunpack.c.l.b16 %v1351
        %v1749 = vunpack.c.h.b16 %v1351
        %v1750 = vunpack.c.l.b16 %v1352
        %v1751 = vunpack.c.h.b16 %v1352
        %v1752 = vunpack.c.l.b16 %v1353
        %v1753 = vunpack.c.h.b16 %v1353
        %v1754 = vunpack.c.l.b16 %v1354
        %v1755 = vunpack.c.h.b16 %v1354
        %v1756 = vunpack.c.l.b16 %v1355
        %v1757 = vunpack.c.h.b16 %v1355
        %v1758 = vunpack.c.l.b16 %v1356
        %v1759 = vunpack.c.h.b16 %v1356
        %v1760 = vunpack.c.l.b16 %v1357
        %v1761 = vunpack.c.h.b16 %v1357
        %v1762 = vunpack.c.l.b16 %v1358
        %v1763 = vunpack.c.h.b16 %v1358
        %v1764 = vunpack.c.l.b16 %v1359
        %v1765 = vunpack.c.h.b16 %v1359
        %v1766 = vunpack.c.l.b16 %v1360
        %v1767 = vunpack.c.h.b16 %v1360
        %v1768 = vunpack.c.l.b16 %v1361
        %v1769 = vunpack.c.h.b16 %v1361
        %v1770 = vunpack.c.l.b16 %v1362
        %v1771 = vunpack.c.h.b16 %v1362
        %v1772 = vunpack.c.l.b16 %v1363
        %v1773 = vunpack.c.h.b16 %v1363
        %v1774 = vunpack.c.l.b16 %v1364
        %v1775 = vunpack.c.h.b16 %v1364
        %v1776 = vunpack.c.l.b16 %v1365
        %v1777 = vunpack.c.h.b16 %v1365
        %v1778 = vunpack.c.l.b16 %v1366
        %v1779 = vunpack.c.h.b16 %v1366
        %v1780 = vunpack.c.l.b16 %v1367
        %v1781 = vunpack.c.h.b16 %v1367
        %v1782 = vunpack.c.l.b16 %v1368
        %v1783 = vunpack.c.h.b16 %v1368
        %v1784 = vunpack.c.l.b16 %v1369
        %v1785 = vunpack.c.h.b16 %v1369
        %v1786 = vunpack.c.l.b16 %v1370
        %v1787 = vunpack.c.h.b16 %v1370
        %v1788 = vunpack.c.l.b16 %v1371
        %v1789 = vunpack.c.h.b16 %v1371
        %v1790 = vunpack.c.l.b16 %v1372
        %v1791 = vunpack.c.h.b16 %v1372
        %v1792 = vunpack.c.l.b16 %v1373
        %v1793 = vunpack.c.h.b16 %v1373
        %v1794 = vunpack.c.l.b16 %v1374
        %v1795 = vunpack.c.h.b16 %v1374
        %v1796 = vunpack.c.l.b16 %v1375
        %v1797 = vunpack.c.h.b16 %v1375
        %v1798 = vunpack.c.l.b16 %v1376
        %v1799 = vunpack.c.h.b16 %v1376
        %v1800 = vunpack.c.l.b16 %v1377
        %v1801 = vunpack.c.h.b16 %v1377
        %v1802 = vunpack.c.l.b16 %v1378
        %v1803 = vunpack.c.h.b16 %v1378
        %v1804 = vunpack.c.l.b16 %v1379
        %v1805 = vunpack.c.h.b16 %v1379
        %v1806 = vunpack.c.l.b16 %v1380
        %v1807 = vunpack.c.h.b16 %v1380
        %v1808 = vunpack.c.l.b16 %v1381
        %v1809 = vunpack.c.h.b16 %v1381
        %v1810 = vlaneseq
        %v1811 = vand.u32 %v1810, 127
        %v1812 = vlaneseq
        %v1813 = vshrl.u32 %v1812, 7
        %v1814 = vsub.s32 %v1811, %v1813
        %v1815 = vrot.slane %v1554, %v1814
        %v1816 = vadd.s32 %v1811, 4294967288
        %v1817 = vlaneseq
        %v1818 = vshrl.u32 %v1817, 7
        %v1819 = vsub.s32 %v1816, %v1818
        %v1820 = vrot.slane %v1555, %v1819
        %vm1821 = vcmask 130112
        %v1822 = vsel %vm1821, %v1820, %v1815
        %v1823 = vadd.s32 %v1811, 4294967280
        %v1824 = vlaneseq
        %v1825 = vshrl.u32 %v1824, 7
        %v1826 = vsub.s32 %v1823, %v1825
        %v1827 = vrot.slane %v1556, %v1826
        %vm1828 = vcmask 195712
        %v1829 = vsel %vm1828, %v1827, %v1822
        %v1830 = vadd.s32 %v1811, 4294967272
        %v1831 = vlaneseq
        %v1832 = vshrl.u32 %v1831, 7
        %v1833 = vsub.s32 %v1830, %v1832
        %v1834 = vrot.slane %v1557, %v1833
        %vm1835 = vcmask 261312
        %v1836 = vsel %vm1835, %v1834, %v1829
        %v1837 = vadd.s32 %v1811, 4294967264
        %v1838 = vlaneseq
        %v1839 = vshrl.u32 %v1838, 7
        %v1840 = vsub.s32 %v1837, %v1839
        %v1841 = vrot.slane %v1558, %v1840
        %vm1842 = vcmask 326912
        %v1843 = vsel %vm1842, %v1841, %v1836
        %v1844 = vadd.s32 %v1811, 4294967256
        %v1845 = vlaneseq
        %v1846 = vshrl.u32 %v1845, 7
        %v1847 = vsub.s32 %v1844, %v1846
        %v1848 = vrot.slane %v1559, %v1847
        %vm1849 = vcmask 392512
        %v1850 = vsel %vm1849, %v1848, %v1843
        %v1851 = vadd.s32 %v1811, 4294967248
        %v1852 = vlaneseq
        %v1853 = vshrl.u32 %v1852, 7
        %v1854 = vsub.s32 %v1851, %v1853
        %v1855 = vrot.slane %v1560, %v1854
        %vm1856 = vcmask 458112
        %v1857 = vsel %vm1856, %v1855, %v1850
        %v1858 = vadd.s32 %v1811, 4294967240
        %v1859 = vlaneseq
        %v1860 = vshrl.u32 %v1859, 7
        %v1861 = vsub.s32 %v1858, %v1860
        %v1862 = vrot.slane %v1561, %v1861
        %vm1863 = vcmask 523712
        %v1864 = vsel %vm1863, %v1862, %v1857
        %v1865 = vadd.s32 %v1811, 4294967232
        %v1866 = vlaneseq
        %v1867 = vshrl.u32 %v1866, 7
        %v1868 = vsub.s32 %v1865, %v1867
        %v1869 = vrot.slane %v1562, %v1868
        %vm1870 = vcmask 589312
        %v1871 = vsel %vm1870, %v1869, %v1864
        %v1872 = vadd.s32 %v1811, 4294967224
        %v1873 = vlaneseq
        %v1874 = vshrl.u32 %v1873, 7
        %v1875 = vsub.s32 %v1872, %v1874
        %v1876 = vrot.slane %v1563, %v1875
        %vm1877 = vcmask 654912
        %v1878 = vsel %vm1877, %v1876, %v1871
        %v1879 = vadd.s32 %v1811, 4294967216
        %v1880 = vlaneseq
        %v1881 = vshrl.u32 %v1880, 7
        %v1882 = vsub.s32 %v1879, %v1881
        %v1883 = vrot.slane %v1564, %v1882
        %vm1884 = vcmask 720512
        %v1885 = vsel %vm1884, %v1883, %v1878
        %v1886 = vadd.s32 %v1811, 4294967208
        %v1887 = vlaneseq
        %v1888 = vshrl.u32 %v1887, 7
        %v1889 = vsub.s32 %v1886, %v1888
        %v1890 = vrot.slane %v1565, %v1889
        %vm1891 = vcmask 786112
        %v1892 = vsel %vm1891, %v1890, %v1885
        %v1893 = vadd.s32 %v1811, 4294967200
        %v1894 = vlaneseq
        %v1895 = vshrl.u32 %v1894, 7
        %v1896 = vsub.s32 %v1893, %v1895
        %v1897 = vrot.slane %v1566, %v1896
        %vm1898 = vcmask 851712
        %v1899 = vsel %vm1898, %v1897, %v1892
        %v1900 = vadd.s32 %v1811, 4294967192
        %v1901 = vlaneseq
        %v1902 = vshrl.u32 %v1901, 7
        %v1903 = vsub.s32 %v1900, %v1902
        %v1904 = vrot.slane %v1567, %v1903
        %vm1905 = vcmask 917312
        %v1906 = vsel %vm1905, %v1904, %v1899
        %v1907 = vadd.s32 %v1811, 4294967184
        %v1908 = vlaneseq
        %v1909 = vshrl.u32 %v1908, 7
        %v1910 = vsub.s32 %v1907, %v1909
        %v1911 = vrot.slane %v1568, %v1910
        %vm1912 = vcmask 982912
        %v1913 = vsel %vm1912, %v1911, %v1906
        %v1914 = vadd.s32 %v1811, 4294967176
        %v1915 = vlaneseq
        %v1916 = vshrl.u32 %v1915, 7
        %v1917 = vsub.s32 %v1914, %v1916
        %v1918 = vrot.slane %v1569, %v1917
        %vm1919 = vcmask 1048512
        %v1920 = vsel %vm1919, %v1918, %v1913
        %v1921 = vlaneseq
        %v1922 = vshrl.u32 %v1921, 7
        %v1923 = vsub.s32 %v1811, %v1922
        %v1924 = vrot.slane %v1570, %v1923
        %v1925 = vlaneseq
        %v1926 = vshrl.u32 %v1925, 7
        %v1927 = vsub.s32 %v1816, %v1926
        %v1928 = vrot.slane %v1571, %v1927
        %v1929 = vsel %vm1821, %v1928, %v1924
        %v1930 = vlaneseq
        %v1931 = vshrl.u32 %v1930, 7
        %v1932 = vsub.s32 %v1823, %v1931
        %v1933 = vrot.slane %v1572, %v1932
        %v1934 = vsel %vm1828, %v1933, %v1929
        %v1935 = vlaneseq
        %v1936 = vshrl.u32 %v1935, 7
        %v1937 = vsub.s32 %v1830, %v1936
        %v1938 = vrot.slane %v1573, %v1937
        %v1939 = vsel %vm1835, %v1938, %v1934
        %v1940 = vlaneseq
        %v1941 = vshrl.u32 %v1940, 7
        %v1942 = vsub.s32 %v1837, %v1941
        %v1943 = vrot.slane %v1574, %v1942
        %v1944 = vsel %vm1842, %v1943, %v1939
        %v1945 = vlaneseq
        %v1946 = vshrl.u32 %v1945, 7
        %v1947 = vsub.s32 %v1844, %v1946
        %v1948 = vrot.slane %v1575, %v1947
        %v1949 = vsel %vm1849, %v1948, %v1944
        %v1950 = vlaneseq
        %v1951 = vshrl.u32 %v1950, 7
        %v1952 = vsub.s32 %v1851, %v1951
        %v1953 = vrot.slane %v1576, %v1952
        %v1954 = vsel %vm1856, %v1953, %v1949
        %v1955 = vlaneseq
        %v1956 = vshrl.u32 %v1955, 7
        %v1957 = vsub.s32 %v1858, %v1956
        %v1958 = vrot.slane %v1577, %v1957
        %v1959 = vsel %vm1863, %v1958, %v1954
        %v1960 = vlaneseq
        %v1961 = vshrl.u32 %v1960, 7
        %v1962 = vsub.s32 %v1865, %v1961
        %v1963 = vrot.slane %v1578, %v1962
        %v1964 = vsel %vm1870, %v1963, %v1959
        %v1965 = vlaneseq
        %v1966 = vshrl.u32 %v1965, 7
        %v1967 = vsub.s32 %v1872, %v1966
        %v1968 = vrot.slane %v1579, %v1967
        %v1969 = vsel %vm1877, %v1968, %v1964
        %v1970 = vlaneseq
        %v1971 = vshrl.u32 %v1970, 7
        %v1972 = vsub.s32 %v1879, %v1971
        %v1973 = vrot.slane %v1580, %v1972
        %v1974 = vsel %vm1884, %v1973, %v1969
        %v1975 = vlaneseq
        %v1976 = vshrl.u32 %v1975, 7
        %v1977 = vsub.s32 %v1886, %v1976
        %v1978 = vrot.slane %v1581, %v1977
        %v1979 = vsel %vm1891, %v1978, %v1974
        %v1980 = vlaneseq
        %v1981 = vshrl.u32 %v1980, 7
        %v1982 = vsub.s32 %v1893, %v1981
        %v1983 = vrot.slane %v1582, %v1982
        %v1984 = vsel %vm1898, %v1983, %v1979
        %v1985 = vlaneseq
        %v1986 = vshrl.u32 %v1985, 7
        %v1987 = vsub.s32 %v1900, %v1986
        %v1988 = vrot.slane %v1583, %v1987
        %v1989 = vsel %vm1905, %v1988, %v1984
        %v1990 = vlaneseq
        %v1991 = vshrl.u32 %v1990, 7
        %v1992 = vsub.s32 %v1907, %v1991
        %v1993 = vrot.slane %v1584, %v1992
        %v1994 = vsel %vm1912, %v1993, %v1989
        %v1995 = vlaneseq
        %v1996 = vshrl.u32 %v1995, 7
        %v1997 = vsub.s32 %v1914, %v1996
        %v1998 = vrot.slane %v1585, %v1997
        %v1999 = vsel %vm1919, %v1998, %v1994
        %v2000 = vlaneseq
        %v2001 = vshrl.u32 %v2000, 7
        %v2002 = vsub.s32 %v1811, %v2001
        %v2003 = vrot.slane %v1586, %v2002
        %v2004 = vlaneseq
        %v2005 = vshrl.u32 %v2004, 7
        %v2006 = vsub.s32 %v1816, %v2005
        %v2007 = vrot.slane %v1587, %v2006
        %v2008 = vsel %vm1821, %v2007, %v2003
        %v2009 = vlaneseq
        %v2010 = vshrl.u32 %v2009, 7
        %v2011 = vsub.s32 %v1823, %v2010
        %v2012 = vrot.slane %v1588, %v2011
        %v2013 = vsel %vm1828, %v2012, %v2008
        %v2014 = vlaneseq
        %v2015 = vshrl.u32 %v2014, 7
        %v2016 = vsub.s32 %v1830, %v2015
        %v2017 = vrot.slane %v1589, %v2016
        %v2018 = vsel %vm1835, %v2017, %v2013
        %v2019 = vlaneseq
        %v2020 = vshrl.u32 %v2019, 7
        %v2021 = vsub.s32 %v1837, %v2020
        %v2022 = vrot.slane %v1590, %v2021
        %v2023 = vsel %vm1842, %v2022, %v2018
        %v2024 = vlaneseq
        %v2025 = vshrl.u32 %v2024, 7
        %v2026 = vsub.s32 %v1844, %v2025
        %v2027 = vrot.slane %v1591, %v2026
        %v2028 = vsel %vm1849, %v2027, %v2023
        %v2029 = vlaneseq
        %v2030 = vshrl.u32 %v2029, 7
        %v2031 = vsub.s32 %v1851, %v2030
        %v2032 = vrot.slane %v1592, %v2031
        %v2033 = vsel %vm1856, %v2032, %v2028
        %v2034 = vlaneseq
        %v2035 = vshrl.u32 %v2034, 7
        %v2036 = vsub.s32 %v1858, %v2035
        %v2037 = vrot.slane %v1593, %v2036
        %v2038 = vsel %vm1863, %v2037, %v2033
        %v2039 = vlaneseq
        %v2040 = vshrl.u32 %v2039, 7
        %v2041 = vsub.s32 %v1865, %v2040
        %v2042 = vrot.slane %v1594, %v2041
        %v2043 = vsel %vm1870, %v2042, %v2038
        %v2044 = vlaneseq
        %v2045 = vshrl.u32 %v2044, 7
        %v2046 = vsub.s32 %v1872, %v2045
        %v2047 = vrot.slane %v1595, %v2046
        %v2048 = vsel %vm1877, %v2047, %v2043
        %v2049 = vlaneseq
        %v2050 = vshrl.u32 %v2049, 7
        %v2051 = vsub.s32 %v1879, %v2050
        %v2052 = vrot.slane %v1596, %v2051
        %v2053 = vsel %vm1884, %v2052, %v2048
        %v2054 = vlaneseq
        %v2055 = vshrl.u32 %v2054, 7
        %v2056 = vsub.s32 %v1886, %v2055
        %v2057 = vrot.slane %v1597, %v2056
        %v2058 = vsel %vm1891, %v2057, %v2053
        %v2059 = vlaneseq
        %v2060 = vshrl.u32 %v2059, 7
        %v2061 = vsub.s32 %v1893, %v2060
        %v2062 = vrot.slane %v1598, %v2061
        %v2063 = vsel %vm1898, %v2062, %v2058
        %v2064 = vlaneseq
        %v2065 = vshrl.u32 %v2064, 7
        %v2066 = vsub.s32 %v1900, %v2065
        %v2067 = vrot.slane %v1599, %v2066
        %v2068 = vsel %vm1905, %v2067, %v2063
        %v2069 = vlaneseq
        %v2070 = vshrl.u32 %v2069, 7
        %v2071 = vsub.s32 %v1907, %v2070
        %v2072 = vrot.slane %v1600, %v2071
        %v2073 = vsel %vm1912, %v2072, %v2068
        %v2074 = vlaneseq
        %v2075 = vshrl.u32 %v2074, 7
        %v2076 = vsub.s32 %v1914, %v2075
        %v2077 = vrot.slane %v1601, %v2076
        %v2078 = vsel %vm1919, %v2077, %v2073
        %v2079 = vlaneseq
        %v2080 = vshrl.u32 %v2079, 7
        %v2081 = vsub.s32 %v1811, %v2080
        %v2082 = vrot.slane %v1602, %v2081
        %v2083 = vlaneseq
        %v2084 = vshrl.u32 %v2083, 7
        %v2085 = vsub.s32 %v1816, %v2084
        %v2086 = vrot.slane %v1603, %v2085
        %v2087 = vsel %vm1821, %v2086, %v2082
        %v2088 = vlaneseq
        %v2089 = vshrl.u32 %v2088, 7
        %v2090 = vsub.s32 %v1823, %v2089
        %v2091 = vrot.slane %v1604, %v2090
        %v2092 = vsel %vm1828, %v2091, %v2087
        %v2093 = vlaneseq
        %v2094 = vshrl.u32 %v2093, 7
        %v2095 = vsub.s32 %v1830, %v2094
        %v2096 = vrot.slane %v1605, %v2095
        %v2097 = vsel %vm1835, %v2096, %v2092
        %v2098 = vlaneseq
        %v2099 = vshrl.u32 %v2098, 7
        %v2100 = vsub.s32 %v1837, %v2099
        %v2101 = vrot.slane %v1606, %v2100
        %v2102 = vsel %vm1842, %v2101, %v2097
        %v2103 = vlaneseq
        %v2104 = vshrl.u32 %v2103, 7
        %v2105 = vsub.s32 %v1844, %v2104
        %v2106 = vrot.slane %v1607, %v2105
        %v2107 = vsel %vm1849, %v2106, %v2102
        %v2108 = vlaneseq
        %v2109 = vshrl.u32 %v2108, 7
        %v2110 = vsub.s32 %v1851, %v2109
        %v2111 = vrot.slane %v1608, %v2110
        %v2112 = vsel %vm1856, %v2111, %v2107
        %v2113 = vlaneseq
        %v2114 = vshrl.u32 %v2113, 7
        %v2115 = vsub.s32 %v1858, %v2114
        %v2116 = vrot.slane %v1609, %v2115
        %v2117 = vsel %vm1863, %v2116, %v2112
        %v2118 = vlaneseq
        %v2119 = vshrl.u32 %v2118, 7
        %v2120 = vsub.s32 %v1865, %v2119
        %v2121 = vrot.slane %v1610, %v2120
        %v2122 = vsel %vm1870, %v2121, %v2117
        %v2123 = vlaneseq
        %v2124 = vshrl.u32 %v2123, 7
        %v2125 = vsub.s32 %v1872, %v2124
        %v2126 = vrot.slane %v1611, %v2125
        %v2127 = vsel %vm1877, %v2126, %v2122
        %v2128 = vlaneseq
        %v2129 = vshrl.u32 %v2128, 7
        %v2130 = vsub.s32 %v1879, %v2129
        %v2131 = vrot.slane %v1612, %v2130
        %v2132 = vsel %vm1884, %v2131, %v2127
        %v2133 = vlaneseq
        %v2134 = vshrl.u32 %v2133, 7
        %v2135 = vsub.s32 %v1886, %v2134
        %v2136 = vrot.slane %v1613, %v2135
        %v2137 = vsel %vm1891, %v2136, %v2132
        %v2138 = vlaneseq
        %v2139 = vshrl.u32 %v2138, 7
        %v2140 = vsub.s32 %v1893, %v2139
        %v2141 = vrot.slane %v1614, %v2140
        %v2142 = vsel %vm1898, %v2141, %v2137
        %v2143 = vlaneseq
        %v2144 = vshrl.u32 %v2143, 7
        %v2145 = vsub.s32 %v1900, %v2144
        %v2146 = vrot.slane %v1615, %v2145
        %v2147 = vsel %vm1905, %v2146, %v2142
        %v2148 = vlaneseq
        %v2149 = vshrl.u32 %v2148, 7
        %v2150 = vsub.s32 %v1907, %v2149
        %v2151 = vrot.slane %v1616, %v2150
        %v2152 = vsel %vm1912, %v2151, %v2147
        %v2153 = vlaneseq
        %v2154 = vshrl.u32 %v2153, 7
        %v2155 = vsub.s32 %v1914, %v2154
        %v2156 = vrot.slane %v1617, %v2155
        %v2157 = vsel %vm1919, %v2156, %v2152
        %v2158 = vlaneseq
        %v2159 = vshrl.u32 %v2158, 7
        %v2160 = vsub.s32 %v1811, %v2159
        %v2161 = vrot.slane %v1618, %v2160
        %v2162 = vlaneseq
        %v2163 = vshrl.u32 %v2162, 7
        %v2164 = vsub.s32 %v1816, %v2163
        %v2165 = vrot.slane %v1619, %v2164
        %v2166 = vsel %vm1821, %v2165, %v2161
        %v2167 = vlaneseq
        %v2168 = vshrl.u32 %v2167, 7
        %v2169 = vsub.s32 %v1823, %v2168
        %v2170 = vrot.slane %v1620, %v2169
        %v2171 = vsel %vm1828, %v2170, %v2166
        %v2172 = vlaneseq
        %v2173 = vshrl.u32 %v2172, 7
        %v2174 = vsub.s32 %v1830, %v2173
        %v2175 = vrot.slane %v1621, %v2174
        %v2176 = vsel %vm1835, %v2175, %v2171
        %v2177 = vlaneseq
        %v2178 = vshrl.u32 %v2177, 7
        %v2179 = vsub.s32 %v1837, %v2178
        %v2180 = vrot.slane %v1622, %v2179
        %v2181 = vsel %vm1842, %v2180, %v2176
        %v2182 = vlaneseq
        %v2183 = vshrl.u32 %v2182, 7
        %v2184 = vsub.s32 %v1844, %v2183
        %v2185 = vrot.slane %v1623, %v2184
        %v2186 = vsel %vm1849, %v2185, %v2181
        %v2187 = vlaneseq
        %v2188 = vshrl.u32 %v2187, 7
        %v2189 = vsub.s32 %v1851, %v2188
        %v2190 = vrot.slane %v1624, %v2189
        %v2191 = vsel %vm1856, %v2190, %v2186
        %v2192 = vlaneseq
        %v2193 = vshrl.u32 %v2192, 7
        %v2194 = vsub.s32 %v1858, %v2193
        %v2195 = vrot.slane %v1625, %v2194
        %v2196 = vsel %vm1863, %v2195, %v2191
        %v2197 = vlaneseq
        %v2198 = vshrl.u32 %v2197, 7
        %v2199 = vsub.s32 %v1865, %v2198
        %v2200 = vrot.slane %v1626, %v2199
        %v2201 = vsel %vm1870, %v2200, %v2196
        %v2202 = vlaneseq
        %v2203 = vshrl.u32 %v2202, 7
        %v2204 = vsub.s32 %v1872, %v2203
        %v2205 = vrot.slane %v1627, %v2204
        %v2206 = vsel %vm1877, %v2205, %v2201
        %v2207 = vlaneseq
        %v2208 = vshrl.u32 %v2207, 7
        %v2209 = vsub.s32 %v1879, %v2208
        %v2210 = vrot.slane %v1628, %v2209
        %v2211 = vsel %vm1884, %v2210, %v2206
        %v2212 = vlaneseq
        %v2213 = vshrl.u32 %v2212, 7
        %v2214 = vsub.s32 %v1886, %v2213
        %v2215 = vrot.slane %v1629, %v2214
        %v2216 = vsel %vm1891, %v2215, %v2211
        %v2217 = vlaneseq
        %v2218 = vshrl.u32 %v2217, 7
        %v2219 = vsub.s32 %v1893, %v2218
        %v2220 = vrot.slane %v1630, %v2219
        %v2221 = vsel %vm1898, %v2220, %v2216
        %v2222 = vlaneseq
        %v2223 = vshrl.u32 %v2222, 7
        %v2224 = vsub.s32 %v1900, %v2223
        %v2225 = vrot.slane %v1631, %v2224
        %v2226 = vsel %vm1905, %v2225, %v2221
        %v2227 = vlaneseq
        %v2228 = vshrl.u32 %v2227, 7
        %v2229 = vsub.s32 %v1907, %v2228
        %v2230 = vrot.slane %v1632, %v2229
        %v2231 = vsel %vm1912, %v2230, %v2226
        %v2232 = vlaneseq
        %v2233 = vshrl.u32 %v2232, 7
        %v2234 = vsub.s32 %v1914, %v2233
        %v2235 = vrot.slane %v1633, %v2234
        %v2236 = vsel %vm1919, %v2235, %v2231
        %v2237 = vlaneseq
        %v2238 = vshrl.u32 %v2237, 7
        %v2239 = vsub.s32 %v1811, %v2238
        %v2240 = vrot.slane %v1634, %v2239
        %v2241 = vlaneseq
        %v2242 = vshrl.u32 %v2241, 7
        %v2243 = vsub.s32 %v1816, %v2242
        %v2244 = vrot.slane %v1635, %v2243
        %v2245 = vsel %vm1821, %v2244, %v2240
        %v2246 = vlaneseq
        %v2247 = vshrl.u32 %v2246, 7
        %v2248 = vsub.s32 %v1823, %v2247
        %v2249 = vrot.slane %v1636, %v2248
        %v2250 = vsel %vm1828, %v2249, %v2245
        %v2251 = vlaneseq
        %v2252 = vshrl.u32 %v2251, 7
        %v2253 = vsub.s32 %v1830, %v2252
        %v2254 = vrot.slane %v1637, %v2253
        %v2255 = vsel %vm1835, %v2254, %v2250
        %v2256 = vlaneseq
        %v2257 = vshrl.u32 %v2256, 7
        %v2258 = vsub.s32 %v1837, %v2257
        %v2259 = vrot.slane %v1638, %v2258
        %v2260 = vsel %vm1842, %v2259, %v2255
        %v2261 = vlaneseq
        %v2262 = vshrl.u32 %v2261, 7
        %v2263 = vsub.s32 %v1844, %v2262
        %v2264 = vrot.slane %v1639, %v2263
        %v2265 = vsel %vm1849, %v2264, %v2260
        %v2266 = vlaneseq
        %v2267 = vshrl.u32 %v2266, 7
        %v2268 = vsub.s32 %v1851, %v2267
        %v2269 = vrot.slane %v1640, %v2268
        %v2270 = vsel %vm1856, %v2269, %v2265
        %v2271 = vlaneseq
        %v2272 = vshrl.u32 %v2271, 7
        %v2273 = vsub.s32 %v1858, %v2272
        %v2274 = vrot.slane %v1641, %v2273
        %v2275 = vsel %vm1863, %v2274, %v2270
        %v2276 = vlaneseq
        %v2277 = vshrl.u32 %v2276, 7
        %v2278 = vsub.s32 %v1865, %v2277
        %v2279 = vrot.slane %v1642, %v2278
        %v2280 = vsel %vm1870, %v2279, %v2275
        %v2281 = vlaneseq
        %v2282 = vshrl.u32 %v2281, 7
        %v2283 = vsub.s32 %v1872, %v2282
        %v2284 = vrot.slane %v1643, %v2283
        %v2285 = vsel %vm1877, %v2284, %v2280
        %v2286 = vlaneseq
        %v2287 = vshrl.u32 %v2286, 7
        %v2288 = vsub.s32 %v1879, %v2287
        %v2289 = vrot.slane %v1644, %v2288
        %v2290 = vsel %vm1884, %v2289, %v2285
        %v2291 = vlaneseq
        %v2292 = vshrl.u32 %v2291, 7
        %v2293 = vsub.s32 %v1886, %v2292
        %v2294 = vrot.slane %v1645, %v2293
        %v2295 = vsel %vm1891, %v2294, %v2290
        %v2296 = vlaneseq
        %v2297 = vshrl.u32 %v2296, 7
        %v2298 = vsub.s32 %v1893, %v2297
        %v2299 = vrot.slane %v1646, %v2298
        %v2300 = vsel %vm1898, %v2299, %v2295
        %v2301 = vlaneseq
        %v2302 = vshrl.u32 %v2301, 7
        %v2303 = vsub.s32 %v1900, %v2302
        %v2304 = vrot.slane %v1647, %v2303
        %v2305 = vsel %vm1905, %v2304, %v2300
        %v2306 = vlaneseq
        %v2307 = vshrl.u32 %v2306, 7
        %v2308 = vsub.s32 %v1907, %v2307
        %v2309 = vrot.slane %v1648, %v2308
        %v2310 = vsel %vm1912, %v2309, %v2305
        %v2311 = vlaneseq
        %v2312 = vshrl.u32 %v2311, 7
        %v2313 = vsub.s32 %v1914, %v2312
        %v2314 = vrot.slane %v1649, %v2313
        %v2315 = vsel %vm1919, %v2314, %v2310
        %v2316 = vlaneseq
        %v2317 = vshrl.u32 %v2316, 7
        %v2318 = vsub.s32 %v1811, %v2317
        %v2319 = vrot.slane %v1650, %v2318
        %v2320 = vlaneseq
        %v2321 = vshrl.u32 %v2320, 7
        %v2322 = vsub.s32 %v1816, %v2321
        %v2323 = vrot.slane %v1651, %v2322
        %v2324 = vsel %vm1821, %v2323, %v2319
        %v2325 = vlaneseq
        %v2326 = vshrl.u32 %v2325, 7
        %v2327 = vsub.s32 %v1823, %v2326
        %v2328 = vrot.slane %v1652, %v2327
        %v2329 = vsel %vm1828, %v2328, %v2324
        %v2330 = vlaneseq
        %v2331 = vshrl.u32 %v2330, 7
        %v2332 = vsub.s32 %v1830, %v2331
        %v2333 = vrot.slane %v1653, %v2332
        %v2334 = vsel %vm1835, %v2333, %v2329
        %v2335 = vlaneseq
        %v2336 = vshrl.u32 %v2335, 7
        %v2337 = vsub.s32 %v1837, %v2336
        %v2338 = vrot.slane %v1654, %v2337
        %v2339 = vsel %vm1842, %v2338, %v2334
        %v2340 = vlaneseq
        %v2341 = vshrl.u32 %v2340, 7
        %v2342 = vsub.s32 %v1844, %v2341
        %v2343 = vrot.slane %v1655, %v2342
        %v2344 = vsel %vm1849, %v2343, %v2339
        %v2345 = vlaneseq
        %v2346 = vshrl.u32 %v2345, 7
        %v2347 = vsub.s32 %v1851, %v2346
        %v2348 = vrot.slane %v1656, %v2347
        %v2349 = vsel %vm1856, %v2348, %v2344
        %v2350 = vlaneseq
        %v2351 = vshrl.u32 %v2350, 7
        %v2352 = vsub.s32 %v1858, %v2351
        %v2353 = vrot.slane %v1657, %v2352
        %v2354 = vsel %vm1863, %v2353, %v2349
        %v2355 = vlaneseq
        %v2356 = vshrl.u32 %v2355, 7
        %v2357 = vsub.s32 %v1865, %v2356
        %v2358 = vrot.slane %v1658, %v2357
        %v2359 = vsel %vm1870, %v2358, %v2354
        %v2360 = vlaneseq
        %v2361 = vshrl.u32 %v2360, 7
        %v2362 = vsub.s32 %v1872, %v2361
        %v2363 = vrot.slane %v1659, %v2362
        %v2364 = vsel %vm1877, %v2363, %v2359
        %v2365 = vlaneseq
        %v2366 = vshrl.u32 %v2365, 7
        %v2367 = vsub.s32 %v1879, %v2366
        %v2368 = vrot.slane %v1660, %v2367
        %v2369 = vsel %vm1884, %v2368, %v2364
        %v2370 = vlaneseq
        %v2371 = vshrl.u32 %v2370, 7
        %v2372 = vsub.s32 %v1886, %v2371
        %v2373 = vrot.slane %v1661, %v2372
        %v2374 = vsel %vm1891, %v2373, %v2369
        %v2375 = vlaneseq
        %v2376 = vshrl.u32 %v2375, 7
        %v2377 = vsub.s32 %v1893, %v2376
        %v2378 = vrot.slane %v1662, %v2377
        %v2379 = vsel %vm1898, %v2378, %v2374
        %v2380 = vlaneseq
        %v2381 = vshrl.u32 %v2380, 7
        %v2382 = vsub.s32 %v1900, %v2381
        %v2383 = vrot.slane %v1663, %v2382
        %v2384 = vsel %vm1905, %v2383, %v2379
        %v2385 = vlaneseq
        %v2386 = vshrl.u32 %v2385, 7
        %v2387 = vsub.s32 %v1907, %v2386
        %v2388 = vrot.slane %v1664, %v2387
        %v2389 = vsel %vm1912, %v2388, %v2384
        %v2390 = vlaneseq
        %v2391 = vshrl.u32 %v2390, 7
        %v2392 = vsub.s32 %v1914, %v2391
        %v2393 = vrot.slane %v1665, %v2392
        %v2394 = vsel %vm1919, %v2393, %v2389
        %v2395 = vlaneseq
        %v2396 = vshrl.u32 %v2395, 7
        %v2397 = vsub.s32 %v1811, %v2396
        %v2398 = vrot.slane %v1666, %v2397
        %v2399 = vlaneseq
        %v2400 = vshrl.u32 %v2399, 7
        %v2401 = vsub.s32 %v1816, %v2400
        %v2402 = vrot.slane %v1667, %v2401
        %v2403 = vsel %vm1821, %v2402, %v2398
        %v2404 = vlaneseq
        %v2405 = vshrl.u32 %v2404, 7
        %v2406 = vsub.s32 %v1823, %v2405
        %v2407 = vrot.slane %v1668, %v2406
        %v2408 = vsel %vm1828, %v2407, %v2403
        %v2409 = vlaneseq
        %v2410 = vshrl.u32 %v2409, 7
        %v2411 = vsub.s32 %v1830, %v2410
        %v2412 = vrot.slane %v1669, %v2411
        %v2413 = vsel %vm1835, %v2412, %v2408
        %v2414 = vlaneseq
        %v2415 = vshrl.u32 %v2414, 7
        %v2416 = vsub.s32 %v1837, %v2415
        %v2417 = vrot.slane %v1670, %v2416
        %v2418 = vsel %vm1842, %v2417, %v2413
        %v2419 = vlaneseq
        %v2420 = vshrl.u32 %v2419, 7
        %v2421 = vsub.s32 %v1844, %v2420
        %v2422 = vrot.slane %v1671, %v2421
        %v2423 = vsel %vm1849, %v2422, %v2418
        %v2424 = vlaneseq
        %v2425 = vshrl.u32 %v2424, 7
        %v2426 = vsub.s32 %v1851, %v2425
        %v2427 = vrot.slane %v1672, %v2426
        %v2428 = vsel %vm1856, %v2427, %v2423
        %v2429 = vlaneseq
        %v2430 = vshrl.u32 %v2429, 7
        %v2431 = vsub.s32 %v1858, %v2430
        %v2432 = vrot.slane %v1673, %v2431
        %v2433 = vsel %vm1863, %v2432, %v2428
        %v2434 = vlaneseq
        %v2435 = vshrl.u32 %v2434, 7
        %v2436 = vsub.s32 %v1865, %v2435
        %v2437 = vrot.slane %v1674, %v2436
        %v2438 = vsel %vm1870, %v2437, %v2433
        %v2439 = vlaneseq
        %v2440 = vshrl.u32 %v2439, 7
        %v2441 = vsub.s32 %v1872, %v2440
        %v2442 = vrot.slane %v1675, %v2441
        %v2443 = vsel %vm1877, %v2442, %v2438
        %v2444 = vlaneseq
        %v2445 = vshrl.u32 %v2444, 7
        %v2446 = vsub.s32 %v1879, %v2445
        %v2447 = vrot.slane %v1676, %v2446
        %v2448 = vsel %vm1884, %v2447, %v2443
        %v2449 = vlaneseq
        %v2450 = vshrl.u32 %v2449, 7
        %v2451 = vsub.s32 %v1886, %v2450
        %v2452 = vrot.slane %v1677, %v2451
        %v2453 = vsel %vm1891, %v2452, %v2448
        %v2454 = vlaneseq
        %v2455 = vshrl.u32 %v2454, 7
        %v2456 = vsub.s32 %v1893, %v2455
        %v2457 = vrot.slane %v1678, %v2456
        %v2458 = vsel %vm1898, %v2457, %v2453
        %v2459 = vlaneseq
        %v2460 = vshrl.u32 %v2459, 7
        %v2461 = vsub.s32 %v1900, %v2460
        %v2462 = vrot.slane %v1679, %v2461
        %v2463 = vsel %vm1905, %v2462, %v2458
        %v2464 = vlaneseq
        %v2465 = vshrl.u32 %v2464, 7
        %v2466 = vsub.s32 %v1907, %v2465
        %v2467 = vrot.slane %v1680, %v2466
        %v2468 = vsel %vm1912, %v2467, %v2463
        %v2469 = vlaneseq
        %v2470 = vshrl.u32 %v2469, 7
        %v2471 = vsub.s32 %v1914, %v2470
        %v2472 = vrot.slane %v1681, %v2471
        %v2473 = vsel %vm1919, %v2472, %v2468
        %v2474 = vlaneseq
        %v2475 = vshrl.u32 %v2474, 7
        %v2476 = vsub.s32 %v1811, %v2475
        %v2477 = vrot.slane %v1682, %v2476
        %v2478 = vlaneseq
        %v2479 = vshrl.u32 %v2478, 7
        %v2480 = vsub.s32 %v1816, %v2479
        %v2481 = vrot.slane %v1683, %v2480
        %v2482 = vsel %vm1821, %v2481, %v2477
        %v2483 = vlaneseq
        %v2484 = vshrl.u32 %v2483, 7
        %v2485 = vsub.s32 %v1823, %v2484
        %v2486 = vrot.slane %v1684, %v2485
        %v2487 = vsel %vm1828, %v2486, %v2482
        %v2488 = vlaneseq
        %v2489 = vshrl.u32 %v2488, 7
        %v2490 = vsub.s32 %v1830, %v2489
        %v2491 = vrot.slane %v1685, %v2490
        %v2492 = vsel %vm1835, %v2491, %v2487
        %v2493 = vlaneseq
        %v2494 = vshrl.u32 %v2493, 7
        %v2495 = vsub.s32 %v1837, %v2494
        %v2496 = vrot.slane %v1686, %v2495
        %v2497 = vsel %vm1842, %v2496, %v2492
        %v2498 = vlaneseq
        %v2499 = vshrl.u32 %v2498, 7
        %v2500 = vsub.s32 %v1844, %v2499
        %v2501 = vrot.slane %v1687, %v2500
        %v2502 = vsel %vm1849, %v2501, %v2497
        %v2503 = vlaneseq
        %v2504 = vshrl.u32 %v2503, 7
        %v2505 = vsub.s32 %v1851, %v2504
        %v2506 = vrot.slane %v1688, %v2505
        %v2507 = vsel %vm1856, %v2506, %v2502
        %v2508 = vlaneseq
        %v2509 = vshrl.u32 %v2508, 7
        %v2510 = vsub.s32 %v1858, %v2509
        %v2511 = vrot.slane %v1689, %v2510
        %v2512 = vsel %vm1863, %v2511, %v2507
        %v2513 = vlaneseq
        %v2514 = vshrl.u32 %v2513, 7
        %v2515 = vsub.s32 %v1865, %v2514
        %v2516 = vrot.slane %v1690, %v2515
        %v2517 = vsel %vm1870, %v2516, %v2512
        %v2518 = vlaneseq
        %v2519 = vshrl.u32 %v2518, 7
        %v2520 = vsub.s32 %v1872, %v2519
        %v2521 = vrot.slane %v1691, %v2520
        %v2522 = vsel %vm1877, %v2521, %v2517
        %v2523 = vlaneseq
        %v2524 = vshrl.u32 %v2523, 7
        %v2525 = vsub.s32 %v1879, %v2524
        %v2526 = vrot.slane %v1692, %v2525
        %v2527 = vsel %vm1884, %v2526, %v2522
        %v2528 = vlaneseq
        %v2529 = vshrl.u32 %v2528, 7
        %v2530 = vsub.s32 %v1886, %v2529
        %v2531 = vrot.slane %v1693, %v2530
        %v2532 = vsel %vm1891, %v2531, %v2527
        %v2533 = vlaneseq
        %v2534 = vshrl.u32 %v2533, 7
        %v2535 = vsub.s32 %v1893, %v2534
        %v2536 = vrot.slane %v1694, %v2535
        %v2537 = vsel %vm1898, %v2536, %v2532
        %v2538 = vlaneseq
        %v2539 = vshrl.u32 %v2538, 7
        %v2540 = vsub.s32 %v1900, %v2539
        %v2541 = vrot.slane %v1695, %v2540
        %v2542 = vsel %vm1905, %v2541, %v2537
        %v2543 = vlaneseq
        %v2544 = vshrl.u32 %v2543, 7
        %v2545 = vsub.s32 %v1907, %v2544
        %v2546 = vrot.slane %v1696, %v2545
        %v2547 = vsel %vm1912, %v2546, %v2542
        %v2548 = vlaneseq
        %v2549 = vshrl.u32 %v2548, 7
        %v2550 = vsub.s32 %v1914, %v2549
        %v2551 = vrot.slane %v1697, %v2550
        %v2552 = vsel %vm1919, %v2551, %v2547
        %v2553 = vlaneseq
        %v2554 = vshrl.u32 %v2553, 7
        %v2555 = vsub.s32 %v1811, %v2554
        %v2556 = vrot.slane %v1698, %v2555
        %v2557 = vlaneseq
        %v2558 = vshrl.u32 %v2557, 7
        %v2559 = vsub.s32 %v1816, %v2558
        %v2560 = vrot.slane %v1699, %v2559
        %v2561 = vsel %vm1821, %v2560, %v2556
        %v2562 = vlaneseq
        %v2563 = vshrl.u32 %v2562, 7
        %v2564 = vsub.s32 %v1823, %v2563
        %v2565 = vrot.slane %v1700, %v2564
        %v2566 = vsel %vm1828, %v2565, %v2561
        %v2567 = vlaneseq
        %v2568 = vshrl.u32 %v2567, 7
        %v2569 = vsub.s32 %v1830, %v2568
        %v2570 = vrot.slane %v1701, %v2569
        %v2571 = vsel %vm1835, %v2570, %v2566
        %v2572 = vlaneseq
        %v2573 = vshrl.u32 %v2572, 7
        %v2574 = vsub.s32 %v1837, %v2573
        %v2575 = vrot.slane %v1702, %v2574
        %v2576 = vsel %vm1842, %v2575, %v2571
        %v2577 = vlaneseq
        %v2578 = vshrl.u32 %v2577, 7
        %v2579 = vsub.s32 %v1844, %v2578
        %v2580 = vrot.slane %v1703, %v2579
        %v2581 = vsel %vm1849, %v2580, %v2576
        %v2582 = vlaneseq
        %v2583 = vshrl.u32 %v2582, 7
        %v2584 = vsub.s32 %v1851, %v2583
        %v2585 = vrot.slane %v1704, %v2584
        %v2586 = vsel %vm1856, %v2585, %v2581
        %v2587 = vlaneseq
        %v2588 = vshrl.u32 %v2587, 7
        %v2589 = vsub.s32 %v1858, %v2588
        %v2590 = vrot.slane %v1705, %v2589
        %v2591 = vsel %vm1863, %v2590, %v2586
        %v2592 = vlaneseq
        %v2593 = vshrl.u32 %v2592, 7
        %v2594 = vsub.s32 %v1865, %v2593
        %v2595 = vrot.slane %v1706, %v2594
        %v2596 = vsel %vm1870, %v2595, %v2591
        %v2597 = vlaneseq
        %v2598 = vshrl.u32 %v2597, 7
        %v2599 = vsub.s32 %v1872, %v2598
        %v2600 = vrot.slane %v1707, %v2599
        %v2601 = vsel %vm1877, %v2600, %v2596
        %v2602 = vlaneseq
        %v2603 = vshrl.u32 %v2602, 7
        %v2604 = vsub.s32 %v1879, %v2603
        %v2605 = vrot.slane %v1708, %v2604
        %v2606 = vsel %vm1884, %v2605, %v2601
        %v2607 = vlaneseq
        %v2608 = vshrl.u32 %v2607, 7
        %v2609 = vsub.s32 %v1886, %v2608
        %v2610 = vrot.slane %v1709, %v2609
        %v2611 = vsel %vm1891, %v2610, %v2606
        %v2612 = vlaneseq
        %v2613 = vshrl.u32 %v2612, 7
        %v2614 = vsub.s32 %v1893, %v2613
        %v2615 = vrot.slane %v1710, %v2614
        %v2616 = vsel %vm1898, %v2615, %v2611
        %v2617 = vlaneseq
        %v2618 = vshrl.u32 %v2617, 7
        %v2619 = vsub.s32 %v1900, %v2618
        %v2620 = vrot.slane %v1711, %v2619
        %v2621 = vsel %vm1905, %v2620, %v2616
        %v2622 = vlaneseq
        %v2623 = vshrl.u32 %v2622, 7
        %v2624 = vsub.s32 %v1907, %v2623
        %v2625 = vrot.slane %v1712, %v2624
        %v2626 = vsel %vm1912, %v2625, %v2621
        %v2627 = vlaneseq
        %v2628 = vshrl.u32 %v2627, 7
        %v2629 = vsub.s32 %v1914, %v2628
        %v2630 = vrot.slane %v1713, %v2629
        %v2631 = vsel %vm1919, %v2630, %v2626
        %v2632 = vlaneseq
        %v2633 = vshrl.u32 %v2632, 7
        %v2634 = vsub.s32 %v1811, %v2633
        %v2635 = vrot.slane %v1714, %v2634
        %v2636 = vlaneseq
        %v2637 = vshrl.u32 %v2636, 7
        %v2638 = vsub.s32 %v1816, %v2637
        %v2639 = vrot.slane %v1715, %v2638
        %v2640 = vsel %vm1821, %v2639, %v2635
        %v2641 = vlaneseq
        %v2642 = vshrl.u32 %v2641, 7
        %v2643 = vsub.s32 %v1823, %v2642
        %v2644 = vrot.slane %v1716, %v2643
        %v2645 = vsel %vm1828, %v2644, %v2640
        %v2646 = vlaneseq
        %v2647 = vshrl.u32 %v2646, 7
        %v2648 = vsub.s32 %v1830, %v2647
        %v2649 = vrot.slane %v1717, %v2648
        %v2650 = vsel %vm1835, %v2649, %v2645
        %v2651 = vlaneseq
        %v2652 = vshrl.u32 %v2651, 7
        %v2653 = vsub.s32 %v1837, %v2652
        %v2654 = vrot.slane %v1718, %v2653
        %v2655 = vsel %vm1842, %v2654, %v2650
        %v2656 = vlaneseq
        %v2657 = vshrl.u32 %v2656, 7
        %v2658 = vsub.s32 %v1844, %v2657
        %v2659 = vrot.slane %v1719, %v2658
        %v2660 = vsel %vm1849, %v2659, %v2655
        %v2661 = vlaneseq
        %v2662 = vshrl.u32 %v2661, 7
        %v2663 = vsub.s32 %v1851, %v2662
        %v2664 = vrot.slane %v1720, %v2663
        %v2665 = vsel %vm1856, %v2664, %v2660
        %v2666 = vlaneseq
        %v2667 = vshrl.u32 %v2666, 7
        %v2668 = vsub.s32 %v1858, %v2667
        %v2669 = vrot.slane %v1721, %v2668
        %v2670 = vsel %vm1863, %v2669, %v2665
        %v2671 = vlaneseq
        %v2672 = vshrl.u32 %v2671, 7
        %v2673 = vsub.s32 %v1865, %v2672
        %v2674 = vrot.slane %v1722, %v2673
        %v2675 = vsel %vm1870, %v2674, %v2670
        %v2676 = vlaneseq
        %v2677 = vshrl.u32 %v2676, 7
        %v2678 = vsub.s32 %v1872, %v2677
        %v2679 = vrot.slane %v1723, %v2678
        %v2680 = vsel %vm1877, %v2679, %v2675
        %v2681 = vlaneseq
        %v2682 = vshrl.u32 %v2681, 7
        %v2683 = vsub.s32 %v1879, %v2682
        %v2684 = vrot.slane %v1724, %v2683
        %v2685 = vsel %vm1884, %v2684, %v2680
        %v2686 = vlaneseq
        %v2687 = vshrl.u32 %v2686, 7
        %v2688 = vsub.s32 %v1886, %v2687
        %v2689 = vrot.slane %v1725, %v2688
        %v2690 = vsel %vm1891, %v2689, %v2685
        %v2691 = vlaneseq
        %v2692 = vshrl.u32 %v2691, 7
        %v2693 = vsub.s32 %v1893, %v2692
        %v2694 = vrot.slane %v1726, %v2693
        %v2695 = vsel %vm1898, %v2694, %v2690
        %v2696 = vlaneseq
        %v2697 = vshrl.u32 %v2696, 7
        %v2698 = vsub.s32 %v1900, %v2697
        %v2699 = vrot.slane %v1727, %v2698
        %v2700 = vsel %vm1905, %v2699, %v2695
        %v2701 = vlaneseq
        %v2702 = vshrl.u32 %v2701, 7
        %v2703 = vsub.s32 %v1907, %v2702
        %v2704 = vrot.slane %v1728, %v2703
        %v2705 = vsel %vm1912, %v2704, %v2700
        %v2706 = vlaneseq
        %v2707 = vshrl.u32 %v2706, 7
        %v2708 = vsub.s32 %v1914, %v2707
        %v2709 = vrot.slane %v1729, %v2708
        %v2710 = vsel %vm1919, %v2709, %v2705
        %v2711 = vlaneseq
        %v2712 = vshrl.u32 %v2711, 7
        %v2713 = vsub.s32 %v1811, %v2712
        %v2714 = vrot.slane %v1730, %v2713
        %v2715 = vlaneseq
        %v2716 = vshrl.u32 %v2715, 7
        %v2717 = vsub.s32 %v1816, %v2716
        %v2718 = vrot.slane %v1731, %v2717
        %v2719 = vsel %vm1821, %v2718, %v2714
        %v2720 = vlaneseq
        %v2721 = vshrl.u32 %v2720, 7
        %v2722 = vsub.s32 %v1823, %v2721
        %v2723 = vrot.slane %v1732, %v2722
        %v2724 = vsel %vm1828, %v2723, %v2719
        %v2725 = vlaneseq
        %v2726 = vshrl.u32 %v2725, 7
        %v2727 = vsub.s32 %v1830, %v2726
        %v2728 = vrot.slane %v1733, %v2727
        %v2729 = vsel %vm1835, %v2728, %v2724
        %v2730 = vlaneseq
        %v2731 = vshrl.u32 %v2730, 7
        %v2732 = vsub.s32 %v1837, %v2731
        %v2733 = vrot.slane %v1734, %v2732
        %v2734 = vsel %vm1842, %v2733, %v2729
        %v2735 = vlaneseq
        %v2736 = vshrl.u32 %v2735, 7
        %v2737 = vsub.s32 %v1844, %v2736
        %v2738 = vrot.slane %v1735, %v2737
        %v2739 = vsel %vm1849, %v2738, %v2734
        %v2740 = vlaneseq
        %v2741 = vshrl.u32 %v2740, 7
        %v2742 = vsub.s32 %v1851, %v2741
        %v2743 = vrot.slane %v1736, %v2742
        %v2744 = vsel %vm1856, %v2743, %v2739
        %v2745 = vlaneseq
        %v2746 = vshrl.u32 %v2745, 7
        %v2747 = vsub.s32 %v1858, %v2746
        %v2748 = vrot.slane %v1737, %v2747
        %v2749 = vsel %vm1863, %v2748, %v2744
        %v2750 = vlaneseq
        %v2751 = vshrl.u32 %v2750, 7
        %v2752 = vsub.s32 %v1865, %v2751
        %v2753 = vrot.slane %v1738, %v2752
        %v2754 = vsel %vm1870, %v2753, %v2749
        %v2755 = vlaneseq
        %v2756 = vshrl.u32 %v2755, 7
        %v2757 = vsub.s32 %v1872, %v2756
        %v2758 = vrot.slane %v1739, %v2757
        %v2759 = vsel %vm1877, %v2758, %v2754
        %v2760 = vlaneseq
        %v2761 = vshrl.u32 %v2760, 7
        %v2762 = vsub.s32 %v1879, %v2761
        %v2763 = vrot.slane %v1740, %v2762
        %v2764 = vsel %vm1884, %v2763, %v2759
        %v2765 = vlaneseq
        %v2766 = vshrl.u32 %v2765, 7
        %v2767 = vsub.s32 %v1886, %v2766
        %v2768 = vrot.slane %v1741, %v2767
        %v2769 = vsel %vm1891, %v2768, %v2764
        %v2770 = vlaneseq
        %v2771 = vshrl.u32 %v2770, 7
        %v2772 = vsub.s32 %v1893, %v2771
        %v2773 = vrot.slane %v1742, %v2772
        %v2774 = vsel %vm1898, %v2773, %v2769
        %v2775 = vlaneseq
        %v2776 = vshrl.u32 %v2775, 7
        %v2777 = vsub.s32 %v1900, %v2776
        %v2778 = vrot.slane %v1743, %v2777
        %v2779 = vsel %vm1905, %v2778, %v2774
        %v2780 = vlaneseq
        %v2781 = vshrl.u32 %v2780, 7
        %v2782 = vsub.s32 %v1907, %v2781
        %v2783 = vrot.slane %v1744, %v2782
        %v2784 = vsel %vm1912, %v2783, %v2779
        %v2785 = vlaneseq
        %v2786 = vshrl.u32 %v2785, 7
        %v2787 = vsub.s32 %v1914, %v2786
        %v2788 = vrot.slane %v1745, %v2787
        %v2789 = vsel %vm1919, %v2788, %v2784
        %v2790 = vlaneseq
        %v2791 = vshrl.u32 %v2790, 7
        %v2792 = vsub.s32 %v1811, %v2791
        %v2793 = vrot.slane %v1746, %v2792
        %v2794 = vlaneseq
        %v2795 = vshrl.u32 %v2794, 7
        %v2796 = vsub.s32 %v1816, %v2795
        %v2797 = vrot.slane %v1747, %v2796
        %v2798 = vsel %vm1821, %v2797, %v2793
        %v2799 = vlaneseq
        %v2800 = vshrl.u32 %v2799, 7
        %v2801 = vsub.s32 %v1823, %v2800
        %v2802 = vrot.slane %v1748, %v2801
        %v2803 = vsel %vm1828, %v2802, %v2798
        %v2804 = vlaneseq
        %v2805 = vshrl.u32 %v2804, 7
        %v2806 = vsub.s32 %v1830, %v2805
        %v2807 = vrot.slane %v1749, %v2806
        %v2808 = vsel %vm1835, %v2807, %v2803
        %v2809 = vlaneseq
        %v2810 = vshrl.u32 %v2809, 7
        %v2811 = vsub.s32 %v1837, %v2810
        %v2812 = vrot.slane %v1750, %v2811
        %v2813 = vsel %vm1842, %v2812, %v2808
        %v2814 = vlaneseq
        %v2815 = vshrl.u32 %v2814, 7
        %v2816 = vsub.s32 %v1844, %v2815
        %v2817 = vrot.slane %v1751, %v2816
        %v2818 = vsel %vm1849, %v2817, %v2813
        %v2819 = vlaneseq
        %v2820 = vshrl.u32 %v2819, 7
        %v2821 = vsub.s32 %v1851, %v2820
        %v2822 = vrot.slane %v1752, %v2821
        %v2823 = vsel %vm1856, %v2822, %v2818
        %v2824 = vlaneseq
        %v2825 = vshrl.u32 %v2824, 7
        %v2826 = vsub.s32 %v1858, %v2825
        %v2827 = vrot.slane %v1753, %v2826
        %v2828 = vsel %vm1863, %v2827, %v2823
        %v2829 = vlaneseq
        %v2830 = vshrl.u32 %v2829, 7
        %v2831 = vsub.s32 %v1865, %v2830
        %v2832 = vrot.slane %v1754, %v2831
        %v2833 = vsel %vm1870, %v2832, %v2828
        %v2834 = vlaneseq
        %v2835 = vshrl.u32 %v2834, 7
        %v2836 = vsub.s32 %v1872, %v2835
        %v2837 = vrot.slane %v1755, %v2836
        %v2838 = vsel %vm1877, %v2837, %v2833
        %v2839 = vlaneseq
        %v2840 = vshrl.u32 %v2839, 7
        %v2841 = vsub.s32 %v1879, %v2840
        %v2842 = vrot.slane %v1756, %v2841
        %v2843 = vsel %vm1884, %v2842, %v2838
        %v2844 = vlaneseq
        %v2845 = vshrl.u32 %v2844, 7
        %v2846 = vsub.s32 %v1886, %v2845
        %v2847 = vrot.slane %v1757, %v2846
        %v2848 = vsel %vm1891, %v2847, %v2843
        %v2849 = vlaneseq
        %v2850 = vshrl.u32 %v2849, 7
        %v2851 = vsub.s32 %v1893, %v2850
        %v2852 = vrot.slane %v1758, %v2851
        %v2853 = vsel %vm1898, %v2852, %v2848
        %v2854 = vlaneseq
        %v2855 = vshrl.u32 %v2854, 7
        %v2856 = vsub.s32 %v1900, %v2855
        %v2857 = vrot.slane %v1759, %v2856
        %v2858 = vsel %vm1905, %v2857, %v2853
        %v2859 = vlaneseq
        %v2860 = vshrl.u32 %v2859, 7
        %v2861 = vsub.s32 %v1907, %v2860
        %v2862 = vrot.slane %v1760, %v2861
        %v2863 = vsel %vm1912, %v2862, %v2858
        %v2864 = vlaneseq
        %v2865 = vshrl.u32 %v2864, 7
        %v2866 = vsub.s32 %v1914, %v2865
        %v2867 = vrot.slane %v1761, %v2866
        %v2868 = vsel %vm1919, %v2867, %v2863
        %v2869 = vlaneseq
        %v2870 = vshrl.u32 %v2869, 7
        %v2871 = vsub.s32 %v1811, %v2870
        %v2872 = vrot.slane %v1762, %v2871
        %v2873 = vlaneseq
        %v2874 = vshrl.u32 %v2873, 7
        %v2875 = vsub.s32 %v1816, %v2874
        %v2876 = vrot.slane %v1763, %v2875
        %v2877 = vsel %vm1821, %v2876, %v2872
        %v2878 = vlaneseq
        %v2879 = vshrl.u32 %v2878, 7
        %v2880 = vsub.s32 %v1823, %v2879
        %v2881 = vrot.slane %v1764, %v2880
        %v2882 = vsel %vm1828, %v2881, %v2877
        %v2883 = vlaneseq
        %v2884 = vshrl.u32 %v2883, 7
        %v2885 = vsub.s32 %v1830, %v2884
        %v2886 = vrot.slane %v1765, %v2885
        %v2887 = vsel %vm1835, %v2886, %v2882
        %v2888 = vlaneseq
        %v2889 = vshrl.u32 %v2888, 7
        %v2890 = vsub.s32 %v1837, %v2889
        %v2891 = vrot.slane %v1766, %v2890
        %v2892 = vsel %vm1842, %v2891, %v2887
        %v2893 = vlaneseq
        %v2894 = vshrl.u32 %v2893, 7
        %v2895 = vsub.s32 %v1844, %v2894
        %v2896 = vrot.slane %v1767, %v2895
        %v2897 = vsel %vm1849, %v2896, %v2892
        %v2898 = vlaneseq
        %v2899 = vshrl.u32 %v2898, 7
        %v2900 = vsub.s32 %v1851, %v2899
        %v2901 = vrot.slane %v1768, %v2900
        %v2902 = vsel %vm1856, %v2901, %v2897
        %v2903 = vlaneseq
        %v2904 = vshrl.u32 %v2903, 7
        %v2905 = vsub.s32 %v1858, %v2904
        %v2906 = vrot.slane %v1769, %v2905
        %v2907 = vsel %vm1863, %v2906, %v2902
        %v2908 = vlaneseq
        %v2909 = vshrl.u32 %v2908, 7
        %v2910 = vsub.s32 %v1865, %v2909
        %v2911 = vrot.slane %v1770, %v2910
        %v2912 = vsel %vm1870, %v2911, %v2907
        %v2913 = vlaneseq
        %v2914 = vshrl.u32 %v2913, 7
        %v2915 = vsub.s32 %v1872, %v2914
        %v2916 = vrot.slane %v1771, %v2915
        %v2917 = vsel %vm1877, %v2916, %v2912
        %v2918 = vlaneseq
        %v2919 = vshrl.u32 %v2918, 7
        %v2920 = vsub.s32 %v1879, %v2919
        %v2921 = vrot.slane %v1772, %v2920
        %v2922 = vsel %vm1884, %v2921, %v2917
        %v2923 = vlaneseq
        %v2924 = vshrl.u32 %v2923, 7
        %v2925 = vsub.s32 %v1886, %v2924
        %v2926 = vrot.slane %v1773, %v2925
        %v2927 = vsel %vm1891, %v2926, %v2922
        %v2928 = vlaneseq
        %v2929 = vshrl.u32 %v2928, 7
        %v2930 = vsub.s32 %v1893, %v2929
        %v2931 = vrot.slane %v1774, %v2930
        %v2932 = vsel %vm1898, %v2931, %v2927
        %v2933 = vlaneseq
        %v2934 = vshrl.u32 %v2933, 7
        %v2935 = vsub.s32 %v1900, %v2934
        %v2936 = vrot.slane %v1775, %v2935
        %v2937 = vsel %vm1905, %v2936, %v2932
        %v2938 = vlaneseq
        %v2939 = vshrl.u32 %v2938, 7
        %v2940 = vsub.s32 %v1907, %v2939
        %v2941 = vrot.slane %v1776, %v2940
        %v2942 = vsel %vm1912, %v2941, %v2937
        %v2943 = vlaneseq
        %v2944 = vshrl.u32 %v2943, 7
        %v2945 = vsub.s32 %v1914, %v2944
        %v2946 = vrot.slane %v1777, %v2945
        %v2947 = vsel %vm1919, %v2946, %v2942
        %v2948 = vlaneseq
        %v2949 = vshrl.u32 %v2948, 7
        %v2950 = vsub.s32 %v1811, %v2949
        %v2951 = vrot.slane %v1778, %v2950
        %v2952 = vlaneseq
        %v2953 = vshrl.u32 %v2952, 7
        %v2954 = vsub.s32 %v1816, %v2953
        %v2955 = vrot.slane %v1779, %v2954
        %v2956 = vsel %vm1821, %v2955, %v2951
        %v2957 = vlaneseq
        %v2958 = vshrl.u32 %v2957, 7
        %v2959 = vsub.s32 %v1823, %v2958
        %v2960 = vrot.slane %v1780, %v2959
        %v2961 = vsel %vm1828, %v2960, %v2956
        %v2962 = vlaneseq
        %v2963 = vshrl.u32 %v2962, 7
        %v2964 = vsub.s32 %v1830, %v2963
        %v2965 = vrot.slane %v1781, %v2964
        %v2966 = vsel %vm1835, %v2965, %v2961
        %v2967 = vlaneseq
        %v2968 = vshrl.u32 %v2967, 7
        %v2969 = vsub.s32 %v1837, %v2968
        %v2970 = vrot.slane %v1782, %v2969
        %v2971 = vsel %vm1842, %v2970, %v2966
        %v2972 = vlaneseq
        %v2973 = vshrl.u32 %v2972, 7
        %v2974 = vsub.s32 %v1844, %v2973
        %v2975 = vrot.slane %v1783, %v2974
        %v2976 = vsel %vm1849, %v2975, %v2971
        %v2977 = vlaneseq
        %v2978 = vshrl.u32 %v2977, 7
        %v2979 = vsub.s32 %v1851, %v2978
        %v2980 = vrot.slane %v1784, %v2979
        %v2981 = vsel %vm1856, %v2980, %v2976
        %v2982 = vlaneseq
        %v2983 = vshrl.u32 %v2982, 7
        %v2984 = vsub.s32 %v1858, %v2983
        %v2985 = vrot.slane %v1785, %v2984
        %v2986 = vsel %vm1863, %v2985, %v2981
        %v2987 = vlaneseq
        %v2988 = vshrl.u32 %v2987, 7
        %v2989 = vsub.s32 %v1865, %v2988
        %v2990 = vrot.slane %v1786, %v2989
        %v2991 = vsel %vm1870, %v2990, %v2986
        %v2992 = vlaneseq
        %v2993 = vshrl.u32 %v2992, 7
        %v2994 = vsub.s32 %v1872, %v2993
        %v2995 = vrot.slane %v1787, %v2994
        %v2996 = vsel %vm1877, %v2995, %v2991
        %v2997 = vlaneseq
        %v2998 = vshrl.u32 %v2997, 7
        %v2999 = vsub.s32 %v1879, %v2998
        %v3000 = vrot.slane %v1788, %v2999
        %v3001 = vsel %vm1884, %v3000, %v2996
        %v3002 = vlaneseq
        %v3003 = vshrl.u32 %v3002, 7
        %v3004 = vsub.s32 %v1886, %v3003
        %v3005 = vrot.slane %v1789, %v3004
        %v3006 = vsel %vm1891, %v3005, %v3001
        %v3007 = vlaneseq
        %v3008 = vshrl.u32 %v3007, 7
        %v3009 = vsub.s32 %v1893, %v3008
        %v3010 = vrot.slane %v1790, %v3009
        %v3011 = vsel %vm1898, %v3010, %v3006
        %v3012 = vlaneseq
        %v3013 = vshrl.u32 %v3012, 7
        %v3014 = vsub.s32 %v1900, %v3013
        %v3015 = vrot.slane %v1791, %v3014
        %v3016 = vsel %vm1905, %v3015, %v3011
        %v3017 = vlaneseq
        %v3018 = vshrl.u32 %v3017, 7
        %v3019 = vsub.s32 %v1907, %v3018
        %v3020 = vrot.slane %v1792, %v3019
        %v3021 = vsel %vm1912, %v3020, %v3016
        %v3022 = vlaneseq
        %v3023 = vshrl.u32 %v3022, 7
        %v3024 = vsub.s32 %v1914, %v3023
        %v3025 = vrot.slane %v1793, %v3024
        %v3026 = vsel %vm1919, %v3025, %v3021
        %v3027 = vlaneseq
        %v3028 = vshrl.u32 %v3027, 7
        %v3029 = vsub.s32 %v1811, %v3028
        %v3030 = vrot.slane %v1794, %v3029
        %v3031 = vlaneseq
        %v3032 = vshrl.u32 %v3031, 7
        %v3033 = vsub.s32 %v1816, %v3032
        %v3034 = vrot.slane %v1795, %v3033
        %v3035 = vsel %vm1821, %v3034, %v3030
        %v3036 = vlaneseq
        %v3037 = vshrl.u32 %v3036, 7
        %v3038 = vsub.s32 %v1823, %v3037
        %v3039 = vrot.slane %v1796, %v3038
        %v3040 = vsel %vm1828, %v3039, %v3035
        %v3041 = vlaneseq
        %v3042 = vshrl.u32 %v3041, 7
        %v3043 = vsub.s32 %v1830, %v3042
        %v3044 = vrot.slane %v1797, %v3043
        %v3045 = vsel %vm1835, %v3044, %v3040
        %v3046 = vlaneseq
        %v3047 = vshrl.u32 %v3046, 7
        %v3048 = vsub.s32 %v1837, %v3047
        %v3049 = vrot.slane %v1798, %v3048
        %v3050 = vsel %vm1842, %v3049, %v3045
        %v3051 = vlaneseq
        %v3052 = vshrl.u32 %v3051, 7
        %v3053 = vsub.s32 %v1844, %v3052
        %v3054 = vrot.slane %v1799, %v3053
        %v3055 = vsel %vm1849, %v3054, %v3050
        %v3056 = vlaneseq
        %v3057 = vshrl.u32 %v3056, 7
        %v3058 = vsub.s32 %v1851, %v3057
        %v3059 = vrot.slane %v1800, %v3058
        %v3060 = vsel %vm1856, %v3059, %v3055
        %v3061 = vlaneseq
        %v3062 = vshrl.u32 %v3061, 7
        %v3063 = vsub.s32 %v1858, %v3062
        %v3064 = vrot.slane %v1801, %v3063
        %v3065 = vsel %vm1863, %v3064, %v3060
        %v3066 = vlaneseq
        %v3067 = vshrl.u32 %v3066, 7
        %v3068 = vsub.s32 %v1865, %v3067
        %v3069 = vrot.slane %v1802, %v3068
        %v3070 = vsel %vm1870, %v3069, %v3065
        %v3071 = vlaneseq
        %v3072 = vshrl.u32 %v3071, 7
        %v3073 = vsub.s32 %v1872, %v3072
        %v3074 = vrot.slane %v1803, %v3073
        %v3075 = vsel %vm1877, %v3074, %v3070
        %v3076 = vlaneseq
        %v3077 = vshrl.u32 %v3076, 7
        %v3078 = vsub.s32 %v1879, %v3077
        %v3079 = vrot.slane %v1804, %v3078
        %v3080 = vsel %vm1884, %v3079, %v3075
        %v3081 = vlaneseq
        %v3082 = vshrl.u32 %v3081, 7
        %v3083 = vsub.s32 %v1886, %v3082
        %v3084 = vrot.slane %v1805, %v3083
        %v3085 = vsel %vm1891, %v3084, %v3080
        %v3086 = vlaneseq
        %v3087 = vshrl.u32 %v3086, 7
        %v3088 = vsub.s32 %v1893, %v3087
        %v3089 = vrot.slane %v1806, %v3088
        %v3090 = vsel %vm1898, %v3089, %v3085
        %v3091 = vlaneseq
        %v3092 = vshrl.u32 %v3091, 7
        %v3093 = vsub.s32 %v1900, %v3092
        %v3094 = vrot.slane %v1807, %v3093
        %v3095 = vsel %vm1905, %v3094, %v3090
        %v3096 = vlaneseq
        %v3097 = vshrl.u32 %v3096, 7
        %v3098 = vsub.s32 %v1907, %v3097
        %v3099 = vrot.slane %v1808, %v3098
        %v3100 = vsel %vm1912, %v3099, %v3095
        %v3101 = vlaneseq
        %v3102 = vshrl.u32 %v3101, 7
        %v3103 = vsub.s32 %v1914, %v3102
        %v3104 = vrot.slane %v1809, %v3103
        %v3105 = vsel %vm1919, %v3104, %v3100
        %vm3106 = vcmask 1041409
        %v3107 = vsel %vm3106, %v2078, %v1920
        %vm3108 = vcmask 1042434
        %v3109 = vsel %vm3108, %v2236, %v3107
        %vm3110 = vcmask 1043459
        %v3111 = vsel %vm3110, %v2394, %v3109
        %vm3112 = vcmask 1044484
        %v3113 = vsel %vm3112, %v2552, %v3111
        %vm3114 = vcmask 1045509
        %v3115 = vsel %vm3114, %v2710, %v3113
        %vm3116 = vcmask 1046534
        %v3117 = vsel %vm3116, %v2868, %v3115
        %vm3118 = vcmask 1047559
        %v3119 = vsel %vm3118, %v3026, %v3117
        %v3120 = vsel %vm3106, %v2157, %v1999
        %v3121 = vsel %vm3108, %v2315, %v3120
        %v3122 = vsel %vm3110, %v2473, %v3121
        %v3123 = vsel %vm3112, %v2631, %v3122
        %v3124 = vsel %vm3114, %v2789, %v3123
        %v3125 = vsel %vm3116, %v2947, %v3124
        %v3126 = vsel %vm3118, %v3105, %v3125
        %v3127 = vpack.c.b16 %v3119, %v3119
        %v3128 = vpack.c.b16 %v3126, %v3126
        %v3163 = vunpack.c.l.b16 %v1382
        %v3164 = vunpack.c.h.b16 %v1382
        %v3165 = vunpack.c.l.b16 %v1383
        %v3166 = vunpack.c.h.b16 %v1383
        %v3167 = vunpack.c.l.b16 %v1384
        %v3168 = vunpack.c.h.b16 %v1384
        %v3169 = vunpack.c.l.b16 %v1385
        %v3170 = vunpack.c.h.b16 %v1385
        %v3171 = vunpack.c.l.b16 %v1386
        %v3172 = vunpack.c.h.b16 %v1386
        %v3173 = vunpack.c.l.b16 %v1387
        %v3174 = vunpack.c.h.b16 %v1387
        %v3175 = vunpack.c.l.b16 %v1388
        %v3176 = vunpack.c.h.b16 %v1388
        %v3177 = vunpack.c.l.b16 %v1389
        %v3178 = vunpack.c.h.b16 %v1389
        %v3179 = vunpack.c.l.b16 %v1390
        %v3180 = vunpack.c.h.b16 %v1390
        %v3181 = vunpack.c.l.b16 %v1391
        %v3182 = vunpack.c.h.b16 %v1391
        %v3183 = vunpack.c.l.b16 %v1392
        %v3184 = vunpack.c.h.b16 %v1392
        %v3185 = vunpack.c.l.b16 %v1393
        %v3186 = vunpack.c.h.b16 %v1393
        %v3187 = vunpack.c.l.b16 %v1394
        %v3188 = vunpack.c.h.b16 %v1394
        %v3189 = vunpack.c.l.b16 %v1395
        %v3190 = vunpack.c.h.b16 %v1395
        %v3191 = vunpack.c.l.b16 %v1396
        %v3192 = vunpack.c.h.b16 %v1396
        %v3193 = vunpack.c.l.b16 %v1397
        %v3194 = vunpack.c.h.b16 %v1397
        %v3195 = vunpack.c.l.b16 %v1398
        %v3196 = vunpack.c.h.b16 %v1398
        %v3197 = vunpack.c.l.b16 %v1399
        %v3198 = vunpack.c.h.b16 %v1399
        %v3199 = vunpack.c.l.b16 %v1400
        %v3200 = vunpack.c.h.b16 %v1400
        %v3201 = vunpack.c.l.b16 %v1401
        %v3202 = vunpack.c.h.b16 %v1401
        %v3203 = vunpack.c.l.b16 %v1402
        %v3204 = vunpack.c.h.b16 %v1402
        %v3205 = vunpack.c.l.b16 %v1403
        %v3206 = vunpack.c.h.b16 %v1403
        %v3207 = vunpack.c.l.b16 %v1404
        %v3208 = vunpack.c.h.b16 %v1404
        %v3209 = vunpack.c.l.b16 %v1405
        %v3210 = vunpack.c.h.b16 %v1405
        %v3211 = vunpack.c.l.b16 %v1406
        %v3212 = vunpack.c.h.b16 %v1406
        %v3213 = vunpack.c.l.b16 %v1407
        %v3214 = vunpack.c.h.b16 %v1407
        %v3215 = vunpack.c.l.b16 %v1408
        %v3216 = vunpack.c.h.b16 %v1408
        %v3217 = vunpack.c.l.b16 %v1409
        %v3218 = vunpack.c.h.b16 %v1409
        %v3219 = vunpack.c.l.b16 %v1410
        %v3220 = vunpack.c.h.b16 %v1410
        %v3221 = vunpack.c.l.b16 %v1411
        %v3222 = vunpack.c.h.b16 %v1411
        %v3223 = vunpack.c.l.b16 %v1412
        %v3224 = vunpack.c.h.b16 %v1412
        %v3225 = vunpack.c.l.b16 %v1413
        %v3226 = vunpack.c.h.b16 %v1413
        %v3227 = vpack.c.b16 %v3165, %v3163
        %v3228 = vpack.c.b16 %v3166, %v3164
        %v3229 = vpack.c.b16 %v3169, %v3167
        %v3230 = vpack.c.b16 %v3170, %v3168
        %v3231 = vpack.c.b16 %v3173, %v3171
        %v3232 = vpack.c.b16 %v3174, %v3172
        %v3233 = vpack.c.b16 %v3177, %v3175
        %v3234 = vpack.c.b16 %v3178, %v3176
        %v3235 = vpack.c.b16 %v3181, %v3179
        %v3236 = vpack.c.b16 %v3182, %v3180
        %v3237 = vpack.c.b16 %v3185, %v3183
        %v3238 = vpack.c.b16 %v3186, %v3184
        %v3239 = vpack.c.b16 %v3189, %v3187
        %v3240 = vpack.c.b16 %v3190, %v3188
        %v3241 = vpack.c.b16 %v3193, %v3191
        %v3242 = vpack.c.b16 %v3194, %v3192
        %v3243 = vpack.c.b16 %v3197, %v3195
        %v3244 = vpack.c.b16 %v3198, %v3196
        %v3245 = vpack.c.b16 %v3201, %v3199
        %v3246 = vpack.c.b16 %v3202, %v3200
        %v3247 = vpack.c.b16 %v3205, %v3203
        %v3248 = vpack.c.b16 %v3206, %v3204
        %v3249 = vpack.c.b16 %v3209, %v3207
        %v3250 = vpack.c.b16 %v3210, %v3208
        %v3251 = vpack.c.b16 %v3213, %v3211
        %v3252 = vpack.c.b16 %v3214, %v3212
        %v3253 = vpack.c.b16 %v3217, %v3215
        %v3254 = vpack.c.b16 %v3218, %v3216
        %v3255 = vpack.c.b16 %v3221, %v3219
        %v3256 = vpack.c.b16 %v3222, %v3220
        %v3257 = vpack.c.b16 %v3225, %v3223
        %v3258 = vpack.c.b16 %v3226, %v3224
        %3291 = vmatprep.subr.bf16.mxu0 %v3242
        %3292 = vmatpush1.bf16.msra.mxu0 %v3241
        %3293 = vmatprep.subr.bf16.mxu0 %v3240
        %3294 = vmatpush1.bf16.msra.mxu0 %v3239
        %3295 = vmatprep.subr.bf16.mxu0 %v3238
        %3296 = vmatpush1.bf16.msra.mxu0 %v3237
        %3297 = vmatprep.subr.bf16.mxu0 %v3236
        %3298 = vmatpush1.bf16.msra.mxu0 %v3235
        %3299 = vmatprep.subr.bf16.mxu0 %v3234
        %3300 = vmatpush1.bf16.msra.mxu0 %v3233
        %3301 = vmatprep.subr.bf16.mxu0 %v3232
        %3302 = vmatpush1.bf16.msra.mxu0 %v3231
        %3303 = vmatprep.subr.bf16.mxu0 %v3230
        %3304 = vmatpush1.bf16.msra.mxu0 %v3229
        %3305 = vmatprep.subr.bf16.mxu0 %v3228
        %3306 = vmatpush1.bf16.msra.mxu0 %v3227
        %3307 = vmatprep.subr.bf16.mxu0 %v3258
        %3308 = vmatpush2.bf16.msra.mxu0 %v3257
        %3309 = vmatprep.subr.bf16.mxu0 %v3256
        %3310 = vmatpush2.bf16.msra.mxu0 %v3255
        %3311 = vmatprep.subr.bf16.mxu0 %v3254
        %3312 = vmatpush2.bf16.msra.mxu0 %v3253
        %3313 = vmatprep.subr.bf16.mxu0 %v3252
        %3314 = vmatpush2.bf16.msra.mxu0 %v3251
        %3315 = vmatprep.subr.bf16.mxu0 %v3250
        %3316 = vmatpush2.bf16.msra.mxu0 %v3249
        %3317 = vmatprep.subr.bf16.mxu0 %v3248
        %3318 = vmatpush2.bf16.msra.mxu0 %v3247
        %3319 = vmatprep.subr.bf16.mxu0 %v3246
        %3320 = vmatpush2.bf16.msra.mxu0 %v3245
        %3321 = vmatprep.subr.bf16.mxu0 %v3244
        %3322 = vmatpush2.bf16.msra.mxu0 %v3243
        %3323 = vmatprep.mubr.bf16.mxu0 %v3128
        %3324 = vmatmul.mubr.bf16.gmra.mxu0 %v3127
        %v3325 = vpop.f32.mrf.mxu0
        %v3326 = vadd.f32 %v1419, %v3325
        %v3327 = vpop.f32.mrf.mxu0
        %v3328 = vadd.f32 %v1423, %v3327
        %v3329 = vpop.f32.mrf.mxu0
        %v3330 = vpop.f32.mrf.mxu0
        %3331 = vdwg.mxu0
        %v3332 = vmax.f32 %v3326, 0.0
        %v3333 = vmax.f32 %v3328, 0.0
        %v3334 = vpack.c.bf16 %v3332, %v3332
        %v3335 = vpack.c.bf16 %v3333, %v3333
        %v3336 = vld [vmem:[%s3] sm:$0xf]
        %v3337 = vld [vmem:[%s3 + $0x4] sm:$0xf]
        %v3338 = vld [vmem:[%s3 + $0x8] sm:$0xf]
        %v3339 = vld [vmem:[%s3 + $0xc] sm:$0xf]
        %v3340 = vld [vmem:[%s3 + $0x10] sm:$0xf]
        %v3341 = vld [vmem:[%s3 + $0x14] sm:$0xf]
        %v3342 = vld [vmem:[%s3 + $0x18] sm:$0xf]
        %v3343 = vld [vmem:[%s3 + $0x1c] sm:$0xf]
        %v3344 = vld [vmem:[%s3 + $0x20] sm:$0xf]
        %v3345 = vld [vmem:[%s3 + $0x24] sm:$0xf]
        %v3346 = vld [vmem:[%s3 + $0x28] sm:$0xf]
        %v3347 = vld [vmem:[%s3 + $0x2c] sm:$0xf]
        %v3348 = vld [vmem:[%s3 + $0x30] sm:$0xf]
        %v3349 = vld [vmem:[%s3 + $0x34] sm:$0xf]
        %v3350 = vld [vmem:[%s3 + $0x38] sm:$0xf]
        %v3351 = vld [vmem:[%s3 + $0x3c] sm:$0xf]
        %v3352 = vld [vmem:[%s3 + $0x40] sm:$0xf]
        %v3353 = vld [vmem:[%s3 + $0x44] sm:$0xf]
        %v3354 = vld [vmem:[%s3 + $0x48] sm:$0xf]
        %v3355 = vld [vmem:[%s3 + $0x4c] sm:$0xf]
        %v3356 = vld [vmem:[%s3 + $0x50] sm:$0xf]
        %v3357 = vld [vmem:[%s3 + $0x54] sm:$0xf]
        %v3358 = vld [vmem:[%s3 + $0x58] sm:$0xf]
        %v3359 = vld [vmem:[%s3 + $0x5c] sm:$0xf]
        %v3360 = vld [vmem:[%s3 + $0x60] sm:$0xf]
        %v3361 = vld [vmem:[%s3 + $0x64] sm:$0xf]
        %v3362 = vld [vmem:[%s3 + $0x68] sm:$0xf]
        %v3363 = vld [vmem:[%s3 + $0x6c] sm:$0xf]
        %v3364 = vld [vmem:[%s3 + $0x70] sm:$0xf]
        %v3365 = vld [vmem:[%s3 + $0x74] sm:$0xf]
        %v3366 = vld [vmem:[%s3 + $0x78] sm:$0xf]
        %v3367 = vld [vmem:[%s3 + $0x7c] sm:$0xf]
        %v3368 = vld [vmem:[%s4] sm:$0x1]
        %v3370 = vlaneseq
        %v3371 = vshrl.u32 %v3370, 7
        %v3372 = vsub.s32 0, %v3371
        %v3373 = vrot.slane %v3368, %v3372
        %v3407 = vunpack.c.l.b16 %v3336
        %v3408 = vunpack.c.l.b16 %v3337
        %v3409 = vunpack.c.l.b16 %v3338
        %v3410 = vunpack.c.l.b16 %v3339
        %v3411 = vunpack.c.l.b16 %v3340
        %v3412 = vunpack.c.l.b16 %v3341
        %v3413 = vunpack.c.l.b16 %v3342
        %v3414 = vunpack.c.l.b16 %v3343
        %v3415 = vunpack.c.l.b16 %v3344
        %v3416 = vunpack.c.l.b16 %v3345
        %v3417 = vunpack.c.l.b16 %v3346
        %v3418 = vunpack.c.l.b16 %v3347
        %v3419 = vunpack.c.l.b16 %v3348
        %v3420 = vunpack.c.l.b16 %v3349
        %v3421 = vunpack.c.l.b16 %v3350
        %v3422 = vunpack.c.l.b16 %v3351
        %v3423 = vunpack.c.l.b16 %v3352
        %v3424 = vunpack.c.l.b16 %v3353
        %v3425 = vunpack.c.l.b16 %v3354
        %v3426 = vunpack.c.l.b16 %v3355
        %v3427 = vunpack.c.l.b16 %v3356
        %v3428 = vunpack.c.l.b16 %v3357
        %v3429 = vunpack.c.l.b16 %v3358
        %v3430 = vunpack.c.l.b16 %v3359
        %v3431 = vunpack.c.l.b16 %v3360
        %v3432 = vunpack.c.l.b16 %v3361
        %v3433 = vunpack.c.l.b16 %v3362
        %v3434 = vunpack.c.l.b16 %v3363
        %v3435 = vunpack.c.l.b16 %v3364
        %v3436 = vunpack.c.l.b16 %v3365
        %v3437 = vunpack.c.l.b16 %v3366
        %v3438 = vunpack.c.l.b16 %v3367
        %v3439 = vpack.c.b16 %v3408, %v3407
        %v3440 = vpack.c.b16 %v3410, %v3409
        %v3441 = vpack.c.b16 %v3412, %v3411
        %v3442 = vpack.c.b16 %v3414, %v3413
        %v3443 = vpack.c.b16 %v3416, %v3415
        %v3444 = vpack.c.b16 %v3418, %v3417
        %v3445 = vpack.c.b16 %v3420, %v3419
        %v3446 = vpack.c.b16 %v3422, %v3421
        %v3447 = vpack.c.b16 %v3424, %v3423
        %v3448 = vpack.c.b16 %v3426, %v3425
        %v3449 = vpack.c.b16 %v3428, %v3427
        %v3450 = vpack.c.b16 %v3430, %v3429
        %v3451 = vpack.c.b16 %v3432, %v3431
        %v3452 = vpack.c.b16 %v3434, %v3433
        %v3453 = vpack.c.b16 %v3436, %v3435
        %v3454 = vpack.c.b16 %v3438, %v3437
        %3471 = vmatprep.subr.bf16.mxu0 0
        %3472 = vmatpush1.bf16.msra.mxu0 %v3446
        %3473 = vmatprep.subr.bf16.mxu0 0
        %3474 = vmatpush1.bf16.msra.mxu0 %v3445
        %3475 = vmatprep.subr.bf16.mxu0 0
        %3476 = vmatpush1.bf16.msra.mxu0 %v3444
        %3477 = vmatprep.subr.bf16.mxu0 0
        %3478 = vmatpush1.bf16.msra.mxu0 %v3443
        %3479 = vmatprep.subr.bf16.mxu0 0
        %3480 = vmatpush1.bf16.msra.mxu0 %v3442
        %3481 = vmatprep.subr.bf16.mxu0 0
        %3482 = vmatpush1.bf16.msra.mxu0 %v3441
        %3483 = vmatprep.subr.bf16.mxu0 0
        %3484 = vmatpush1.bf16.msra.mxu0 %v3440
        %3485 = vmatprep.subr.bf16.mxu0 0
        %3486 = vmatpush1.bf16.msra.mxu0 %v3439
        %3487 = vmatprep.subr.bf16.mxu0 0
        %3488 = vmatpush2.bf16.msra.mxu0 %v3454
        %3489 = vmatprep.subr.bf16.mxu0 0
        %3490 = vmatpush2.bf16.msra.mxu0 %v3453
        %3491 = vmatprep.subr.bf16.mxu0 0
        %3492 = vmatpush2.bf16.msra.mxu0 %v3452
        %3493 = vmatprep.subr.bf16.mxu0 0
        %3494 = vmatpush2.bf16.msra.mxu0 %v3451
        %3495 = vmatprep.subr.bf16.mxu0 0
        %3496 = vmatpush2.bf16.msra.mxu0 %v3450
        %3497 = vmatprep.subr.bf16.mxu0 0
        %3498 = vmatpush2.bf16.msra.mxu0 %v3449
        %3499 = vmatprep.subr.bf16.mxu0 0
        %3500 = vmatpush2.bf16.msra.mxu0 %v3448
        %3501 = vmatprep.subr.bf16.mxu0 0
        %3502 = vmatpush2.bf16.msra.mxu0 %v3447
        %3503 = vmatprep.mubr.bf16.mxu0 %v3335
        %3504 = vmatmul.mubr.bf16.gmra.mxu0 %v3334
        %v3505 = vpop.f32.mrf.mxu0
        %v3506 = vadd.f32 %v3373, %v3505
        %v3507 = vpop.f32.mrf.mxu0
        %v3508 = vpop.f32.mrf.mxu0
        %v3509 = vpop.f32.mrf.mxu0
        %3510 = vdwg.mxu0
        %v3511 = vmul.f32 %v3506, %v3506
        %3512 = vadd.xlane.f32.xlu0 %v3511
        %v3513 = vpop.xlane.xlu0 %3512
        %v3514 = vmax.f32 %v3513, 1e-24
        %v3515 = vrsqrt.pop %v3514
        %v3516 = vmul.f32 %v3506, %v3515
        %3517 = vst [vmem:[%s220] sm:$0xff] %v3516
        %s3518 = sand.u32 %s137, 1
        %s3519 = scalar_lea.sflag [#allocation3], %s3518
        %s3520 = sand.u32 %s137, 1
        %s3521 = smul.addr %s3520, 8
        %s3522 = scalar_lea.vmem [#allocation2], %s3521
        // Predicated region
        $region41: #{tpu_custom_call.1} parent=39 // pred_check
          %p3523 = pneg %p147
        $region42: #{tpu_custom_call.1} parent=39 // pred_check_branch
          %3525 = sbr.rel (%p3523) target = $region44
        $region43: #{tpu_custom_call.1} parent=39 // pred_region
          %s3527 = ssub.s32 128, 128
          %3528 = vsyncadd %s3519, %s3527
          %s3529 = smul.addr %s19, 128
          %s3530 = scalar_lea.hbm %s5, %s3529
          %s3532 = sshll.u32 %s3522, 4
          %s3533 = int_to_ptr.vmem [resolvable:$true] %s3532
          %3535 = dma.vmem_to_hbm [thread:$0]  %s3533, 128, %s3530, %s3519
        $region44: #{tpu_custom_call.1} parent=39 // pred_fallthru
          _
      $region40: #{tpu_custom_call.1} parent=5 // pred_fallthru
        _
      %p3536 = scmp.le.s32.totalorder 2, %s14
      // Predicated region
      $region45: #{tpu_custom_call.1} parent=5 // pred_check
        %p3537 = pneg %p3536
      $region46: #{tpu_custom_call.1} parent=5 // pred_check_branch
        %3539 = sbr.rel (%p3537) target = $region48
      $region47: #{tpu_custom_call.1} parent=5 // pred_region
        %s3540 = ssub.s32 %s14, 2
        // Predicated region
        $region49: #{tpu_custom_call.1} parent=47 // pred_check
          %p3541 = pneg %p153
        $region50: #{tpu_custom_call.1} parent=47 // pred_check_branch
          %3543 = sbr.rel (%p3541) target = $region52
        $region51: #{tpu_custom_call.1} parent=47 // pred_region
          %s3544 = sand.u32 %s138, 1
          %s3545 = scalar_lea.sflag [#allocation3], %s3544
          %s3546 = sand.u32 %s138, 1
          %s3547 = smul.addr %s3546, 8
          %s3548 = scalar_lea.vmem [#allocation2], %s3547
          %3549 = dma.done %s3545, 128
        $region52: #{tpu_custom_call.1} parent=47 // pred_fallthru
          _
      $region48: #{tpu_custom_call.1} parent=5 // pred_fallthru
        _
    $region6: #{tpu_custom_call.1} parent=1 // loop_footer
      %s18 = sadd.s32 1, %s14
    $region7: #{tpu_custom_call.1} parent=1 // loop_footer_branch
      %13 = sbr.rel target = $region3
    $region8: #{tpu_custom_call.1} parent=1 // loop_exit
      _
    %3550 = vsyncpa [#allocation3], 1
    %s3551 = scalar_lea.sflag [#allocation3], 1
    %3552 = vsyncpa %s3551, 1

</llo_original>
